<compile_context>
chip_gen: v7x
topology: tpu7x:2x2x1
jax: 0.10.0
libtpu: 0.0.40
codegen_flags: <defaults>
</compile_context>

<pallas_src>
import math

import jax
import jax.numpy as jnp
from jax import lax
from jax.experimental import pallas as pl
from jax.experimental.pallas import tpu as pltpu


# -----------------------------------------------------------------------------
# Pallas kernel: full LSTM stack + FC head in one invocation (everything fits
# in VMEM at these sizes, so no grid / no tiling).
# -----------------------------------------------------------------------------
def _make_kernel(T, Bp, H, L):
    H4 = 4 * H

    def kernel(x2d_ref,      # (T*Bp, D)     time-major, batch-padded, flattened
               wih0_ref,     # (D, 4H)       layer-0 input weights (transposed)
               b0_ref,       # (1, 4H)       layer-0 b_ih + b_hh
               wfused_ref,   # (L-1, H, 8H)  [Whh_l^T | Wih_{l+1}^T] per layer l<L-1
               whhL_ref,     # (H, 4H)       last layer's Whh (transposed)
               bU_ref,       # (L-1, 4H)     b_ih + b_hh for layers 1..L-1
               w1_ref,       # (H, FCp)      fc1 weight (transposed, lane-padded)
               b1_ref,       # (1, FCp)
               w2_ref,       # (FCp, NCp)    fc2 weight (transposed, lane-padded)
               b2_ref,       # (1, NCp)
               out_ref,      # (Bp, NCp)
               gates0_ref):  # scratch VMEM (T, Bp, 4H): layer-0 input gates
        # Hoisted input projection for layer 0 (+ folded bias): one big
        # (T*Bp, D) @ (D, 4H) MXU matmul instead of T tiny ones on the
        # serial critical path.
        gates0_ref[...] = (
            jnp.dot(x2d_ref[...], wih0_ref[...],
                    preferred_element_type=jnp.float32) + b0_ref[...]
        ).reshape(T, Bp, H4)

        # Loop-invariant weights, loaded once (hoisted out of the unrolled loop).
        wfused = [wfused_ref[l] for l in range(L - 1)]       # (H, 8H) each
        whh_last = whhL_ref[...]                             # (H, 4H)
        b_up = [bU_ref[l:l + 1, :] for l in range(L - 1)]    # (1, 4H) each

        def lstm_cell(g, c):
            # 2 full-vreg EUP pushes (sigmoid + tanh on the whole 4H-wide g)
            # instead of 4 sub-vreg ones; PyTorch gate order is i, f, g, o.
            sg = jax.nn.sigmoid(g)
            th = jnp.tanh(g)
            c_new = sg[:, H:2 * H] * c + sg[:, :H] * th[:, 2 * H:3 * H]
            h_new = sg[:, 3 * H:] * jnp.tanh(c_new)
            return h_new, c_new

        zh = jnp.zeros((Bp, H), jnp.float32)
        zg = jnp.zeros((Bp, H4), jnp.float32)
        # carry per layer: (h, c, rec) with rec = h[t-1] @ Whh_l^T (0 at t=0).
        carry0 = tuple(v for _ in range(L) for v in (zh, zh, zg))

        def step(t, carry):
            hs = list(carry[0::3])
            cs = list(carry[1::3])
            rec = list(carry[2::3])
            inp = None
            for l in range(L):
                if l == 0:
                    g = gates0_ref[t] + rec[0]                 # bias already folded
                else:
                    g = inp + rec[l] + b_up[l - 1]
                hs[l], cs[l] = lstm_cell(g, cs[l])
                if l < L - 1:
                    # One fused (Bp,H)@(H,8H) push: columns [:4H] are this
                    # layer's next-step recurrent gates, [4H:] are layer l+1's
                    # input gates for the current step (wavefront edge).
                    proj = jnp.dot(hs[l], wfused[l],
                                   preferred_element_type=jnp.float32)
                    rec[l] = proj[:, :H4]
                    inp = proj[:, H4:]
                else:
                    rec[l] = jnp.dot(hs[l], whh_last,
                                     preferred_element_type=jnp.float32)
            return tuple(v for l in range(L) for v in (hs[l], cs[l], rec[l]))

        # T is small and static -> fully unroll for scheduler visibility.
        carry_f = lax.fori_loop(0, T, step, carry0, unroll=True)
        h_last = carry_f[3 * (L - 1)]

        # Head on the last timestep of the last layer: fc1 -> relu -> dropout
        # (identity at inference) -> fc2.  FC/NC lane-padded -> dense matmuls.
        y1 = jnp.maximum(
            jnp.dot(h_last, w1_ref[...], preferred_element_type=jnp.float32)
            + b1_ref[...], 0.0)
        out_ref[...] = (
            jnp.dot(y1, w2_ref[...], preferred_element_type=jnp.float32)
            + b2_ref[...]).astype(out_ref.dtype)

    return kernel


# -----------------------------------------------------------------------------
# Wrapper: parameter plumbing (transpose / stack / pad) in plain JAX.
# -----------------------------------------------------------------------------
def decoder_rnn_forward(x, wih_list, whh_list, bih_list, bhh_list, w1, b1, w2, b2):
    """x: (B, T, D) batch-first, float32. Returns (B, n_classes)."""
    B, T, D = x.shape
    L = len(whh_list)
    H = whh_list[0].shape[1]
    FC = w1.shape[0]
    NC = w2.shape[0]

    SUB, LANE = 8, 128
    Bp = ((B + SUB - 1) // SUB) * SUB           # pad batch to f32 sublane width
    FCp = ((FC + LANE - 1) // LANE) * LANE      # pad fc dim to lane width
    NCp = ((NC + LANE - 1) // LANE) * LANE      # pad classes to lane width

    f32 = jnp.float32
    # (B,T,D) -> time-major, batch-padded, flattened to (T*Bp, D).
    x_tm = jnp.transpose(x, (1, 0, 2)).astype(f32)              # (T, B, D)
    x_tm = jnp.pad(x_tm, ((0, 0), (0, Bp - B), (0, 0)))         # (T, Bp, D)
    x2d = x_tm.reshape(T * Bp, D)

    wih0_t = wih_list[0].T.astype(f32)                          # (D, 4H)
    b0 = (bih_list[0] + bhh_list[0])[None, :].astype(f32)       # (1, 4H)
    whhL_t = whh_list[L - 1].T.astype(f32)                      # (H, 4H)

    if L > 1:
        # Fused RHS per non-final layer: [Whh_l^T | Wih_{l+1}^T] -> (H, 8H).
        wfused = jnp.stack(
            [jnp.concatenate([whh_list[l].T, wih_list[l + 1].T], axis=1)
             for l in range(L - 1)], axis=0).astype(f32)        # (L-1, H, 8H)
        bU = jnp.stack([bih_list[l] + bhh_list[l]
                        for l in range(1, L)], axis=0).astype(f32)  # (L-1, 4H)
    else:
        wfused = jnp.zeros((1, H, 8 * H), f32)                  # unused dummy
        bU = jnp.zeros((1, 4 * H), f32)                         # unused dummy

    w1_t = jnp.pad(w1.T.astype(f32), ((0, 0), (0, FCp - FC)))           # (H, FCp)
    b1_2d = jnp.pad(b1[None, :].astype(f32), ((0, 0), (0, FCp - FC)))   # (1, FCp)
    w2_t = jnp.pad(w2.T.astype(f32), ((0, FCp - FC), (0, NCp - NC)))    # (FCp, NCp)
    b2_2d = jnp.pad(b2[None, :].astype(f32), ((0, 0), (0, NCp - NC)))   # (1, NCp)

    # TODO(synk): at production T/B, tile T via a grid axis / emit_pipeline and
    # stream x2d from HBM (gates0 scratch sized per chunk, explicit
    # vmem_limit_bytes for v7x's 64 MiB VMEM), and add a batch-'parallel' grid
    # axis so v7x's 2 TensorCores split independent batch rows.
    vspec = pl.BlockSpec(memory_space=pltpu.MemorySpace.VMEM)
    out_p = pl.pallas_call(
        _make_kernel(T, Bp, H, L),
        out_shape=jax.ShapeDtypeStruct((Bp, NCp), jnp.float32),
        in_specs=[vspec] * 10,
        out_specs=vspec,
        scratch_shapes=[pltpu.VMEM((T, Bp, 4 * H), jnp.float32)],
    )(x2d, wih0_t, b0, wfused, whhL_t, bU, w1_t, b1_2d, w2_t, b2_2d)
    return out_p[:B, :NC]


# -----------------------------------------------------------------------------
# Pure-JAX reference (mirrors torch.nn.LSTM semantics) for verification.
# -----------------------------------------------------------------------------
def reference_forward(x, wih_list, whh_list, bih_list, bhh_list, w1, b1, w2, b2):
    seq = x
    for l in range(len(whh_list)):
        B_, T_, _ = seq.shape
        H_ = whh_list[l].shape[1]
        h = jnp.zeros((B_, H_), jnp.float32)
        c = jnp.zeros((B_, H_), jnp.float32)
        outs = []
        for t in range(T_):
            g = (seq[:, t] @ wih_list[l].T + bih_list[l]
                 + h @ whh_list[l].T + bhh_list[l])
            i_g, f_g, g_g, o_g = jnp.split(g, 4, axis=-1)
            c = jax.nn.sigmoid(f_g) * c + jax.nn.sigmoid(i_g) * jnp.tanh(g_g)
            h = jax.nn.sigmoid(o_g) * jnp.tanh(c)
            outs.append(h)
        seq = jnp.stack(outs, axis=1)
    h_last = seq[:, -1, :]
    y = jnp.maximum(h_last @ w1.T + b1, 0.0)        # dropout = identity (eval)
    return y @ w2.T + b2


if __name__ == "__main__":
    # Small shapes consistent with the module's forward:
    # x_RNN: (batch, time, in_channels); 3 LSTM layers; fc head.
    B, T, D = 2, 8, 16           # batch, seq len, in_channels
    L, H, FC, NC = 3, 32, 16, 2  # layers, hidden, fc dim, n_classes

    key = jax.random.PRNGKey(0)

    def uni(k, shape, bound):
        return jax.random.uniform(k, shape, jnp.float32, -bound, bound)

    kH = 1.0 / math.sqrt(H)
    wih_list, whh_list, bih_list, bhh_list = [], [], [], []
    for l in range(L):
        d_in = D if l == 0 else H
        key, k1, k2, k3, k4 = jax.random.split(key, 5)
        wih_list.append(uni(k1, (4 * H, d_in), kH))
        whh_list.append(uni(k2, (4 * H, H), kH))
        bih_list.append(uni(k3, (4 * H,), kH))
        bhh_list.append(uni(k4, (4 * H,), kH))

    key, k1, k2, k3, k4, kx = jax.random.split(key, 6)
    w1 = uni(k1, (FC, H), 1.0 / math.sqrt(H))
    b1 = uni(k2, (FC,), 1.0 / math.sqrt(H))
    w2 = uni(k3, (NC, FC), 1.0 / math.sqrt(FC))
    b2 = uni(k4, (NC,), 1.0 / math.sqrt(FC))

    x = jax.random.normal(kx, (B, T, D), jnp.float32)

    out = decoder_rnn_forward(x, wih_list, whh_list, bih_list, bhh_list,
                              w1, b1, w2, b2)
    out = jax.block_until_ready(out)

    ref = reference_forward(x, wih_list, whh_list, bih_list, bhh_list,
                            w1, b1, w2, b2)
    assert out.shape == (B, NC)
    assert jnp.allclose(out, ref, atol=2e-4, rtol=2e-4), (out, ref)

    print("KERNEL_OK")
</pallas_src>

<mosaic_0001>
module attributes {stable_mosaic.version = 11 : i64} {
  func.func @kernel(%arg0: memref<64x16xf32, #tpu.memory_space<vmem>>, %arg1: memref<16x128xf32, #tpu.memory_space<vmem>>, %arg2: memref<1x128xf32, #tpu.memory_space<vmem>>, %arg3: memref<2x32x256xf32, #tpu.memory_space<vmem>>, %arg4: memref<32x128xf32, #tpu.memory_space<vmem>>, %arg5: memref<2x128xf32, #tpu.memory_space<vmem>>, %arg6: memref<32x128xf32, #tpu.memory_space<vmem>>, %arg7: memref<1x128xf32, #tpu.memory_space<vmem>>, %arg8: memref<128x128xf32, #tpu.memory_space<vmem>>, %arg9: memref<1x128xf32, #tpu.memory_space<vmem>>, %arg10: memref<8x128xf32, #tpu.memory_space<vmem>>, %arg11: memref<8x8x128xf32, #tpu.memory_space<vmem>>) attributes {dimension_semantics = [], scalar_prefetch = 0 : i64, scratch_operands = 1 : i64, tpu.core_type = #tpu.core_type<tc>} {
    %c0 = arith.constant 0 : index
    %c0_0 = arith.constant 0 : index
    %0 = vector.load %arg0[%c0, %c0_0] : memref<64x16xf32, #tpu.memory_space<vmem>>, vector<64x16xf32>
    %c0_1 = arith.constant 0 : index
    %c0_2 = arith.constant 0 : index
    %1 = vector.load %arg1[%c0_1, %c0_2] : memref<16x128xf32, #tpu.memory_space<vmem>>, vector<16x128xf32>
    %cst = arith.constant dense<0.000000e+00> : vector<64x128xf32>
    %2 = tpu.matmul %0, %1, %cst {dimension_numbers = #tpu.dot_dimension_numbers<[1], [0], [0], [1], [0, 0, 1, 1], [], []>} : vector<64x16xf32>, vector<16x128xf32>, vector<64x128xf32> -> vector<64x128xf32>
    %c0_3 = arith.constant 0 : index
    %c0_4 = arith.constant 0 : index
    %3 = vector.load %arg2[%c0_3, %c0_4] : memref<1x128xf32, #tpu.memory_space<vmem>>, vector<1x128xf32>
    %4 = vector.broadcast %3 : vector<1x128xf32> to vector<64x128xf32>
    %5 = arith.addf %2, %4 : vector<64x128xf32>
    %6 = vector.shape_cast %5 : vector<64x128xf32> to vector<8x8x128xf32>
    %c0_5 = arith.constant 0 : index
    %c0_6 = arith.constant 0 : index
    %c0_7 = arith.constant 0 : index
    %7 = vector.load %arg11[%c0_5, %c0_6, %c0_7] : memref<8x8x128xf32, #tpu.memory_space<vmem>>, vector<8x8x128xf32>
    tpu.vector_store %arg11[%c0_5, %c0_6, %c0_7], %6 {strides = array<i32>} : memref<8x8x128xf32, #tpu.memory_space<vmem>>, vector<8x8x128xf32>,
    %c0_8 = arith.constant 0 : index
    %c0_9 = arith.constant 0 : index
    %c0_10 = arith.constant 0 : index
    %8 = vector.load %arg3[%c0_8, %c0_9, %c0_10] : memref<2x32x256xf32, #tpu.memory_space<vmem>>, vector<1x32x256xf32>
    %9 = vector.shape_cast %8 : vector<1x32x256xf32> to vector<32x256xf32>
    %c1 = arith.constant 1 : index
    %c0_11 = arith.constant 0 : index
    %c0_12 = arith.constant 0 : index
    %10 = vector.load %arg3[%c1, %c0_11, %c0_12] : memref<2x32x256xf32, #tpu.memory_space<vmem>>, vector<1x32x256xf32>
    %11 = vector.shape_cast %10 : vector<1x32x256xf32> to vector<32x256xf32>
    %c0_13 = arith.constant 0 : index
    %c0_14 = arith.constant 0 : index
    %12 = vector.load %arg4[%c0_13, %c0_14] : memref<32x128xf32, #tpu.memory_space<vmem>>, vector<32x128xf32>
    %c0_15 = arith.constant 0 : index
    %c0_16 = arith.constant 0 : index
    %13 = vector.load %arg5[%c0_15, %c0_16] : memref<2x128xf32, #tpu.memory_space<vmem>>, vector<1x128xf32>
    %c1_17 = arith.constant 1 : index
    %c0_18 = arith.constant 0 : index
    %14 = vector.load %arg5[%c1_17, %c0_18] : memref<2x128xf32, #tpu.memory_space<vmem>>, vector<1x128xf32>
    %cst_19 = arith.constant 0.000000e+00 : f32
    %15 = vector.broadcast %cst_19 : f32 to vector<8x32xf32>
    %cst_20 = arith.constant 0.000000e+00 : f32
    %16 = vector.broadcast %cst_20 : f32 to vector<8x128xf32>
    %c0_i32 = arith.constant 0 : i32
    %17 = arith.index_cast %c0_i32 : i32 to index
    %c0_21 = arith.constant 0 : index
    %c0_22 = arith.constant 0 : index
    %18 = vector.load %arg11[%17, %c0_21, %c0_22] : memref<8x8x128xf32, #tpu.memory_space<vmem>>, vector<1x8x128xf32>
    %19 = vector.shape_cast %18 : vector<1x8x128xf32> to vector<8x128xf32>
    %20 = arith.addf %19, %16 : vector<8x128xf32>
    %21 = arith.negf %20 : vector<8x128xf32>
    %22 = math.exp %21 : vector<8x128xf32>
    %cst_23 = arith.constant 1.000000e+00 : f32
    %23 = vector.broadcast %cst_23 : f32 to vector<8x128xf32>
    %24 = arith.addf %23, %22 : vector<8x128xf32>
    %25 = arith.divf %23, %24 : vector<8x128xf32>
    %26 = math.tanh %20 : vector<8x128xf32>
    %27 = vector.extract_strided_slice %25 {offsets = [0, 32], sizes = [8, 32], strides = [1, 1]} : vector<8x128xf32> to vector<8x32xf32>
    %28 = arith.mulf %27, %15 : vector<8x32xf32>
    %29 = vector.extract_strided_slice %25 {offsets = [0, 0], sizes = [8, 32], strides = [1, 1]} : vector<8x128xf32> to vector<8x32xf32>
    %30 = vector.extract_strided_slice %26 {offsets = [0, 64], sizes = [8, 32], strides = [1, 1]} : vector<8x128xf32> to vector<8x32xf32>
    %31 = arith.mulf %29, %30 : vector<8x32xf32>
    %32 = arith.addf %28, %31 : vector<8x32xf32>
    %33 = vector.extract_strided_slice %25 {offsets = [0, 96], sizes = [8, 32], strides = [1, 1]} : vector<8x128xf32> to vector<8x32xf32>
    %34 = math.tanh %32 : vector<8x32xf32>
    %35 = arith.mulf %33, %34 : vector<8x32xf32>
    %cst_24 = arith.constant dense<0.000000e+00> : vector<8x256xf32>
    %36 = tpu.matmul %35, %9, %cst_24 {dimension_numbers = #tpu.dot_dimension_numbers<[1], [0], [0], [1], [0, 0, 1, 1], [], []>} : vector<8x32xf32>, vector<32x256xf32>, vector<8x256xf32> -> vector<8x256xf32>
    %37 = vector.extract_strided_slice %36 {offsets = [0, 0], sizes = [8, 128], strides = [1, 1]} : vector<8x256xf32> to vector<8x128xf32>
    %38 = vector.extract_strided_slice %36 {offsets = [0, 128], sizes = [8, 128], strides = [1, 1]} : vector<8x256xf32> to vector<8x128xf32>
    %39 = arith.addf %38, %16 : vector<8x128xf32>
    %40 = vector.broadcast %13 : vector<1x128xf32> to vector<8x128xf32>
    %41 = arith.addf %39, %40 : vector<8x128xf32>
    %42 = arith.negf %41 : vector<8x128xf32>
    %43 = math.exp %42 : vector<8x128xf32>
    %cst_25 = arith.constant 1.000000e+00 : f32
    %44 = vector.broadcast %cst_25 : f32 to vector<8x128xf32>
    %45 = arith.addf %44, %43 : vector<8x128xf32>
    %46 = arith.divf %44, %45 : vector<8x128xf32>
    %47 = math.tanh %41 : vector<8x128xf32>
    %48 = vector.extract_strided_slice %46 {offsets = [0, 32], sizes = [8, 32], strides = [1, 1]} : vector<8x128xf32> to vector<8x32xf32>
    %49 = arith.mulf %48, %15 : vector<8x32xf32>
    %50 = vector.extract_strided_slice %46 {offsets = [0, 0], sizes = [8, 32], strides = [1, 1]} : vector<8x128xf32> to vector<8x32xf32>
    %51 = vector.extract_strided_slice %47 {offsets = [0, 64], sizes = [8, 32], strides = [1, 1]} : vector<8x128xf32> to vector<8x32xf32>
    %52 = arith.mulf %50, %51 : vector<8x32xf32>
    %53 = arith.addf %49, %52 : vector<8x32xf32>
    %54 = vector.extract_strided_slice %46 {offsets = [0, 96], sizes = [8, 32], strides = [1, 1]} : vector<8x128xf32> to vector<8x32xf32>
    %55 = math.tanh %53 : vector<8x32xf32>
    %56 = arith.mulf %54, %55 : vector<8x32xf32>
    %cst_26 = arith.constant dense<0.000000e+00> : vector<8x256xf32>
    %57 = tpu.matmul %56, %11, %cst_26 {dimension_numbers = #tpu.dot_dimension_numbers<[1], [0], [0], [1], [0, 0, 1, 1], [], []>} : vector<8x32xf32>, vector<32x256xf32>, vector<8x256xf32> -> vector<8x256xf32>
    %58 = vector.extract_strided_slice %57 {offsets = [0, 0], sizes = [8, 128], strides = [1, 1]} : vector<8x256xf32> to vector<8x128xf32>
    %59 = vector.extract_strided_slice %57 {offsets = [0, 128], sizes = [8, 128], strides = [1, 1]} : vector<8x256xf32> to vector<8x128xf32>
    %60 = arith.addf %59, %16 : vector<8x128xf32>
    %61 = vector.broadcast %14 : vector<1x128xf32> to vector<8x128xf32>
    %62 = arith.addf %60, %61 : vector<8x128xf32>
    %63 = arith.negf %62 : vector<8x128xf32>
    %64 = math.exp %63 : vector<8x128xf32>
    %cst_27 = arith.constant 1.000000e+00 : f32
    %65 = vector.broadcast %cst_27 : f32 to vector<8x128xf32>
    %66 = arith.addf %65, %64 : vector<8x128xf32>
    %67 = arith.divf %65, %66 : vector<8x128xf32>
    %68 = math.tanh %62 : vector<8x128xf32>
    %69 = vector.extract_strided_slice %67 {offsets = [0, 32], sizes = [8, 32], strides = [1, 1]} : vector<8x128xf32> to vector<8x32xf32>
    %70 = arith.mulf %69, %15 : vector<8x32xf32>
    %71 = vector.extract_strided_slice %67 {offsets = [0, 0], sizes = [8, 32], strides = [1, 1]} : vector<8x128xf32> to vector<8x32xf32>
    %72 = vector.extract_strided_slice %68 {offsets = [0, 64], sizes = [8, 32], strides = [1, 1]} : vector<8x128xf32> to vector<8x32xf32>
    %73 = arith.mulf %71, %72 : vector<8x32xf32>
    %74 = arith.addf %70, %73 : vector<8x32xf32>
    %75 = vector.extract_strided_slice %67 {offsets = [0, 96], sizes = [8, 32], strides = [1, 1]} : vector<8x128xf32> to vector<8x32xf32>
    %76 = math.tanh %74 : vector<8x32xf32>
    %77 = arith.mulf %75, %76 : vector<8x32xf32>
    %cst_28 = arith.constant dense<0.000000e+00> : vector<8x128xf32>
    %78 = tpu.matmul %77, %12, %cst_28 {dimension_numbers = #tpu.dot_dimension_numbers<[1], [0], [0], [1], [0, 0, 1, 1], [], []>} : vector<8x32xf32>, vector<32x128xf32>, vector<8x128xf32> -> vector<8x128xf32>
    %c1_i32 = arith.constant 1 : i32
    %79 = arith.index_cast %c1_i32 : i32 to index
    %c0_29 = arith.constant 0 : index
    %c0_30 = arith.constant 0 : index
    %80 = vector.load %arg11[%79, %c0_29, %c0_30] : memref<8x8x128xf32, #tpu.memory_space<vmem>>, vector<1x8x128xf32>
    %81 = vector.shape_cast %80 : vector<1x8x128xf32> to vector<8x128xf32>
    %82 = arith.addf %81, %37 : vector<8x128xf32>
    %83 = arith.negf %82 : vector<8x128xf32>
    %84 = math.exp %83 : vector<8x128xf32>
    %cst_31 = arith.constant 1.000000e+00 : f32
    %85 = vector.broadcast %cst_31 : f32 to vector<8x128xf32>
    %86 = arith.addf %85, %84 : vector<8x128xf32>
    %87 = arith.divf %85, %86 : vector<8x128xf32>
    %88 = math.tanh %82 : vector<8x128xf32>
    %89 = vector.extract_strided_slice %87 {offsets = [0, 32], sizes = [8, 32], strides = [1, 1]} : vector<8x128xf32> to vector<8x32xf32>
    %90 = arith.mulf %89, %32 : vector<8x32xf32>
    %91 = vector.extract_strided_slice %87 {offsets = [0, 0], sizes = [8, 32], strides = [1, 1]} : vector<8x128xf32> to vector<8x32xf32>
    %92 = vector.extract_strided_slice %88 {offsets = [0, 64], sizes = [8, 32], strides = [1, 1]} : vector<8x128xf32> to vector<8x32xf32>
    %93 = arith.mulf %91, %92 : vector<8x32xf32>
    %94 = arith.addf %90, %93 : vector<8x32xf32>
    %95 = vector.extract_strided_slice %87 {offsets = [0, 96], sizes = [8, 32], strides = [1, 1]} : vector<8x128xf32> to vector<8x32xf32>
    %96 = math.tanh %94 : vector<8x32xf32>
    %97 = arith.mulf %95, %96 : vector<8x32xf32>
    %cst_32 = arith.constant dense<0.000000e+00> : vector<8x256xf32>
    %98 = tpu.matmul %97, %9, %cst_32 {dimension_numbers = #tpu.dot_dimension_numbers<[1], [0], [0], [1], [0, 0, 1, 1], [], []>} : vector<8x32xf32>, vector<32x256xf32>, vector<8x256xf32> -> vector<8x256xf32>
    %99 = vector.extract_strided_slice %98 {offsets = [0, 0], sizes = [8, 128], strides = [1, 1]} : vector<8x256xf32> to vector<8x128xf32>
    %100 = vector.extract_strided_slice %98 {offsets = [0, 128], sizes = [8, 128], strides = [1, 1]} : vector<8x256xf32> to vector<8x128xf32>
    %101 = arith.addf %100, %58 : vector<8x128xf32>
    %102 = vector.broadcast %13 : vector<1x128xf32> to vector<8x128xf32>
    %103 = arith.addf %101, %102 : vector<8x128xf32>
    %104 = arith.negf %103 : vector<8x128xf32>
    %105 = math.exp %104 : vector<8x128xf32>
    %cst_33 = arith.constant 1.000000e+00 : f32
    %106 = vector.broadcast %cst_33 : f32 to vector<8x128xf32>
    %107 = arith.addf %106, %105 : vector<8x128xf32>
    %108 = arith.divf %106, %107 : vector<8x128xf32>
    %109 = math.tanh %103 : vector<8x128xf32>
    %110 = vector.extract_strided_slice %108 {offsets = [0, 32], sizes = [8, 32], strides = [1, 1]} : vector<8x128xf32> to vector<8x32xf32>
    %111 = arith.mulf %110, %53 : vector<8x32xf32>
    %112 = vector.extract_strided_slice %108 {offsets = [0, 0], sizes = [8, 32], strides = [1, 1]} : vector<8x128xf32> to vector<8x32xf32>
    %113 = vector.extract_strided_slice %109 {offsets = [0, 64], sizes = [8, 32], strides = [1, 1]} : vector<8x128xf32> to vector<8x32xf32>
    %114 = arith.mulf %112, %113 : vector<8x32xf32>
    %115 = arith.addf %111, %114 : vector<8x32xf32>
    %116 = vector.extract_strided_slice %108 {offsets = [0, 96], sizes = [8, 32], strides = [1, 1]} : vector<8x128xf32> to vector<8x32xf32>
    %117 = math.tanh %115 : vector<8x32xf32>
    %118 = arith.mulf %116, %117 : vector<8x32xf32>
    %cst_34 = arith.constant dense<0.000000e+00> : vector<8x256xf32>
    %119 = tpu.matmul %118, %11, %cst_34 {dimension_numbers = #tpu.dot_dimension_numbers<[1], [0], [0], [1], [0, 0, 1, 1], [], []>} : vector<8x32xf32>, vector<32x256xf32>, vector<8x256xf32> -> vector<8x256xf32>
    %120 = vector.extract_strided_slice %119 {offsets = [0, 0], sizes = [8, 128], strides = [1, 1]} : vector<8x256xf32> to vector<8x128xf32>
    %121 = vector.extract_strided_slice %119 {offsets = [0, 128], sizes = [8, 128], strides = [1, 1]} : vector<8x256xf32> to vector<8x128xf32>
    %122 = arith.addf %121, %78 : vector<8x128xf32>
    %123 = vector.broadcast %14 : vector<1x128xf32> to vector<8x128xf32>
    %124 = arith.addf %122, %123 : vector<8x128xf32>
    %125 = arith.negf %124 : vector<8x128xf32>
    %126 = math.exp %125 : vector<8x128xf32>
    %cst_35 = arith.constant 1.000000e+00 : f32
    %127 = vector.broadcast %cst_35 : f32 to vector<8x128xf32>
    %128 = arith.addf %127, %126 : vector<8x128xf32>
    %129 = arith.divf %127, %128 : vector<8x128xf32>
    %130 = math.tanh %124 : vector<8x128xf32>
    %131 = vector.extract_strided_slice %129 {offsets = [0, 32], sizes = [8, 32], strides = [1, 1]} : vector<8x128xf32> to vector<8x32xf32>
    %132 = arith.mulf %131, %74 : vector<8x32xf32>
    %133 = vector.extract_strided_slice %129 {offsets = [0, 0], sizes = [8, 32], strides = [1, 1]} : vector<8x128xf32> to vector<8x32xf32>
    %134 = vector.extract_strided_slice %130 {offsets = [0, 64], sizes = [8, 32], strides = [1, 1]} : vector<8x128xf32> to vector<8x32xf32>
    %135 = arith.mulf %133, %134 : vector<8x32xf32>
    %136 = arith.addf %132, %135 : vector<8x32xf32>
    %137 = vector.extract_strided_slice %129 {offsets = [0, 96], sizes = [8, 32], strides = [1, 1]} : vector<8x128xf32> to vector<8x32xf32>
    %138 = math.tanh %136 : vector<8x32xf32>
    %139 = arith.mulf %137, %138 : vector<8x32xf32>
    %cst_36 = arith.constant dense<0.000000e+00> : vector<8x128xf32>
    %140 = tpu.matmul %139, %12, %cst_36 {dimension_numbers = #tpu.dot_dimension_numbers<[1], [0], [0], [1], [0, 0, 1, 1], [], []>} : vector<8x32xf32>, vector<32x128xf32>, vector<8x128xf32> -> vector<8x128xf32>
    %c2_i32 = arith.constant 2 : i32
    %141 = arith.index_cast %c2_i32 : i32 to index
    %c0_37 = arith.constant 0 : index
    %c0_38 = arith.constant 0 : index
    %142 = vector.load %arg11[%141, %c0_37, %c0_38] : memref<8x8x128xf32, #tpu.memory_space<vmem>>, vector<1x8x128xf32>
    %143 = vector.shape_cast %142 : vector<1x8x128xf32> to vector<8x128xf32>
    %144 = arith.addf %143, %99 : vector<8x128xf32>
    %145 = arith.negf %144 : vector<8x128xf32>
    %146 = math.exp %145 : vector<8x128xf32>
    %cst_39 = arith.constant 1.000000e+00 : f32
    %147 = vector.broadcast %cst_39 : f32 to vector<8x128xf32>
    %148 = arith.addf %147, %146 : vector<8x128xf32>
    %149 = arith.divf %147, %148 : vector<8x128xf32>
    %150 = math.tanh %144 : vector<8x128xf32>
    %151 = vector.extract_strided_slice %149 {offsets = [0, 32], sizes = [8, 32], strides = [1, 1]} : vector<8x128xf32> to vector<8x32xf32>
    %152 = arith.mulf %151, %94 : vector<8x32xf32>
    %153 = vector.extract_strided_slice %149 {offsets = [0, 0], sizes = [8, 32], strides = [1, 1]} : vector<8x128xf32> to vector<8x32xf32>
    %154 = vector.extract_strided_slice %150 {offsets = [0, 64], sizes = [8, 32], strides = [1, 1]} : vector<8x128xf32> to vector<8x32xf32>
    %155 = arith.mulf %153, %154 : vector<8x32xf32>
    %156 = arith.addf %152, %155 : vector<8x32xf32>
    %157 = vector.extract_strided_slice %149 {offsets = [0, 96], sizes = [8, 32], strides = [1, 1]} : vector<8x128xf32> to vector<8x32xf32>
    %158 = math.tanh %156 : vector<8x32xf32>
    %159 = arith.mulf %157, %158 : vector<8x32xf32>
    %cst_40 = arith.constant dense<0.000000e+00> : vector<8x256xf32>
    %160 = tpu.matmul %159, %9, %cst_40 {dimension_numbers = #tpu.dot_dimension_numbers<[1], [0], [0], [1], [0, 0, 1, 1], [], []>} : vector<8x32xf32>, vector<32x256xf32>, vector<8x256xf32> -> vector<8x256xf32>
    %161 = vector.extract_strided_slice %160 {offsets = [0, 0], sizes = [8, 128], strides = [1, 1]} : vector<8x256xf32> to vector<8x128xf32>
    %162 = vector.extract_strided_slice %160 {offsets = [0, 128], sizes = [8, 128], strides = [1, 1]} : vector<8x256xf32> to vector<8x128xf32>
    %163 = arith.addf %162, %120 : vector<8x128xf32>
    %164 = vector.broadcast %13 : vector<1x128xf32> to vector<8x128xf32>
    %165 = arith.addf %163, %164 : vector<8x128xf32>
    %166 = arith.negf %165 : vector<8x128xf32>
    %167 = math.exp %166 : vector<8x128xf32>
    %cst_41 = arith.constant 1.000000e+00 : f32
    %168 = vector.broadcast %cst_41 : f32 to vector<8x128xf32>
    %169 = arith.addf %168, %167 : vector<8x128xf32>
    %170 = arith.divf %168, %169 : vector<8x128xf32>
    %171 = math.tanh %165 : vector<8x128xf32>
    %172 = vector.extract_strided_slice %170 {offsets = [0, 32], sizes = [8, 32], strides = [1, 1]} : vector<8x128xf32> to vector<8x32xf32>
    %173 = arith.mulf %172, %115 : vector<8x32xf32>
    %174 = vector.extract_strided_slice %170 {offsets = [0, 0], sizes = [8, 32], strides = [1, 1]} : vector<8x128xf32> to vector<8x32xf32>
    %175 = vector.extract_strided_slice %171 {offsets = [0, 64], sizes = [8, 32], strides = [1, 1]} : vector<8x128xf32> to vector<8x32xf32>
    %176 = arith.mulf %174, %175 : vector<8x32xf32>
    %177 = arith.addf %173, %176 : vector<8x32xf32>
    %178 = vector.extract_strided_slice %170 {offsets = [0, 96], sizes = [8, 32], strides = [1, 1]} : vector<8x128xf32> to vector<8x32xf32>
    %179 = math.tanh %177 : vector<8x32xf32>
    %180 = arith.mulf %178, %179 : vector<8x32xf32>
    %cst_42 = arith.constant dense<0.000000e+00> : vector<8x256xf32>
    %181 = tpu.matmul %180, %11, %cst_42 {dimension_numbers = #tpu.dot_dimension_numbers<[1], [0], [0], [1], [0, 0, 1, 1], [], []>} : vector<8x32xf32>, vector<32x256xf32>, vector<8x256xf32> -> vector<8x256xf32>
    %182 = vector.extract_strided_slice %181 {offsets = [0, 0], sizes = [8, 128], strides = [1, 1]} : vector<8x256xf32> to vector<8x128xf32>
    %183 = vector.extract_strided_slice %181 {offsets = [0, 128], sizes = [8, 128], strides = [1, 1]} : vector<8x256xf32> to vector<8x128xf32>
    %184 = arith.addf %183, %140 : vector<8x128xf32>
    %185 = vector.broadcast %14 : vector<1x128xf32> to vector<8x128xf32>
    %186 = arith.addf %184, %185 : vector<8x128xf32>
    %187 = arith.negf %186 : vector<8x128xf32>
    %188 = math.exp %187 : vector<8x128xf32>
    %cst_43 = arith.constant 1.000000e+00 : f32
    %189 = vector.broadcast %cst_43 : f32 to vector<8x128xf32>
    %190 = arith.addf %189, %188 : vector<8x128xf32>
    %191 = arith.divf %189, %190 : vector<8x128xf32>
    %192 = math.tanh %186 : vector<8x128xf32>
    %193 = vector.extract_strided_slice %191 {offsets = [0, 32], sizes = [8, 32], strides = [1, 1]} : vector<8x128xf32> to vector<8x32xf32>
    %194 = arith.mulf %193, %136 : vector<8x32xf32>
    %195 = vector.extract_strided_slice %191 {offsets = [0, 0], sizes = [8, 32], strides = [1, 1]} : vector<8x128xf32> to vector<8x32xf32>
    %196 = vector.extract_strided_slice %192 {offsets = [0, 64], sizes = [8, 32], strides = [1, 1]} : vector<8x128xf32> to vector<8x32xf32>
    %197 = arith.mulf %195, %196 : vector<8x32xf32>
    %198 = arith.addf %194, %197 : vector<8x32xf32>
    %199 = vector.extract_strided_slice %191 {offsets = [0, 96], sizes = [8, 32], strides = [1, 1]} : vector<8x128xf32> to vector<8x32xf32>
    %200 = math.tanh %198 : vector<8x32xf32>
    %201 = arith.mulf %199, %200 : vector<8x32xf32>
    %cst_44 = arith.constant dense<0.000000e+00> : vector<8x128xf32>
    %202 = tpu.matmul %201, %12, %cst_44 {dimension_numbers = #tpu.dot_dimension_numbers<[1], [0], [0], [1], [0, 0, 1, 1], [], []>} : vector<8x32xf32>, vector<32x128xf32>, vector<8x128xf32> -> vector<8x128xf32>
    %c3_i32 = arith.constant 3 : i32
    %203 = arith.index_cast %c3_i32 : i32 to index
    %c0_45 = arith.constant 0 : index
    %c0_46 = arith.constant 0 : index
    %204 = vector.load %arg11[%203, %c0_45, %c0_46] : memref<8x8x128xf32, #tpu.memory_space<vmem>>, vector<1x8x128xf32>
    %205 = vector.shape_cast %204 : vector<1x8x128xf32> to vector<8x128xf32>
    %206 = arith.addf %205, %161 : vector<8x128xf32>
    %207 = arith.negf %206 : vector<8x128xf32>
    %208 = math.exp %207 : vector<8x128xf32>
    %cst_47 = arith.constant 1.000000e+00 : f32
    %209 = vector.broadcast %cst_47 : f32 to vector<8x128xf32>
    %210 = arith.addf %209, %208 : vector<8x128xf32>
    %211 = arith.divf %209, %210 : vector<8x128xf32>
    %212 = math.tanh %206 : vector<8x128xf32>
    %213 = vector.extract_strided_slice %211 {offsets = [0, 32], sizes = [8, 32], strides = [1, 1]} : vector<8x128xf32> to vector<8x32xf32>
    %214 = arith.mulf %213, %156 : vector<8x32xf32>
    %215 = vector.extract_strided_slice %211 {offsets = [0, 0], sizes = [8, 32], strides = [1, 1]} : vector<8x128xf32> to vector<8x32xf32>
    %216 = vector.extract_strided_slice %212 {offsets = [0, 64], sizes = [8, 32], strides = [1, 1]} : vector<8x128xf32> to vector<8x32xf32>
    %217 = arith.mulf %215, %216 : vector<8x32xf32>
    %218 = arith.addf %214, %217 : vector<8x32xf32>
    %219 = vector.extract_strided_slice %211 {offsets = [0, 96], sizes = [8, 32], strides = [1, 1]} : vector<8x128xf32> to vector<8x32xf32>
    %220 = math.tanh %218 : vector<8x32xf32>
    %221 = arith.mulf %219, %220 : vector<8x32xf32>
    %cst_48 = arith.constant dense<0.000000e+00> : vector<8x256xf32>
    %222 = tpu.matmul %221, %9, %cst_48 {dimension_numbers = #tpu.dot_dimension_numbers<[1], [0], [0], [1], [0, 0, 1, 1], [], []>} : vector<8x32xf32>, vector<32x256xf32>, vector<8x256xf32> -> vector<8x256xf32>
    %223 = vector.extract_strided_slice %222 {offsets = [0, 0], sizes = [8, 128], strides = [1, 1]} : vector<8x256xf32> to vector<8x128xf32>
    %224 = vector.extract_strided_slice %222 {offsets = [0, 128], sizes = [8, 128], strides = [1, 1]} : vector<8x256xf32> to vector<8x128xf32>
    %225 = arith.addf %224, %182 : vector<8x128xf32>
    %226 = vector.broadcast %13 : vector<1x128xf32> to vector<8x128xf32>
    %227 = arith.addf %225, %226 : vector<8x128xf32>
    %228 = arith.negf %227 : vector<8x128xf32>
    %229 = math.exp %228 : vector<8x128xf32>
    %cst_49 = arith.constant 1.000000e+00 : f32
    %230 = vector.broadcast %cst_49 : f32 to vector<8x128xf32>
    %231 = arith.addf %230, %229 : vector<8x128xf32>
    %232 = arith.divf %230, %231 : vector<8x128xf32>
    %233 = math.tanh %227 : vector<8x128xf32>
    %234 = vector.extract_strided_slice %232 {offsets = [0, 32], sizes = [8, 32], strides = [1, 1]} : vector<8x128xf32> to vector<8x32xf32>
    %235 = arith.mulf %234, %177 : vector<8x32xf32>
    %236 = vector.extract_strided_slice %232 {offsets = [0, 0], sizes = [8, 32], strides = [1, 1]} : vector<8x128xf32> to vector<8x32xf32>
    %237 = vector.extract_strided_slice %233 {offsets = [0, 64], sizes = [8, 32], strides = [1, 1]} : vector<8x128xf32> to vector<8x32xf32>
    %238 = arith.mulf %236, %237 : vector<8x32xf32>
    %239 = arith.addf %235, %238 : vector<8x32xf32>
    %240 = vector.extract_strided_slice %232 {offsets = [0, 96], sizes = [8, 32], strides = [1, 1]} : vector<8x128xf32> to vector<8x32xf32>
    %241 = math.tanh %239 : vector<8x32xf32>
    %242 = arith.mulf %240, %241 : vector<8x32xf32>
    %cst_50 = arith.constant dense<0.000000e+00> : vector<8x256xf32>
    %243 = tpu.matmul %242, %11, %cst_50 {dimension_numbers = #tpu.dot_dimension_numbers<[1], [0], [0], [1], [0, 0, 1, 1], [], []>} : vector<8x32xf32>, vector<32x256xf32>, vector<8x256xf32> -> vector<8x256xf32>
    %244 = vector.extract_strided_slice %243 {offsets = [0, 0], sizes = [8, 128], strides = [1, 1]} : vector<8x256xf32> to vector<8x128xf32>
    %245 = vector.extract_strided_slice %243 {offsets = [0, 128], sizes = [8, 128], strides = [1, 1]} : vector<8x256xf32> to vector<8x128xf32>
    %246 = arith.addf %245, %202 : vector<8x128xf32>
    %247 = vector.broadcast %14 : vector<1x128xf32> to vector<8x128xf32>
    %248 = arith.addf %246, %247 : vector<8x128xf32>
    %249 = arith.negf %248 : vector<8x128xf32>
    %250 = math.exp %249 : vector<8x128xf32>
    %cst_51 = arith.constant 1.000000e+00 : f32
    %251 = vector.broadcast %cst_51 : f32 to vector<8x128xf32>
    %252 = arith.addf %251, %250 : vector<8x128xf32>
    %253 = arith.divf %251, %252 : vector<8x128xf32>
    %254 = math.tanh %248 : vector<8x128xf32>
    %255 = vector.extract_strided_slice %253 {offsets = [0, 32], sizes = [8, 32], strides = [1, 1]} : vector<8x128xf32> to vector<8x32xf32>
    %256 = arith.mulf %255, %198 : vector<8x32xf32>
    %257 = vector.extract_strided_slice %253 {offsets = [0, 0], sizes = [8, 32], strides = [1, 1]} : vector<8x128xf32> to vector<8x32xf32>
    %258 = vector.extract_strided_slice %254 {offsets = [0, 64], sizes = [8, 32], strides = [1, 1]} : vector<8x128xf32> to vector<8x32xf32>
    %259 = arith.mulf %257, %258 : vector<8x32xf32>
    %260 = arith.addf %256, %259 : vector<8x32xf32>
    %261 = vector.extract_strided_slice %253 {offsets = [0, 96], sizes = [8, 32], strides = [1, 1]} : vector<8x128xf32> to vector<8x32xf32>
    %262 = math.tanh %260 : vector<8x32xf32>
    %263 = arith.mulf %261, %262 : vector<8x32xf32>
    %cst_52 = arith.constant dense<0.000000e+00> : vector<8x128xf32>
    %264 = tpu.matmul %263, %12, %cst_52 {dimension_numbers = #tpu.dot_dimension_numbers<[1], [0], [0], [1], [0, 0, 1, 1], [], []>} : vector<8x32xf32>, vector<32x128xf32>, vector<8x128xf32> -> vector<8x128xf32>
    %c4_i32 = arith.constant 4 : i32
    %265 = arith.index_cast %c4_i32 : i32 to index
    %c0_53 = arith.constant 0 : index
    %c0_54 = arith.constant 0 : index
    %266 = vector.load %arg11[%265, %c0_53, %c0_54] : memref<8x8x128xf32, #tpu.memory_space<vmem>>, vector<1x8x128xf32>
    %267 = vector.shape_cast %266 : vector<1x8x128xf32> to vector<8x128xf32>
    %268 = arith.addf %267, %223 : vector<8x128xf32>
    %269 = arith.negf %268 : vector<8x128xf32>
    %270 = math.exp %269 : vector<8x128xf32>
    %cst_55 = arith.constant 1.000000e+00 : f32
    %271 = vector.broadcast %cst_55 : f32 to vector<8x128xf32>
    %272 = arith.addf %271, %270 : vector<8x128xf32>
    %273 = arith.divf %271, %272 : vector<8x128xf32>
    %274 = math.tanh %268 : vector<8x128xf32>
    %275 = vector.extract_strided_slice %273 {offsets = [0, 32], sizes = [8, 32], strides = [1, 1]} : vector<8x128xf32> to vector<8x32xf32>
    %276 = arith.mulf %275, %218 : vector<8x32xf32>
    %277 = vector.extract_strided_slice %273 {offsets = [0, 0], sizes = [8, 32], strides = [1, 1]} : vector<8x128xf32> to vector<8x32xf32>
    %278 = vector.extract_strided_slice %274 {offsets = [0, 64], sizes = [8, 32], strides = [1, 1]} : vector<8x128xf32> to vector<8x32xf32>
    %279 = arith.mulf %277, %278 : vector<8x32xf32>
    %280 = arith.addf %276, %279 : vector<8x32xf32>
    %281 = vector.extract_strided_slice %273 {offsets = [0, 96], sizes = [8, 32], strides = [1, 1]} : vector<8x128xf32> to vector<8x32xf32>
    %282 = math.tanh %280 : vector<8x32xf32>
    %283 = arith.mulf %281, %282 : vector<8x32xf32>
    %cst_56 = arith.constant dense<0.000000e+00> : vector<8x256xf32>
    %284 = tpu.matmul %283, %9, %cst_56 {dimension_numbers = #tpu.dot_dimension_numbers<[1], [0], [0], [1], [0, 0, 1, 1], [], []>} : vector<8x32xf32>, vector<32x256xf32>, vector<8x256xf32> -> vector<8x256xf32>
    %285 = vector.extract_strided_slice %284 {offsets = [0, 0], sizes = [8, 128], strides = [1, 1]} : vector<8x256xf32> to vector<8x128xf32>
    %286 = vector.extract_strided_slice %284 {offsets = [0, 128], sizes = [8, 128], strides = [1, 1]} : vector<8x256xf32> to vector<8x128xf32>
    %287 = arith.addf %286, %244 : vector<8x128xf32>
    %288 = vector.broadcast %13 : vector<1x128xf32> to vector<8x128xf32>
    %289 = arith.addf %287, %288 : vector<8x128xf32>
    %290 = arith.negf %289 : vector<8x128xf32>
    %291 = math.exp %290 : vector<8x128xf32>
    %cst_57 = arith.constant 1.000000e+00 : f32
    %292 = vector.broadcast %cst_57 : f32 to vector<8x128xf32>
    %293 = arith.addf %292, %291 : vector<8x128xf32>
    %294 = arith.divf %292, %293 : vector<8x128xf32>
    %295 = math.tanh %289 : vector<8x128xf32>
    %296 = vector.extract_strided_slice %294 {offsets = [0, 32], sizes = [8, 32], strides = [1, 1]} : vector<8x128xf32> to vector<8x32xf32>
    %297 = arith.mulf %296, %239 : vector<8x32xf32>
    %298 = vector.extract_strided_slice %294 {offsets = [0, 0], sizes = [8, 32], strides = [1, 1]} : vector<8x128xf32> to vector<8x32xf32>
    %299 = vector.extract_strided_slice %295 {offsets = [0, 64], sizes = [8, 32], strides = [1, 1]} : vector<8x128xf32> to vector<8x32xf32>
    %300 = arith.mulf %298, %299 : vector<8x32xf32>
    %301 = arith.addf %297, %300 : vector<8x32xf32>
    %302 = vector.extract_strided_slice %294 {offsets = [0, 96], sizes = [8, 32], strides = [1, 1]} : vector<8x128xf32> to vector<8x32xf32>
    %303 = math.tanh %301 : vector<8x32xf32>
    %304 = arith.mulf %302, %303 : vector<8x32xf32>
    %cst_58 = arith.constant dense<0.000000e+00> : vector<8x256xf32>
    %305 = tpu.matmul %304, %11, %cst_58 {dimension_numbers = #tpu.dot_dimension_numbers<[1], [0], [0], [1], [0, 0, 1, 1], [], []>} : vector<8x32xf32>, vector<32x256xf32>, vector<8x256xf32> -> vector<8x256xf32>
    %306 = vector.extract_strided_slice %305 {offsets = [0, 0], sizes = [8, 128], strides = [1, 1]} : vector<8x256xf32> to vector<8x128xf32>
    %307 = vector.extract_strided_slice %305 {offsets = [0, 128], sizes = [8, 128], strides = [1, 1]} : vector<8x256xf32> to vector<8x128xf32>
    %308 = arith.addf %307, %264 : vector<8x128xf32>
    %309 = vector.broadcast %14 : vector<1x128xf32> to vector<8x128xf32>
    %310 = arith.addf %308, %309 : vector<8x128xf32>
    %311 = arith.negf %310 : vector<8x128xf32>
    %312 = math.exp %311 : vector<8x128xf32>
    %cst_59 = arith.constant 1.000000e+00 : f32
    %313 = vector.broadcast %cst_59 : f32 to vector<8x128xf32>
    %314 = arith.addf %313, %312 : vector<8x128xf32>
    %315 = arith.divf %313, %314 : vector<8x128xf32>
    %316 = math.tanh %310 : vector<8x128xf32>
    %317 = vector.extract_strided_slice %315 {offsets = [0, 32], sizes = [8, 32], strides = [1, 1]} : vector<8x128xf32> to vector<8x32xf32>
    %318 = arith.mulf %317, %260 : vector<8x32xf32>
    %319 = vector.extract_strided_slice %315 {offsets = [0, 0], sizes = [8, 32], strides = [1, 1]} : vector<8x128xf32> to vector<8x32xf32>
    %320 = vector.extract_strided_slice %316 {offsets = [0, 64], sizes = [8, 32], strides = [1, 1]} : vector<8x128xf32> to vector<8x32xf32>
    %321 = arith.mulf %319, %320 : vector<8x32xf32>
    %322 = arith.addf %318, %321 : vector<8x32xf32>
    %323 = vector.extract_strided_slice %315 {offsets = [0, 96], sizes = [8, 32], strides = [1, 1]} : vector<8x128xf32> to vector<8x32xf32>
    %324 = math.tanh %322 : vector<8x32xf32>
    %325 = arith.mulf %323, %324 : vector<8x32xf32>
    %cst_60 = arith.constant dense<0.000000e+00> : vector<8x128xf32>
    %326 = tpu.matmul %325, %12, %cst_60 {dimension_numbers = #tpu.dot_dimension_numbers<[1], [0], [0], [1], [0, 0, 1, 1], [], []>} : vector<8x32xf32>, vector<32x128xf32>, vector<8x128xf32> -> vector<8x128xf32>
    %c5_i32 = arith.constant 5 : i32
    %327 = arith.index_cast %c5_i32 : i32 to index
    %c0_61 = arith.constant 0 : index
    %c0_62 = arith.constant 0 : index
    %328 = vector.load %arg11[%327, %c0_61, %c0_62] : memref<8x8x128xf32, #tpu.memory_space<vmem>>, vector<1x8x128xf32>
    %329 = vector.shape_cast %328 : vector<1x8x128xf32> to vector<8x128xf32>
    %330 = arith.addf %329, %285 : vector<8x128xf32>
    %331 = arith.negf %330 : vector<8x128xf32>
    %332 = math.exp %331 : vector<8x128xf32>
    %cst_63 = arith.constant 1.000000e+00 : f32
    %333 = vector.broadcast %cst_63 : f32 to vector<8x128xf32>
    %334 = arith.addf %333, %332 : vector<8x128xf32>
    %335 = arith.divf %333, %334 : vector<8x128xf32>
    %336 = math.tanh %330 : vector<8x128xf32>
    %337 = vector.extract_strided_slice %335 {offsets = [0, 32], sizes = [8, 32], strides = [1, 1]} : vector<8x128xf32> to vector<8x32xf32>
    %338 = arith.mulf %337, %280 : vector<8x32xf32>
    %339 = vector.extract_strided_slice %335 {offsets = [0, 0], sizes = [8, 32], strides = [1, 1]} : vector<8x128xf32> to vector<8x32xf32>
    %340 = vector.extract_strided_slice %336 {offsets = [0, 64], sizes = [8, 32], strides = [1, 1]} : vector<8x128xf32> to vector<8x32xf32>
    %341 = arith.mulf %339, %340 : vector<8x32xf32>
    %342 = arith.addf %338, %341 : vector<8x32xf32>
    %343 = vector.extract_strided_slice %335 {offsets = [0, 96], sizes = [8, 32], strides = [1, 1]} : vector<8x128xf32> to vector<8x32xf32>
    %344 = math.tanh %342 : vector<8x32xf32>
    %345 = arith.mulf %343, %344 : vector<8x32xf32>
    %cst_64 = arith.constant dense<0.000000e+00> : vector<8x256xf32>
    %346 = tpu.matmul %345, %9, %cst_64 {dimension_numbers = #tpu.dot_dimension_numbers<[1], [0], [0], [1], [0, 0, 1, 1], [], []>} : vector<8x32xf32>, vector<32x256xf32>, vector<8x256xf32> -> vector<8x256xf32>
    %347 = vector.extract_strided_slice %346 {offsets = [0, 0], sizes = [8, 128], strides = [1, 1]} : vector<8x256xf32> to vector<8x128xf32>
    %348 = vector.extract_strided_slice %346 {offsets = [0, 128], sizes = [8, 128], strides = [1, 1]} : vector<8x256xf32> to vector<8x128xf32>
    %349 = arith.addf %348, %306 : vector<8x128xf32>
    %350 = vector.broadcast %13 : vector<1x128xf32> to vector<8x128xf32>
    %351 = arith.addf %349, %350 : vector<8x128xf32>
    %352 = arith.negf %351 : vector<8x128xf32>
    %353 = math.exp %352 : vector<8x128xf32>
    %cst_65 = arith.constant 1.000000e+00 : f32
    %354 = vector.broadcast %cst_65 : f32 to vector<8x128xf32>
    %355 = arith.addf %354, %353 : vector<8x128xf32>
    %356 = arith.divf %354, %355 : vector<8x128xf32>
    %357 = math.tanh %351 : vector<8x128xf32>
    %358 = vector.extract_strided_slice %356 {offsets = [0, 32], sizes = [8, 32], strides = [1, 1]} : vector<8x128xf32> to vector<8x32xf32>
    %359 = arith.mulf %358, %301 : vector<8x32xf32>
    %360 = vector.extract_strided_slice %356 {offsets = [0, 0], sizes = [8, 32], strides = [1, 1]} : vector<8x128xf32> to vector<8x32xf32>
    %361 = vector.extract_strided_slice %357 {offsets = [0, 64], sizes = [8, 32], strides = [1, 1]} : vector<8x128xf32> to vector<8x32xf32>
    %362 = arith.mulf %360, %361 : vector<8x32xf32>
    %363 = arith.addf %359, %362 : vector<8x32xf32>
    %364 = vector.extract_strided_slice %356 {offsets = [0, 96], sizes = [8, 32], strides = [1, 1]} : vector<8x128xf32> to vector<8x32xf32>
    %365 = math.tanh %363 : vector<8x32xf32>
    %366 = arith.mulf %364, %365 : vector<8x32xf32>
    %cst_66 = arith.constant dense<0.000000e+00> : vector<8x256xf32>
    %367 = tpu.matmul %366, %11, %cst_66 {dimension_numbers = #tpu.dot_dimension_numbers<[1], [0], [0], [1], [0, 0, 1, 1], [], []>} : vector<8x32xf32>, vector<32x256xf32>, vector<8x256xf32> -> vector<8x256xf32>
    %368 = vector.extract_strided_slice %367 {offsets = [0, 0], sizes = [8, 128], strides = [1, 1]} : vector<8x256xf32> to vector<8x128xf32>
    %369 = vector.extract_strided_slice %367 {offsets = [0, 128], sizes = [8, 128], strides = [1, 1]} : vector<8x256xf32> to vector<8x128xf32>
    %370 = arith.addf %369, %326 : vector<8x128xf32>
    %371 = vector.broadcast %14 : vector<1x128xf32> to vector<8x128xf32>
    %372 = arith.addf %370, %371 : vector<8x128xf32>
    %373 = arith.negf %372 : vector<8x128xf32>
    %374 = math.exp %373 : vector<8x128xf32>
    %cst_67 = arith.constant 1.000000e+00 : f32
    %375 = vector.broadcast %cst_67 : f32 to vector<8x128xf32>
    %376 = arith.addf %375, %374 : vector<8x128xf32>
    %377 = arith.divf %375, %376 : vector<8x128xf32>
    %378 = math.tanh %372 : vector<8x128xf32>
    %379 = vector.extract_strided_slice %377 {offsets = [0, 32], sizes = [8, 32], strides = [1, 1]} : vector<8x128xf32> to vector<8x32xf32>
    %380 = arith.mulf %379, %322 : vector<8x32xf32>
    %381 = vector.extract_strided_slice %377 {offsets = [0, 0], sizes = [8, 32], strides = [1, 1]} : vector<8x128xf32> to vector<8x32xf32>
    %382 = vector.extract_strided_slice %378 {offsets = [0, 64], sizes = [8, 32], strides = [1, 1]} : vector<8x128xf32> to vector<8x32xf32>
    %383 = arith.mulf %381, %382 : vector<8x32xf32>
    %384 = arith.addf %380, %383 : vector<8x32xf32>
    %385 = vector.extract_strided_slice %377 {offsets = [0, 96], sizes = [8, 32], strides = [1, 1]} : vector<8x128xf32> to vector<8x32xf32>
    %386 = math.tanh %384 : vector<8x32xf32>
    %387 = arith.mulf %385, %386 : vector<8x32xf32>
    %cst_68 = arith.constant dense<0.000000e+00> : vector<8x128xf32>
    %388 = tpu.matmul %387, %12, %cst_68 {dimension_numbers = #tpu.dot_dimension_numbers<[1], [0], [0], [1], [0, 0, 1, 1], [], []>} : vector<8x32xf32>, vector<32x128xf32>, vector<8x128xf32> -> vector<8x128xf32>
    %c6_i32 = arith.constant 6 : i32
    %389 = arith.index_cast %c6_i32 : i32 to index
    %c0_69 = arith.constant 0 : index
    %c0_70 = arith.constant 0 : index
    %390 = vector.load %arg11[%389, %c0_69, %c0_70] : memref<8x8x128xf32, #tpu.memory_space<vmem>>, vector<1x8x128xf32>
    %391 = vector.shape_cast %390 : vector<1x8x128xf32> to vector<8x128xf32>
    %392 = arith.addf %391, %347 : vector<8x128xf32>
    %393 = arith.negf %392 : vector<8x128xf32>
    %394 = math.exp %393 : vector<8x128xf32>
    %cst_71 = arith.constant 1.000000e+00 : f32
    %395 = vector.broadcast %cst_71 : f32 to vector<8x128xf32>
    %396 = arith.addf %395, %394 : vector<8x128xf32>
    %397 = arith.divf %395, %396 : vector<8x128xf32>
    %398 = math.tanh %392 : vector<8x128xf32>
    %399 = vector.extract_strided_slice %397 {offsets = [0, 32], sizes = [8, 32], strides = [1, 1]} : vector<8x128xf32> to vector<8x32xf32>
    %400 = arith.mulf %399, %342 : vector<8x32xf32>
    %401 = vector.extract_strided_slice %397 {offsets = [0, 0], sizes = [8, 32], strides = [1, 1]} : vector<8x128xf32> to vector<8x32xf32>
    %402 = vector.extract_strided_slice %398 {offsets = [0, 64], sizes = [8, 32], strides = [1, 1]} : vector<8x128xf32> to vector<8x32xf32>
    %403 = arith.mulf %401, %402 : vector<8x32xf32>
    %404 = arith.addf %400, %403 : vector<8x32xf32>
    %405 = vector.extract_strided_slice %397 {offsets = [0, 96], sizes = [8, 32], strides = [1, 1]} : vector<8x128xf32> to vector<8x32xf32>
    %406 = math.tanh %404 : vector<8x32xf32>
    %407 = arith.mulf %405, %406 : vector<8x32xf32>
    %cst_72 = arith.constant dense<0.000000e+00> : vector<8x256xf32>
    %408 = tpu.matmul %407, %9, %cst_72 {dimension_numbers = #tpu.dot_dimension_numbers<[1], [0], [0], [1], [0, 0, 1, 1], [], []>} : vector<8x32xf32>, vector<32x256xf32>, vector<8x256xf32> -> vector<8x256xf32>
    %409 = vector.extract_strided_slice %408 {offsets = [0, 0], sizes = [8, 128], strides = [1, 1]} : vector<8x256xf32> to vector<8x128xf32>
    %410 = vector.extract_strided_slice %408 {offsets = [0, 128], sizes = [8, 128], strides = [1, 1]} : vector<8x256xf32> to vector<8x128xf32>
    %411 = arith.addf %410, %368 : vector<8x128xf32>
    %412 = vector.broadcast %13 : vector<1x128xf32> to vector<8x128xf32>
    %413 = arith.addf %411, %412 : vector<8x128xf32>
    %414 = arith.negf %413 : vector<8x128xf32>
    %415 = math.exp %414 : vector<8x128xf32>
    %cst_73 = arith.constant 1.000000e+00 : f32
    %416 = vector.broadcast %cst_73 : f32 to vector<8x128xf32>
    %417 = arith.addf %416, %415 : vector<8x128xf32>
    %418 = arith.divf %416, %417 : vector<8x128xf32>
    %419 = math.tanh %413 : vector<8x128xf32>
    %420 = vector.extract_strided_slice %418 {offsets = [0, 32], sizes = [8, 32], strides = [1, 1]} : vector<8x128xf32> to vector<8x32xf32>
    %421 = arith.mulf %420, %363 : vector<8x32xf32>
    %422 = vector.extract_strided_slice %418 {offsets = [0, 0], sizes = [8, 32], strides = [1, 1]} : vector<8x128xf32> to vector<8x32xf32>
    %423 = vector.extract_strided_slice %419 {offsets = [0, 64], sizes = [8, 32], strides = [1, 1]} : vector<8x128xf32> to vector<8x32xf32>
    %424 = arith.mulf %422, %423 : vector<8x32xf32>
    %425 = arith.addf %421, %424 : vector<8x32xf32>
    %426 = vector.extract_strided_slice %418 {offsets = [0, 96], sizes = [8, 32], strides = [1, 1]} : vector<8x128xf32> to vector<8x32xf32>
    %427 = math.tanh %425 : vector<8x32xf32>
    %428 = arith.mulf %426, %427 : vector<8x32xf32>
    %cst_74 = arith.constant dense<0.000000e+00> : vector<8x256xf32>
    %429 = tpu.matmul %428, %11, %cst_74 {dimension_numbers = #tpu.dot_dimension_numbers<[1], [0], [0], [1], [0, 0, 1, 1], [], []>} : vector<8x32xf32>, vector<32x256xf32>, vector<8x256xf32> -> vector<8x256xf32>
    %430 = vector.extract_strided_slice %429 {offsets = [0, 0], sizes = [8, 128], strides = [1, 1]} : vector<8x256xf32> to vector<8x128xf32>
    %431 = vector.extract_strided_slice %429 {offsets = [0, 128], sizes = [8, 128], strides = [1, 1]} : vector<8x256xf32> to vector<8x128xf32>
    %432 = arith.addf %431, %388 : vector<8x128xf32>
    %433 = vector.broadcast %14 : vector<1x128xf32> to vector<8x128xf32>
    %434 = arith.addf %432, %433 : vector<8x128xf32>
    %435 = arith.negf %434 : vector<8x128xf32>
    %436 = math.exp %435 : vector<8x128xf32>
    %cst_75 = arith.constant 1.000000e+00 : f32
    %437 = vector.broadcast %cst_75 : f32 to vector<8x128xf32>
    %438 = arith.addf %437, %436 : vector<8x128xf32>
    %439 = arith.divf %437, %438 : vector<8x128xf32>
    %440 = math.tanh %434 : vector<8x128xf32>
    %441 = vector.extract_strided_slice %439 {offsets = [0, 32], sizes = [8, 32], strides = [1, 1]} : vector<8x128xf32> to vector<8x32xf32>
    %442 = arith.mulf %441, %384 : vector<8x32xf32>
    %443 = vector.extract_strided_slice %439 {offsets = [0, 0], sizes = [8, 32], strides = [1, 1]} : vector<8x128xf32> to vector<8x32xf32>
    %444 = vector.extract_strided_slice %440 {offsets = [0, 64], sizes = [8, 32], strides = [1, 1]} : vector<8x128xf32> to vector<8x32xf32>
    %445 = arith.mulf %443, %444 : vector<8x32xf32>
    %446 = arith.addf %442, %445 : vector<8x32xf32>
    %447 = vector.extract_strided_slice %439 {offsets = [0, 96], sizes = [8, 32], strides = [1, 1]} : vector<8x128xf32> to vector<8x32xf32>
    %448 = math.tanh %446 : vector<8x32xf32>
    %449 = arith.mulf %447, %448 : vector<8x32xf32>
    %cst_76 = arith.constant dense<0.000000e+00> : vector<8x128xf32>
    %450 = tpu.matmul %449, %12, %cst_76 {dimension_numbers = #tpu.dot_dimension_numbers<[1], [0], [0], [1], [0, 0, 1, 1], [], []>} : vector<8x32xf32>, vector<32x128xf32>, vector<8x128xf32> -> vector<8x128xf32>
    %c7_i32 = arith.constant 7 : i32
    %451 = arith.index_cast %c7_i32 : i32 to index
    %c0_77 = arith.constant 0 : index
    %c0_78 = arith.constant 0 : index
    %452 = vector.load %arg11[%451, %c0_77, %c0_78] : memref<8x8x128xf32, #tpu.memory_space<vmem>>, vector<1x8x128xf32>
    %453 = vector.shape_cast %452 : vector<1x8x128xf32> to vector<8x128xf32>
    %454 = arith.addf %453, %409 : vector<8x128xf32>
    %455 = arith.negf %454 : vector<8x128xf32>
    %456 = math.exp %455 : vector<8x128xf32>
    %cst_79 = arith.constant 1.000000e+00 : f32
    %457 = vector.broadcast %cst_79 : f32 to vector<8x128xf32>
    %458 = arith.addf %457, %456 : vector<8x128xf32>
    %459 = arith.divf %457, %458 : vector<8x128xf32>
    %460 = math.tanh %454 : vector<8x128xf32>
    %461 = vector.extract_strided_slice %459 {offsets = [0, 32], sizes = [8, 32], strides = [1, 1]} : vector<8x128xf32> to vector<8x32xf32>
    %462 = arith.mulf %461, %404 : vector<8x32xf32>
    %463 = vector.extract_strided_slice %459 {offsets = [0, 0], sizes = [8, 32], strides = [1, 1]} : vector<8x128xf32> to vector<8x32xf32>
    %464 = vector.extract_strided_slice %460 {offsets = [0, 64], sizes = [8, 32], strides = [1, 1]} : vector<8x128xf32> to vector<8x32xf32>
    %465 = arith.mulf %463, %464 : vector<8x32xf32>
    %466 = arith.addf %462, %465 : vector<8x32xf32>
    %467 = vector.extract_strided_slice %459 {offsets = [0, 96], sizes = [8, 32], strides = [1, 1]} : vector<8x128xf32> to vector<8x32xf32>
    %468 = math.tanh %466 : vector<8x32xf32>
    %469 = arith.mulf %467, %468 : vector<8x32xf32>
    %cst_80 = arith.constant dense<0.000000e+00> : vector<8x256xf32>
    %470 = tpu.matmul %469, %9, %cst_80 {dimension_numbers = #tpu.dot_dimension_numbers<[1], [0], [0], [1], [0, 0, 1, 1], [], []>} : vector<8x32xf32>, vector<32x256xf32>, vector<8x256xf32> -> vector<8x256xf32>
    %471 = vector.extract_strided_slice %470 {offsets = [0, 0], sizes = [8, 128], strides = [1, 1]} : vector<8x256xf32> to vector<8x128xf32>
    %472 = vector.extract_strided_slice %470 {offsets = [0, 128], sizes = [8, 128], strides = [1, 1]} : vector<8x256xf32> to vector<8x128xf32>
    %473 = arith.addf %472, %430 : vector<8x128xf32>
    %474 = vector.broadcast %13 : vector<1x128xf32> to vector<8x128xf32>
    %475 = arith.addf %473, %474 : vector<8x128xf32>
    %476 = arith.negf %475 : vector<8x128xf32>
    %477 = math.exp %476 : vector<8x128xf32>
    %cst_81 = arith.constant 1.000000e+00 : f32
    %478 = vector.broadcast %cst_81 : f32 to vector<8x128xf32>
    %479 = arith.addf %478, %477 : vector<8x128xf32>
    %480 = arith.divf %478, %479 : vector<8x128xf32>
    %481 = math.tanh %475 : vector<8x128xf32>
    %482 = vector.extract_strided_slice %480 {offsets = [0, 32], sizes = [8, 32], strides = [1, 1]} : vector<8x128xf32> to vector<8x32xf32>
    %483 = arith.mulf %482, %425 : vector<8x32xf32>
    %484 = vector.extract_strided_slice %480 {offsets = [0, 0], sizes = [8, 32], strides = [1, 1]} : vector<8x128xf32> to vector<8x32xf32>
    %485 = vector.extract_strided_slice %481 {offsets = [0, 64], sizes = [8, 32], strides = [1, 1]} : vector<8x128xf32> to vector<8x32xf32>
    %486 = arith.mulf %484, %485 : vector<8x32xf32>
    %487 = arith.addf %483, %486 : vector<8x32xf32>
    %488 = vector.extract_strided_slice %480 {offsets = [0, 96], sizes = [8, 32], strides = [1, 1]} : vector<8x128xf32> to vector<8x32xf32>
    %489 = math.tanh %487 : vector<8x32xf32>
    %490 = arith.mulf %488, %489 : vector<8x32xf32>
    %cst_82 = arith.constant dense<0.000000e+00> : vector<8x256xf32>
    %491 = tpu.matmul %490, %11, %cst_82 {dimension_numbers = #tpu.dot_dimension_numbers<[1], [0], [0], [1], [0, 0, 1, 1], [], []>} : vector<8x32xf32>, vector<32x256xf32>, vector<8x256xf32> -> vector<8x256xf32>
    %492 = vector.extract_strided_slice %491 {offsets = [0, 0], sizes = [8, 128], strides = [1, 1]} : vector<8x256xf32> to vector<8x128xf32>
    %493 = vector.extract_strided_slice %491 {offsets = [0, 128], sizes = [8, 128], strides = [1, 1]} : vector<8x256xf32> to vector<8x128xf32>
    %494 = arith.addf %493, %450 : vector<8x128xf32>
    %495 = vector.broadcast %14 : vector<1x128xf32> to vector<8x128xf32>
    %496 = arith.addf %494, %495 : vector<8x128xf32>
    %497 = arith.negf %496 : vector<8x128xf32>
    %498 = math.exp %497 : vector<8x128xf32>
    %cst_83 = arith.constant 1.000000e+00 : f32
    %499 = vector.broadcast %cst_83 : f32 to vector<8x128xf32>
    %500 = arith.addf %499, %498 : vector<8x128xf32>
    %501 = arith.divf %499, %500 : vector<8x128xf32>
    %502 = math.tanh %496 : vector<8x128xf32>
    %503 = vector.extract_strided_slice %501 {offsets = [0, 32], sizes = [8, 32], strides = [1, 1]} : vector<8x128xf32> to vector<8x32xf32>
    %504 = arith.mulf %503, %446 : vector<8x32xf32>
    %505 = vector.extract_strided_slice %501 {offsets = [0, 0], sizes = [8, 32], strides = [1, 1]} : vector<8x128xf32> to vector<8x32xf32>
    %506 = vector.extract_strided_slice %502 {offsets = [0, 64], sizes = [8, 32], strides = [1, 1]} : vector<8x128xf32> to vector<8x32xf32>
    %507 = arith.mulf %505, %506 : vector<8x32xf32>
    %508 = arith.addf %504, %507 : vector<8x32xf32>
    %509 = vector.extract_strided_slice %501 {offsets = [0, 96], sizes = [8, 32], strides = [1, 1]} : vector<8x128xf32> to vector<8x32xf32>
    %510 = math.tanh %508 : vector<8x32xf32>
    %511 = arith.mulf %509, %510 : vector<8x32xf32>
    %cst_84 = arith.constant dense<0.000000e+00> : vector<8x128xf32>
    %512 = tpu.matmul %511, %12, %cst_84 {dimension_numbers = #tpu.dot_dimension_numbers<[1], [0], [0], [1], [0, 0, 1, 1], [], []>} : vector<8x32xf32>, vector<32x128xf32>, vector<8x128xf32> -> vector<8x128xf32>
    %c8_i32 = arith.constant 8 : i32
    %c0_85 = arith.constant 0 : index
    %c0_86 = arith.constant 0 : index
    %513 = vector.load %arg6[%c0_85, %c0_86] : memref<32x128xf32, #tpu.memory_space<vmem>>, vector<32x128xf32>
    %cst_87 = arith.constant dense<0.000000e+00> : vector<8x128xf32>
    %514 = tpu.matmul %511, %513, %cst_87 {dimension_numbers = #tpu.dot_dimension_numbers<[1], [0], [0], [1], [0, 0, 1, 1], [], []>} : vector<8x32xf32>, vector<32x128xf32>, vector<8x128xf32> -> vector<8x128xf32>
    %c0_88 = arith.constant 0 : index
    %c0_89 = arith.constant 0 : index
    %515 = vector.load %arg7[%c0_88, %c0_89] : memref<1x128xf32, #tpu.memory_space<vmem>>, vector<1x128xf32>
    %516 = vector.broadcast %515 : vector<1x128xf32> to vector<8x128xf32>
    %517 = arith.addf %514, %516 : vector<8x128xf32>
    %cst_90 = arith.constant 0.000000e+00 : f32
    %518 = vector.broadcast %cst_90 : f32 to vector<8x128xf32>
    %519 = arith.maximumf %517, %518 : vector<8x128xf32>
    %c0_91 = arith.constant 0 : index
    %c0_92 = arith.constant 0 : index
    %520 = vector.load %arg8[%c0_91, %c0_92] : memref<128x128xf32, #tpu.memory_space<vmem>>, vector<128x128xf32>
    %cst_93 = arith.constant dense<0.000000e+00> : vector<8x128xf32>
    %521 = tpu.matmul %519, %520, %cst_93 {dimension_numbers = #tpu.dot_dimension_numbers<[1], [0], [0], [1], [0, 0, 1, 1], [], []>} : vector<8x128xf32>, vector<128x128xf32>, vector<8x128xf32> -> vector<8x128xf32>
    %c0_94 = arith.constant 0 : index
    %c0_95 = arith.constant 0 : index
    %522 = vector.load %arg9[%c0_94, %c0_95] : memref<1x128xf32, #tpu.memory_space<vmem>>, vector<1x128xf32>
    %523 = vector.broadcast %522 : vector<1x128xf32> to vector<8x128xf32>
    %524 = arith.addf %521, %523 : vector<8x128xf32>
    %c0_96 = arith.constant 0 : index
    %c0_97 = arith.constant 0 : index
    %525 = vector.load %arg10[%c0_96, %c0_97] : memref<8x128xf32, #tpu.memory_space<vmem>>, vector<8x128xf32>
    tpu.vector_store %arg10[%c0_96, %c0_97], %524 {strides = array<i32>} : memref<8x128xf32, #tpu.memory_space<vmem>>, vector<8x128xf32>,
    return
  }
}

</mosaic_0001>

<llo_original>
// kernel: tpu_custom_call.1
$region0: #{tpu_custom_call.1}
  #allocation0 [shape = 'u32[]', space=smem, size = 0x4, offset = 0x4, fixed_abs, tag = 'smem constant byte address 0x4 - core index']
  #allocation1 [shape = 'u32[144,128]{1,0:T(1,128)}', space=vmem, size = 0x12000, scoped, tag = 'internal scratch']
  #allocation2 [shape = 'f32[8,8,128]{2,1,0:T(8,128)}', space=vmem, size = 0x8000, scoped, tag = 'scratch operand']
  %s0 = inlined_call_operand.vmem [shape: f32[64,16], index: 0, kind: input, shape index: {}]
  %s1 = inlined_call_operand.vmem [shape: f32[16,128], index: 1, kind: input, shape index: {}]
  %s2 = inlined_call_operand.vmem [shape: f32[1,128], index: 2, kind: input, shape index: {}]
  %s3 = inlined_call_operand.hbm [shape: f32[2,32,256], index: 3, kind: input, shape index: {}]
  %s4 = inlined_call_operand.vmem [shape: f32[32,128], index: 4, kind: input, shape index: {}]
  %s5 = inlined_call_operand.vmem [shape: f32[2,128], index: 5, kind: input, shape index: {}]
  %s6 = inlined_call_operand.vmem [shape: f32[32,128], index: 6, kind: input, shape index: {}]
  %s7 = inlined_call_operand.vmem [shape: f32[1,128], index: 7, kind: input, shape index: {}]
  %s8 = inlined_call_operand.hbm [shape: f32[128,128], index: 8, kind: input, shape index: {}]
  %s9 = inlined_call_operand.vmem [shape: f32[1,128], index: 9, kind: input, shape index: {}]
  %s10 = inlined_call_operand.hbm [shape: f32[8,128], index: 10, kind: output, shape index: {}]
  %s11 = sld [smem:[#allocation0]]
  $region58: #{tpu_custom_call.1} parent=0
    _
  %s13 = ssub.s32 1, %s11
  %s14 = scalar_select 0, %s13, %s11
  $region1: #{tpu_custom_call.1} parent=0
    #allocation3 [shape = 'u8[65536]{0}', space=vmem, size = 0x10000, scoped, tag = 'input window, operand 3, single buffered']
    #allocation4 [shape = 's32[1]{0}', space=sflag, size = 0x4, scoped, tag = 'scoped memory for tpu_custom_call.1']
    #allocation5 [shape = 's32[1]{0}', space=sflag, size = 0x4, scoped, tag = 'scoped memory for tpu_custom_call.1']
    #allocation6 [shape = 'u8[65536]{0}', space=vmem, size = 0x10000, scoped, tag = 'input window, operand 8, single buffered']
    #allocation7 [shape = 's32[1]{0}', space=sflag, size = 0x4, scoped, tag = 'scoped memory for tpu_custom_call.1']
    #allocation8 [shape = 'u8[4096]{0}', space=vmem, size = 0x1000, scoped, tag = 'output window, operand 0, single buffered']
    %15 = vsyncpa [#allocation4], 0
    %16 = vsyncpa [#allocation7], 0
    %17 = vsyncpa [#allocation5], 0
    // Predicated region
    $region2: #{tpu_custom_call.1} parent=1 // pred_check
      _
    $region3: #{tpu_custom_call.1} parent=1 // pred_check_branch
      %19 = sbr.rel (0) target = $region5
    $region4: #{tpu_custom_call.1} parent=1 // pred_region
      _
    $region5: #{tpu_custom_call.1} parent=1 // pred_fallthru
      _
    // Predicated region
    $region6: #{tpu_custom_call.1} parent=1 // pred_check
      _
    $region7: #{tpu_custom_call.1} parent=1 // pred_check_branch
      %21 = sbr.rel (0) target = $region9
    $region8: #{tpu_custom_call.1} parent=1 // pred_region
      _
    $region9: #{tpu_custom_call.1} parent=1 // pred_fallthru
      _
    // Predicated region
    $region10: #{tpu_custom_call.1} parent=1 // pred_check
      _
    $region11: #{tpu_custom_call.1} parent=1 // pred_check_branch
      %23 = sbr.rel (0) target = $region13
    $region12: #{tpu_custom_call.1} parent=1 // pred_region
      _
    $region13: #{tpu_custom_call.1} parent=1 // pred_fallthru
      _
    // Predicated region
    $region14: #{tpu_custom_call.1} parent=1 // pred_check
      _
    $region15: #{tpu_custom_call.1} parent=1 // pred_check_branch
      %25 = sbr.rel (0) target = $region17
    $region16: #{tpu_custom_call.1} parent=1 // pred_region
      %s27 = ssub.s32 2048, 2048
      %28 = vsyncadd [#allocation4], %s27
      %s29 = sshll.u32 [#allocation3], 4
      %s30 = int_to_ptr.vmem [resolvable:$true] %s29
      %35 = dma.hbm_to_vmem [thread:$0]  %s3, 2048, %s30, [#allocation4], 256, 256, 16
    $region17: #{tpu_custom_call.1} parent=1 // pred_fallthru
      _
    // Predicated region
    $region18: #{tpu_custom_call.1} parent=1 // pred_check
      _
    $region19: #{tpu_custom_call.1} parent=1 // pred_check_branch
      %37 = sbr.rel (0) target = $region21
    $region20: #{tpu_custom_call.1} parent=1 // pred_region
      _
    $region21: #{tpu_custom_call.1} parent=1 // pred_fallthru
      _
    // Predicated region
    $region22: #{tpu_custom_call.1} parent=1 // pred_check
      _
    $region23: #{tpu_custom_call.1} parent=1 // pred_check_branch
      %39 = sbr.rel (0) target = $region25
    $region24: #{tpu_custom_call.1} parent=1 // pred_region
      _
    $region25: #{tpu_custom_call.1} parent=1 // pred_fallthru
      _
    // Predicated region
    $region26: #{tpu_custom_call.1} parent=1 // pred_check
      _
    $region27: #{tpu_custom_call.1} parent=1 // pred_check_branch
      %41 = sbr.rel (0) target = $region29
    $region28: #{tpu_custom_call.1} parent=1 // pred_region
      _
    $region29: #{tpu_custom_call.1} parent=1 // pred_fallthru
      _
    // Predicated region
    $region30: #{tpu_custom_call.1} parent=1 // pred_check
      _
    $region31: #{tpu_custom_call.1} parent=1 // pred_check_branch
      %43 = sbr.rel (0) target = $region33
    $region32: #{tpu_custom_call.1} parent=1 // pred_region
      _
    $region33: #{tpu_custom_call.1} parent=1 // pred_fallthru
      _
    // Predicated region
    $region34: #{tpu_custom_call.1} parent=1 // pred_check
      _
    $region35: #{tpu_custom_call.1} parent=1 // pred_check_branch
      %45 = sbr.rel (0) target = $region37
    $region36: #{tpu_custom_call.1} parent=1 // pred_region
      %s47 = ssub.s32 2048, 2048
      %48 = vsyncadd [#allocation7], %s47
      %s49 = sshll.u32 [#allocation6], 4
      %s50 = int_to_ptr.vmem [resolvable:$true] %s49
      %55 = dma.hbm_to_vmem [thread:$0]  %s8, 2048, %s50, [#allocation7], 128, 128, 8
    $region37: #{tpu_custom_call.1} parent=1 // pred_fallthru
      _
    // Predicated region
    $region38: #{tpu_custom_call.1} parent=1 // pred_check
      _
    $region39: #{tpu_custom_call.1} parent=1 // pred_check_branch
      %57 = sbr.rel (0) target = $region41
    $region40: #{tpu_custom_call.1} parent=1 // pred_region
      _
    $region41: #{tpu_custom_call.1} parent=1 // pred_fallthru
      _
    // Predicated region
    $region42: #{tpu_custom_call.1} parent=1 // pred_check
      _
    $region43: #{tpu_custom_call.1} parent=1 // pred_check_branch
      %59 = sbr.rel (0) target = $region45
    $region44: #{tpu_custom_call.1} parent=1 // pred_region
      %60 = dma.done [#allocation4], 2048
    $region45: #{tpu_custom_call.1} parent=1 // pred_fallthru
      _
    // Predicated region
    $region46: #{tpu_custom_call.1} parent=1 // pred_check
      _
    $region47: #{tpu_custom_call.1} parent=1 // pred_check_branch
      %62 = sbr.rel (0) target = $region49
    $region48: #{tpu_custom_call.1} parent=1 // pred_region
      %63 = dma.done [#allocation7], 2048
    $region49: #{tpu_custom_call.1} parent=1 // pred_fallthru
      _
    %v64 = vld [vmem:[%s0] sm:$0xff]
    %v65 = vld [vmem:[%s0 + $0x8] sm:$0xff]
    %v66 = vld [vmem:[%s0 + $0x10] sm:$0xff]
    %v67 = vld [vmem:[%s0 + $0x18] sm:$0xff]
    %v68 = vld [vmem:[%s0 + $0x20] sm:$0xff]
    %v69 = vld [vmem:[%s0 + $0x28] sm:$0xff]
    %v70 = vld [vmem:[%s0 + $0x30] sm:$0xff]
    %v71 = vld [vmem:[%s0 + $0x38] sm:$0xff]
    %v72 = vld [vmem:[%s1] sm:$0xff]
    %v73 = vld [vmem:[%s1 + $0x8] sm:$0xff]
    %v74 = vld [vmem:[%s2] sm:$0x1]
    %v76 = vlaneseq
    %v77 = vshrl.u32 %v76, 7
    %v78 = vsub.s32 0, %v77
    %v79 = vrot.slane %v74, %v78
    %vm81 = vcmask 130048
    %v83 = vsel %vm81, %v64, 0
    %v86 = vsel %vm81, %v65, 0
    %v89 = vsel %vm81, %v66, 0
    %v92 = vsel %vm81, %v67, 0
    %v95 = vsel %vm81, %v68, 0
    %v98 = vsel %vm81, %v69, 0
    %v101 = vsel %vm81, %v70, 0
    %v104 = vsel %vm81, %v71, 0
    %106 = vmatprep.subr.mxu0 0.0
    %107 = vmatpush1.msra.mxu0 %v72
    %108 = vmatprep.subr.mxu0 0.0
    %109 = vmatpush1.msra.mxu0 %v73
    %110 = vmatprep.subr.mxu0 0.0
    %111 = vmatpush1.msra.mxu0 0.0
    %112 = vmatprep.subr.mxu0 0.0
    %113 = vmatpush1.msra.mxu0 0.0
    %114 = vmatprep.subr.mxu0 0.0
    %115 = vmatpush1.msra.mxu0 0.0
    %116 = vmatprep.subr.mxu0 0.0
    %117 = vmatpush1.msra.mxu0 0.0
    %118 = vmatprep.subr.mxu0 0.0
    %119 = vmatpush1.msra.mxu0 0.0
    %120 = vmatprep.subr.mxu0 0.0
    %121 = vmatpush1.msra.mxu0 0.0
    %122 = vmatprep.subr.mxu0 0.0
    %123 = vmatpush1.msra.mxu0 0.0
    %124 = vmatprep.subr.mxu0 0.0
    %125 = vmatpush1.msra.mxu0 0.0
    %126 = vmatprep.subr.mxu0 0.0
    %127 = vmatpush1.msra.mxu0 0.0
    %128 = vmatprep.subr.mxu0 0.0
    %129 = vmatpush1.msra.mxu0 0.0
    %130 = vmatprep.subr.mxu0 0.0
    %131 = vmatpush1.msra.mxu0 0.0
    %132 = vmatprep.subr.mxu0 0.0
    %133 = vmatpush1.msra.mxu0 0.0
    %134 = vmatprep.subr.mxu0 0.0
    %135 = vmatpush1.msra.mxu0 0.0
    %136 = vmatprep.subr.mxu0 0.0
    %137 = vmatpush1.msra.mxu0 0.0
    %138 = vmatprep.subr.mxu0 0.0
    %139 = vmatpush1.msra.mxu0 0.0
    %140 = vmatprep.subr.mxu0 0.0
    %141 = vmatpush1.msra.mxu0 0.0
    %142 = vmatprep.subr.mxu0 0.0
    %143 = vmatpush1.msra.mxu0 0.0
    %144 = vmatprep.subr.mxu0 0.0
    %145 = vmatpush1.msra.mxu0 0.0
    %146 = vmatprep.subr.mxu0 0.0
    %147 = vmatpush1.msra.mxu0 0.0
    %148 = vmatprep.subr.mxu0 0.0
    %149 = vmatpush1.msra.mxu0 0.0
    %150 = vmatprep.subr.mxu0 0.0
    %151 = vmatpush1.msra.mxu0 0.0
    %152 = vmatprep.subr.mxu0 0.0
    %153 = vmatpush1.msra.mxu0 0.0
    %154 = vmatprep.subr.mxu0 0.0
    %155 = vmatpush1.msra.mxu0 0.0
    %156 = vmatprep.subr.mxu0 0.0
    %157 = vmatpush1.msra.mxu0 0.0
    %158 = vmatprep.subr.mxu0 0.0
    %159 = vmatpush1.msra.mxu0 0.0
    %160 = vmatprep.subr.mxu0 0.0
    %161 = vmatpush1.msra.mxu0 0.0
    %162 = vmatprep.subr.mxu0 0.0
    %163 = vmatpush1.msra.mxu0 0.0
    %164 = vmatprep.subr.mxu0 0.0
    %165 = vmatpush1.msra.mxu0 0.0
    %166 = vmatprep.subr.mxu0 0.0
    %167 = vmatpush1.msra.mxu0 0.0
    %168 = vmatprep.subr.mxu0 0.0
    %169 = vmatpush1.msra.mxu0 0.0
    %170 = vmatprep.mubr.f32.mxu0 0.0
    %171 = vmatmul.mubr.f32.gmra.mrb[0].mxu0 %v83
    %v172 = vpop.f32.mrb[0].mxu0
    %v173 = vadd.f32 %v79, %v172
    %v174 = vpop.f32.mrb[0].mxu0
    %175 = vmatprep.mubr.f32.mxu0 0.0
    %176 = vmatmul.mubr.f32.gmra.mrb[0].mxu0 %v86
    %v177 = vpop.f32.mrb[0].mxu0
    %v178 = vadd.f32 %v79, %v177
    %v179 = vpop.f32.mrb[0].mxu0
    %180 = vmatprep.mubr.f32.mxu0 0.0
    %181 = vmatmul.mubr.f32.gmra.mrb[0].mxu0 %v89
    %v182 = vpop.f32.mrb[0].mxu0
    %v183 = vadd.f32 %v79, %v182
    %v184 = vpop.f32.mrb[0].mxu0
    %185 = vmatprep.mubr.f32.mxu0 0.0
    %186 = vmatmul.mubr.f32.gmra.mrb[0].mxu0 %v92
    %v187 = vpop.f32.mrb[0].mxu0
    %v188 = vadd.f32 %v79, %v187
    %v189 = vpop.f32.mrb[0].mxu0
    %190 = vmatprep.mubr.f32.mxu0 0.0
    %191 = vmatmul.mubr.f32.gmra.mrb[0].mxu0 %v95
    %v192 = vpop.f32.mrb[0].mxu0
    %v193 = vadd.f32 %v79, %v192
    %v194 = vpop.f32.mrb[0].mxu0
    %195 = vmatprep.mubr.f32.mxu0 0.0
    %196 = vmatmul.mubr.f32.gmra.mrb[0].mxu0 %v98
    %v197 = vpop.f32.mrb[0].mxu0
    %v198 = vadd.f32 %v79, %v197
    %v199 = vpop.f32.mrb[0].mxu0
    %200 = vmatprep.mubr.f32.mxu0 0.0
    %201 = vmatmul.mubr.f32.gmra.mrb[0].mxu0 %v101
    %v202 = vpop.f32.mrb[0].mxu0
    %v203 = vadd.f32 %v79, %v202
    %v204 = vpop.f32.mrb[0].mxu0
    %205 = vmatprep.mubr.f32.mxu0 0.0
    %206 = vmatmul.mubr.f32.gmra.mrb[0].mxu0 %v104
    %v207 = vpop.f32.mrb[0].mxu0
    %v208 = vadd.f32 %v79, %v207
    %v209 = vpop.f32.mrb[0].mxu0
    %210 = vdwg.mxu0
    %211 = vst [vmem:[#allocation2] sm:$0xff] %v173
    %212 = vst [vmem:[#allocation2 + $0x8] sm:$0xff] %v178
    %213 = vst [vmem:[#allocation2 + $0x10] sm:$0xff] %v183
    %214 = vst [vmem:[#allocation2 + $0x18] sm:$0xff] %v188
    %215 = vst [vmem:[#allocation2 + $0x20] sm:$0xff] %v193
    %216 = vst [vmem:[#allocation2 + $0x28] sm:$0xff] %v198
    %217 = vst [vmem:[#allocation2 + $0x30] sm:$0xff] %v203
    %218 = vst [vmem:[#allocation2 + $0x38] sm:$0xff] %v208
    %v219 = vld [vmem:[#allocation3] sm:$0xff]
    %v220 = vld [vmem:[#allocation3 + $0x8] sm:$0xff]
    %v221 = vld [vmem:[#allocation3 + $0x10] sm:$0xff]
    %v222 = vld [vmem:[#allocation3 + $0x18] sm:$0xff]
    %v223 = vld [vmem:[#allocation3 + $0x20] sm:$0xff]
    %v224 = vld [vmem:[#allocation3 + $0x28] sm:$0xff]
    %v225 = vld [vmem:[#allocation3 + $0x30] sm:$0xff]
    %v226 = vld [vmem:[#allocation3 + $0x38] sm:$0xff]
    %s227 = scalar_lea.vmem [#allocation3], 64
    %v228 = vld [vmem:[%s227] sm:$0xff]
    %v229 = vld [vmem:[%s227 + $0x8] sm:$0xff]
    %v230 = vld [vmem:[%s227 + $0x10] sm:$0xff]
    %v231 = vld [vmem:[%s227 + $0x18] sm:$0xff]
    %v232 = vld [vmem:[%s227 + $0x20] sm:$0xff]
    %v233 = vld [vmem:[%s227 + $0x28] sm:$0xff]
    %v234 = vld [vmem:[%s227 + $0x30] sm:$0xff]
    %v235 = vld [vmem:[%s227 + $0x38] sm:$0xff]
    %v236 = vld [vmem:[%s4] sm:$0xff]
    %v237 = vld [vmem:[%s4 + $0x8] sm:$0xff]
    %v238 = vld [vmem:[%s4 + $0x10] sm:$0xff]
    %v239 = vld [vmem:[%s4 + $0x18] sm:$0xff]
    %v240 = vld [vmem:[%s5] sm:$0x1]
    %v241 = vld [vmem:[%s5 + $0x1] sm:$0x1]
    %v242 = vld [vmem:[#allocation2] sm:$0xff]
    %v243 = vadd.f32 %v242, 0.0
    %v244 = vxor.u32 %v243, 2147483648
    %v245 = vmul.f32 %v244, 1.442695
    %v246 = vpow.pop %v245
    %v247 = vadd.f32 %v246, 1.0
    %v248 = vrcp.pop %v247
    %v249 = vmul.f32 1.0, %v248
    %v250 = vtanh.pop %v243
    %v251 = vmul.f32 %v249, 0.0
    %253 = vrot.lane.b32.xlu0 %v250, 64
    %v254 = vpop.permute.xlu0 %253
    %v256 = vmul.f32 %v249, %v254
    %258 = vrot.lane.b32.xlu0 %v256, 32
    %v259 = vpop.permute.xlu0 %258
    %v261 = vadd.f32 %v251, %v259
    %v262 = vtanh.pop %v261
    %264 = vrot.lane.b32.xlu0 %v262, 64
    %v265 = vpop.permute.xlu0 %264
    %v267 = vmul.f32 %v249, %v265
    %269 = vrot.lane.b32.xlu0 %v267, 32
    %v270 = vpop.permute.xlu0 %269
    %vm271 = vcmask 261120
    %v272 = vsel %vm271, %v270, 0
    %274 = vmatprep.subr.mxu0 %v220
    %275 = vmatpush1.msra.mxu0 %v219
    %276 = vmatprep.subr.mxu0 %v222
    %277 = vmatpush1.msra.mxu0 %v221
    %278 = vmatprep.subr.mxu0 %v224
    %279 = vmatpush1.msra.mxu0 %v223
    %280 = vmatprep.subr.mxu0 %v226
    %281 = vmatpush1.msra.mxu0 %v225
    %282 = vmatprep.subr.mxu0 0.0
    %283 = vmatpush1.msra.mxu0 0.0
    %284 = vmatprep.subr.mxu0 0.0
    %285 = vmatpush1.msra.mxu0 0.0
    %286 = vmatprep.subr.mxu0 0.0
    %287 = vmatpush1.msra.mxu0 0.0
    %288 = vmatprep.subr.mxu0 0.0
    %289 = vmatpush1.msra.mxu0 0.0
    %290 = vmatprep.subr.mxu0 0.0
    %291 = vmatpush1.msra.mxu0 0.0
    %292 = vmatprep.subr.mxu0 0.0
    %293 = vmatpush1.msra.mxu0 0.0
    %294 = vmatprep.subr.mxu0 0.0
    %295 = vmatpush1.msra.mxu0 0.0
    %296 = vmatprep.subr.mxu0 0.0
    %297 = vmatpush1.msra.mxu0 0.0
    %298 = vmatprep.subr.mxu0 0.0
    %299 = vmatpush1.msra.mxu0 0.0
    %300 = vmatprep.subr.mxu0 0.0
    %301 = vmatpush1.msra.mxu0 0.0
    %302 = vmatprep.subr.mxu0 0.0
    %303 = vmatpush1.msra.mxu0 0.0
    %304 = vmatprep.subr.mxu0 0.0
    %305 = vmatpush1.msra.mxu0 0.0
    %306 = vmatprep.subr.mxu0 0.0
    %307 = vmatpush1.msra.mxu0 0.0
    %308 = vmatprep.subr.mxu0 0.0
    %309 = vmatpush1.msra.mxu0 0.0
    %310 = vmatprep.subr.mxu0 0.0
    %311 = vmatpush1.msra.mxu0 0.0
    %312 = vmatprep.subr.mxu0 0.0
    %313 = vmatpush1.msra.mxu0 0.0
    %314 = vmatprep.subr.mxu0 0.0
    %315 = vmatpush1.msra.mxu0 0.0
    %316 = vmatprep.subr.mxu0 0.0
    %317 = vmatpush1.msra.mxu0 0.0
    %318 = vmatprep.subr.mxu0 0.0
    %319 = vmatpush1.msra.mxu0 0.0
    %320 = vmatprep.subr.mxu0 0.0
    %321 = vmatpush1.msra.mxu0 0.0
    %322 = vmatprep.subr.mxu0 0.0
    %323 = vmatpush1.msra.mxu0 0.0
    %324 = vmatprep.subr.mxu0 0.0
    %325 = vmatpush1.msra.mxu0 0.0
    %326 = vmatprep.subr.mxu0 0.0
    %327 = vmatpush1.msra.mxu0 0.0
    %328 = vmatprep.subr.mxu0 0.0
    %329 = vmatpush1.msra.mxu0 0.0
    %330 = vmatprep.subr.mxu0 0.0
    %331 = vmatpush1.msra.mxu0 0.0
    %332 = vmatprep.subr.mxu0 0.0
    %333 = vmatpush1.msra.mxu0 0.0
    %334 = vmatprep.subr.mxu0 0.0
    %335 = vmatpush1.msra.mxu0 0.0
    %336 = vmatprep.subr.mxu0 0.0
    %337 = vmatpush1.msra.mxu0 0.0
    %338 = vmatprep.mubr.f32.mxu0 0.0
    %339 = vmatmul.mubr.f32.gmra.mrb[0].mxu0 %v272
    %v340 = vpop.f32.mrb[0].mxu0
    %v341 = vadd.f32 0.0, %v340
    %v342 = vpop.f32.mrb[0].mxu0
    %v343 = vadd.f32 0.0, %v342
    %344 = vdwg.mxu0
    %v345 = vadd.f32 %v343, 0.0
    %v346 = vlaneseq
    %v347 = vshrl.u32 %v346, 7
    %v348 = vsub.s32 0, %v347
    %v349 = vrot.slane %v240, %v348
    %v350 = vadd.f32 %v345, %v349
    %v351 = vxor.u32 %v350, 2147483648
    %v352 = vmul.f32 %v351, 1.442695
    %v353 = vpow.pop %v352
    %v354 = vadd.f32 %v353, 1.0
    %v355 = vrcp.pop %v354
    %v356 = vmul.f32 1.0, %v355
    %v357 = vtanh.pop %v350
    %v358 = vmul.f32 %v356, 0.0
    %360 = vrot.lane.b32.xlu0 %v357, 64
    %v361 = vpop.permute.xlu0 %360
    %v363 = vmul.f32 %v356, %v361
    %365 = vrot.lane.b32.xlu0 %v363, 32
    %v366 = vpop.permute.xlu0 %365
    %v368 = vadd.f32 %v358, %v366
    %v369 = vtanh.pop %v368
    %371 = vrot.lane.b32.xlu0 %v369, 64
    %v372 = vpop.permute.xlu0 %371
    %v374 = vmul.f32 %v356, %v372
    %376 = vrot.lane.b32.xlu0 %v374, 32
    %v377 = vpop.permute.xlu0 %376
    %v378 = vsel %vm271, %v377, 0
    %380 = vmatprep.subr.mxu0 %v229
    %381 = vmatpush1.msra.mxu0 %v228
    %382 = vmatprep.subr.mxu0 %v231
    %383 = vmatpush1.msra.mxu0 %v230
    %384 = vmatprep.subr.mxu0 %v233
    %385 = vmatpush1.msra.mxu0 %v232
    %386 = vmatprep.subr.mxu0 %v235
    %387 = vmatpush1.msra.mxu0 %v234
    %388 = vmatprep.subr.mxu0 0.0
    %389 = vmatpush1.msra.mxu0 0.0
    %390 = vmatprep.subr.mxu0 0.0
    %391 = vmatpush1.msra.mxu0 0.0
    %392 = vmatprep.subr.mxu0 0.0
    %393 = vmatpush1.msra.mxu0 0.0
    %394 = vmatprep.subr.mxu0 0.0
    %395 = vmatpush1.msra.mxu0 0.0
    %396 = vmatprep.subr.mxu0 0.0
    %397 = vmatpush1.msra.mxu0 0.0
    %398 = vmatprep.subr.mxu0 0.0
    %399 = vmatpush1.msra.mxu0 0.0
    %400 = vmatprep.subr.mxu0 0.0
    %401 = vmatpush1.msra.mxu0 0.0
    %402 = vmatprep.subr.mxu0 0.0
    %403 = vmatpush1.msra.mxu0 0.0
    %404 = vmatprep.subr.mxu0 0.0
    %405 = vmatpush1.msra.mxu0 0.0
    %406 = vmatprep.subr.mxu0 0.0
    %407 = vmatpush1.msra.mxu0 0.0
    %408 = vmatprep.subr.mxu0 0.0
    %409 = vmatpush1.msra.mxu0 0.0
    %410 = vmatprep.subr.mxu0 0.0
    %411 = vmatpush1.msra.mxu0 0.0
    %412 = vmatprep.subr.mxu0 0.0
    %413 = vmatpush1.msra.mxu0 0.0
    %414 = vmatprep.subr.mxu0 0.0
    %415 = vmatpush1.msra.mxu0 0.0
    %416 = vmatprep.subr.mxu0 0.0
    %417 = vmatpush1.msra.mxu0 0.0
    %418 = vmatprep.subr.mxu0 0.0
    %419 = vmatpush1.msra.mxu0 0.0
    %420 = vmatprep.subr.mxu0 0.0
    %421 = vmatpush1.msra.mxu0 0.0
    %422 = vmatprep.subr.mxu0 0.0
    %423 = vmatpush1.msra.mxu0 0.0
    %424 = vmatprep.subr.mxu0 0.0
    %425 = vmatpush1.msra.mxu0 0.0
    %426 = vmatprep.subr.mxu0 0.0
    %427 = vmatpush1.msra.mxu0 0.0
    %428 = vmatprep.subr.mxu0 0.0
    %429 = vmatpush1.msra.mxu0 0.0
    %430 = vmatprep.subr.mxu0 0.0
    %431 = vmatpush1.msra.mxu0 0.0
    %432 = vmatprep.subr.mxu0 0.0
    %433 = vmatpush1.msra.mxu0 0.0
    %434 = vmatprep.subr.mxu0 0.0
    %435 = vmatpush1.msra.mxu0 0.0
    %436 = vmatprep.subr.mxu0 0.0
    %437 = vmatpush1.msra.mxu0 0.0
    %438 = vmatprep.subr.mxu0 0.0
    %439 = vmatpush1.msra.mxu0 0.0
    %440 = vmatprep.subr.mxu0 0.0
    %441 = vmatpush1.msra.mxu0 0.0
    %442 = vmatprep.subr.mxu0 0.0
    %443 = vmatpush1.msra.mxu0 0.0
    %444 = vmatprep.mubr.f32.mxu0 0.0
    %445 = vmatmul.mubr.f32.gmra.mrb[0].mxu0 %v378
    %v446 = vpop.f32.mrb[0].mxu0
    %v447 = vadd.f32 0.0, %v446
    %v448 = vpop.f32.mrb[0].mxu0
    %v449 = vadd.f32 0.0, %v448
    %450 = vdwg.mxu0
    %v451 = vadd.f32 %v449, 0.0
    %v452 = vlaneseq
    %v453 = vshrl.u32 %v452, 7
    %v454 = vsub.s32 0, %v453
    %v455 = vrot.slane %v241, %v454
    %v456 = vadd.f32 %v451, %v455
    %v457 = vxor.u32 %v456, 2147483648
    %v458 = vmul.f32 %v457, 1.442695
    %v459 = vpow.pop %v458
    %v460 = vadd.f32 %v459, 1.0
    %v461 = vrcp.pop %v460
    %v462 = vmul.f32 1.0, %v461
    %v463 = vtanh.pop %v456
    %v464 = vmul.f32 %v462, 0.0
    %466 = vrot.lane.b32.xlu0 %v463, 64
    %v467 = vpop.permute.xlu0 %466
    %v469 = vmul.f32 %v462, %v467
    %471 = vrot.lane.b32.xlu0 %v469, 32
    %v472 = vpop.permute.xlu0 %471
    %v474 = vadd.f32 %v464, %v472
    %v475 = vtanh.pop %v474
    %477 = vrot.lane.b32.xlu0 %v475, 64
    %v478 = vpop.permute.xlu0 %477
    %v480 = vmul.f32 %v462, %v478
    %482 = vrot.lane.b32.xlu0 %v480, 32
    %v483 = vpop.permute.xlu0 %482
    %v484 = vsel %vm271, %v483, 0
    %486 = vmatprep.subr.mxu0 0.0
    %487 = vmatpush1.msra.mxu0 %v236
    %488 = vmatprep.subr.mxu0 0.0
    %489 = vmatpush1.msra.mxu0 %v237
    %490 = vmatprep.subr.mxu0 0.0
    %491 = vmatpush1.msra.mxu0 %v238
    %492 = vmatprep.subr.mxu0 0.0
    %493 = vmatpush1.msra.mxu0 %v239
    %494 = vmatprep.subr.mxu0 0.0
    %495 = vmatpush1.msra.mxu0 0.0
    %496 = vmatprep.subr.mxu0 0.0
    %497 = vmatpush1.msra.mxu0 0.0
    %498 = vmatprep.subr.mxu0 0.0
    %499 = vmatpush1.msra.mxu0 0.0
    %500 = vmatprep.subr.mxu0 0.0
    %501 = vmatpush1.msra.mxu0 0.0
    %502 = vmatprep.subr.mxu0 0.0
    %503 = vmatpush1.msra.mxu0 0.0
    %504 = vmatprep.subr.mxu0 0.0
    %505 = vmatpush1.msra.mxu0 0.0
    %506 = vmatprep.subr.mxu0 0.0
    %507 = vmatpush1.msra.mxu0 0.0
    %508 = vmatprep.subr.mxu0 0.0
    %509 = vmatpush1.msra.mxu0 0.0
    %510 = vmatprep.subr.mxu0 0.0
    %511 = vmatpush1.msra.mxu0 0.0
    %512 = vmatprep.subr.mxu0 0.0
    %513 = vmatpush1.msra.mxu0 0.0
    %514 = vmatprep.subr.mxu0 0.0
    %515 = vmatpush1.msra.mxu0 0.0
    %516 = vmatprep.subr.mxu0 0.0
    %517 = vmatpush1.msra.mxu0 0.0
    %518 = vmatprep.subr.mxu0 0.0
    %519 = vmatpush1.msra.mxu0 0.0
    %520 = vmatprep.subr.mxu0 0.0
    %521 = vmatpush1.msra.mxu0 0.0
    %522 = vmatprep.subr.mxu0 0.0
    %523 = vmatpush1.msra.mxu0 0.0
    %524 = vmatprep.subr.mxu0 0.0
    %525 = vmatpush1.msra.mxu0 0.0
    %526 = vmatprep.subr.mxu0 0.0
    %527 = vmatpush1.msra.mxu0 0.0
    %528 = vmatprep.subr.mxu0 0.0
    %529 = vmatpush1.msra.mxu0 0.0
    %530 = vmatprep.subr.mxu0 0.0
    %531 = vmatpush1.msra.mxu0 0.0
    %532 = vmatprep.subr.mxu0 0.0
    %533 = vmatpush1.msra.mxu0 0.0
    %534 = vmatprep.subr.mxu0 0.0
    %535 = vmatpush1.msra.mxu0 0.0
    %536 = vmatprep.subr.mxu0 0.0
    %537 = vmatpush1.msra.mxu0 0.0
    %538 = vmatprep.subr.mxu0 0.0
    %539 = vmatpush1.msra.mxu0 0.0
    %540 = vmatprep.subr.mxu0 0.0
    %541 = vmatpush1.msra.mxu0 0.0
    %542 = vmatprep.subr.mxu0 0.0
    %543 = vmatpush1.msra.mxu0 0.0
    %544 = vmatprep.subr.mxu0 0.0
    %545 = vmatpush1.msra.mxu0 0.0
    %546 = vmatprep.subr.mxu0 0.0
    %547 = vmatpush1.msra.mxu0 0.0
    %548 = vmatprep.subr.mxu0 0.0
    %549 = vmatpush1.msra.mxu0 0.0
    %550 = vmatprep.mubr.f32.mxu0 0.0
    %551 = vmatmul.mubr.f32.gmra.mrb[0].mxu0 %v484
    %v552 = vpop.f32.mrb[0].mxu0
    %v553 = vadd.f32 0.0, %v552
    %v554 = vpop.f32.mrb[0].mxu0
    %555 = vdwg.mxu0
    %s556 = scalar_lea.vmem [#allocation2], 8
    %v557 = vld [vmem:[%s556] sm:$0xff]
    %v558 = vadd.f32 %v557, %v341
    %v559 = vxor.u32 %v558, 2147483648
    %v560 = vmul.f32 %v559, 1.442695
    %v561 = vpow.pop %v560
    %v562 = vadd.f32 %v561, 1.0
    %v563 = vrcp.pop %v562
    %v564 = vmul.f32 1.0, %v563
    %v565 = vtanh.pop %v558
    %v566 = vmul.f32 %v564, %v261
    %568 = vrot.lane.b32.xlu0 %v565, 64
    %v569 = vpop.permute.xlu0 %568
    %v571 = vmul.f32 %v564, %v569
    %573 = vrot.lane.b32.xlu0 %v571, 32
    %v574 = vpop.permute.xlu0 %573
    %v576 = vadd.f32 %v566, %v574
    %v577 = vtanh.pop %v576
    %579 = vrot.lane.b32.xlu0 %v577, 64
    %v580 = vpop.permute.xlu0 %579
    %v582 = vmul.f32 %v564, %v580
    %584 = vrot.lane.b32.xlu0 %v582, 32
    %v585 = vpop.permute.xlu0 %584
    %v586 = vsel %vm271, %v585, 0
    %588 = vmatprep.subr.mxu0 %v220
    %589 = vmatpush1.msra.mxu0 %v219
    %590 = vmatprep.subr.mxu0 %v222
    %591 = vmatpush1.msra.mxu0 %v221
    %592 = vmatprep.subr.mxu0 %v224
    %593 = vmatpush1.msra.mxu0 %v223
    %594 = vmatprep.subr.mxu0 %v226
    %595 = vmatpush1.msra.mxu0 %v225
    %596 = vmatprep.subr.mxu0 0.0
    %597 = vmatpush1.msra.mxu0 0.0
    %598 = vmatprep.subr.mxu0 0.0
    %599 = vmatpush1.msra.mxu0 0.0
    %600 = vmatprep.subr.mxu0 0.0
    %601 = vmatpush1.msra.mxu0 0.0
    %602 = vmatprep.subr.mxu0 0.0
    %603 = vmatpush1.msra.mxu0 0.0
    %604 = vmatprep.subr.mxu0 0.0
    %605 = vmatpush1.msra.mxu0 0.0
    %606 = vmatprep.subr.mxu0 0.0
    %607 = vmatpush1.msra.mxu0 0.0
    %608 = vmatprep.subr.mxu0 0.0
    %609 = vmatpush1.msra.mxu0 0.0
    %610 = vmatprep.subr.mxu0 0.0
    %611 = vmatpush1.msra.mxu0 0.0
    %612 = vmatprep.subr.mxu0 0.0
    %613 = vmatpush1.msra.mxu0 0.0
    %614 = vmatprep.subr.mxu0 0.0
    %615 = vmatpush1.msra.mxu0 0.0
    %616 = vmatprep.subr.mxu0 0.0
    %617 = vmatpush1.msra.mxu0 0.0
    %618 = vmatprep.subr.mxu0 0.0
    %619 = vmatpush1.msra.mxu0 0.0
    %620 = vmatprep.subr.mxu0 0.0
    %621 = vmatpush1.msra.mxu0 0.0
    %622 = vmatprep.subr.mxu0 0.0
    %623 = vmatpush1.msra.mxu0 0.0
    %624 = vmatprep.subr.mxu0 0.0
    %625 = vmatpush1.msra.mxu0 0.0
    %626 = vmatprep.subr.mxu0 0.0
    %627 = vmatpush1.msra.mxu0 0.0
    %628 = vmatprep.subr.mxu0 0.0
    %629 = vmatpush1.msra.mxu0 0.0
    %630 = vmatprep.subr.mxu0 0.0
    %631 = vmatpush1.msra.mxu0 0.0
    %632 = vmatprep.subr.mxu0 0.0
    %633 = vmatpush1.msra.mxu0 0.0
    %634 = vmatprep.subr.mxu0 0.0
    %635 = vmatpush1.msra.mxu0 0.0
    %636 = vmatprep.subr.mxu0 0.0
    %637 = vmatpush1.msra.mxu0 0.0
    %638 = vmatprep.subr.mxu0 0.0
    %639 = vmatpush1.msra.mxu0 0.0
    %640 = vmatprep.subr.mxu0 0.0
    %641 = vmatpush1.msra.mxu0 0.0
    %642 = vmatprep.subr.mxu0 0.0
    %643 = vmatpush1.msra.mxu0 0.0
    %644 = vmatprep.subr.mxu0 0.0
    %645 = vmatpush1.msra.mxu0 0.0
    %646 = vmatprep.subr.mxu0 0.0
    %647 = vmatpush1.msra.mxu0 0.0
    %648 = vmatprep.subr.mxu0 0.0
    %649 = vmatpush1.msra.mxu0 0.0
    %650 = vmatprep.subr.mxu0 0.0
    %651 = vmatpush1.msra.mxu0 0.0
    %652 = vmatprep.mubr.f32.mxu0 0.0
    %653 = vmatmul.mubr.f32.gmra.mrb[0].mxu0 %v586
    %v654 = vpop.f32.mrb[0].mxu0
    %v655 = vadd.f32 0.0, %v654
    %v656 = vpop.f32.mrb[0].mxu0
    %v657 = vadd.f32 0.0, %v656
    %658 = vdwg.mxu0
    %v659 = vadd.f32 %v657, %v447
    %v660 = vadd.f32 %v659, %v349
    %v661 = vxor.u32 %v660, 2147483648
    %v662 = vmul.f32 %v661, 1.442695
    %v663 = vpow.pop %v662
    %v664 = vadd.f32 %v663, 1.0
    %v665 = vrcp.pop %v664
    %v666 = vmul.f32 1.0, %v665
    %v667 = vtanh.pop %v660
    %v668 = vmul.f32 %v666, %v368
    %670 = vrot.lane.b32.xlu0 %v667, 64
    %v671 = vpop.permute.xlu0 %670
    %v673 = vmul.f32 %v666, %v671
    %675 = vrot.lane.b32.xlu0 %v673, 32
    %v676 = vpop.permute.xlu0 %675
    %v678 = vadd.f32 %v668, %v676
    %v679 = vtanh.pop %v678
    %681 = vrot.lane.b32.xlu0 %v679, 64
    %v682 = vpop.permute.xlu0 %681
    %v684 = vmul.f32 %v666, %v682
    %686 = vrot.lane.b32.xlu0 %v684, 32
    %v687 = vpop.permute.xlu0 %686
    %v688 = vsel %vm271, %v687, 0
    %690 = vmatprep.subr.mxu0 %v229
    %691 = vmatpush1.msra.mxu0 %v228
    %692 = vmatprep.subr.mxu0 %v231
    %693 = vmatpush1.msra.mxu0 %v230
    %694 = vmatprep.subr.mxu0 %v233
    %695 = vmatpush1.msra.mxu0 %v232
    %696 = vmatprep.subr.mxu0 %v235
    %697 = vmatpush1.msra.mxu0 %v234
    %698 = vmatprep.subr.mxu0 0.0
    %699 = vmatpush1.msra.mxu0 0.0
    %700 = vmatprep.subr.mxu0 0.0
    %701 = vmatpush1.msra.mxu0 0.0
    %702 = vmatprep.subr.mxu0 0.0
    %703 = vmatpush1.msra.mxu0 0.0
    %704 = vmatprep.subr.mxu0 0.0
    %705 = vmatpush1.msra.mxu0 0.0
    %706 = vmatprep.subr.mxu0 0.0
    %707 = vmatpush1.msra.mxu0 0.0
    %708 = vmatprep.subr.mxu0 0.0
    %709 = vmatpush1.msra.mxu0 0.0
    %710 = vmatprep.subr.mxu0 0.0
    %711 = vmatpush1.msra.mxu0 0.0
    %712 = vmatprep.subr.mxu0 0.0
    %713 = vmatpush1.msra.mxu0 0.0
    %714 = vmatprep.subr.mxu0 0.0
    %715 = vmatpush1.msra.mxu0 0.0
    %716 = vmatprep.subr.mxu0 0.0
    %717 = vmatpush1.msra.mxu0 0.0
    %718 = vmatprep.subr.mxu0 0.0
    %719 = vmatpush1.msra.mxu0 0.0
    %720 = vmatprep.subr.mxu0 0.0
    %721 = vmatpush1.msra.mxu0 0.0
    %722 = vmatprep.subr.mxu0 0.0
    %723 = vmatpush1.msra.mxu0 0.0
    %724 = vmatprep.subr.mxu0 0.0
    %725 = vmatpush1.msra.mxu0 0.0
    %726 = vmatprep.subr.mxu0 0.0
    %727 = vmatpush1.msra.mxu0 0.0
    %728 = vmatprep.subr.mxu0 0.0
    %729 = vmatpush1.msra.mxu0 0.0
    %730 = vmatprep.subr.mxu0 0.0
    %731 = vmatpush1.msra.mxu0 0.0
    %732 = vmatprep.subr.mxu0 0.0
    %733 = vmatpush1.msra.mxu0 0.0
    %734 = vmatprep.subr.mxu0 0.0
    %735 = vmatpush1.msra.mxu0 0.0
    %736 = vmatprep.subr.mxu0 0.0
    %737 = vmatpush1.msra.mxu0 0.0
    %738 = vmatprep.subr.mxu0 0.0
    %739 = vmatpush1.msra.mxu0 0.0
    %740 = vmatprep.subr.mxu0 0.0
    %741 = vmatpush1.msra.mxu0 0.0
    %742 = vmatprep.subr.mxu0 0.0
    %743 = vmatpush1.msra.mxu0 0.0
    %744 = vmatprep.subr.mxu0 0.0
    %745 = vmatpush1.msra.mxu0 0.0
    %746 = vmatprep.subr.mxu0 0.0
    %747 = vmatpush1.msra.mxu0 0.0
    %748 = vmatprep.subr.mxu0 0.0
    %749 = vmatpush1.msra.mxu0 0.0
    %750 = vmatprep.subr.mxu0 0.0
    %751 = vmatpush1.msra.mxu0 0.0
    %752 = vmatprep.subr.mxu0 0.0
    %753 = vmatpush1.msra.mxu0 0.0
    %754 = vmatprep.mubr.f32.mxu0 0.0
    %755 = vmatmul.mubr.f32.gmra.mrb[0].mxu0 %v688
    %v756 = vpop.f32.mrb[0].mxu0
    %v757 = vadd.f32 0.0, %v756
    %v758 = vpop.f32.mrb[0].mxu0
    %v759 = vadd.f32 0.0, %v758
    %760 = vdwg.mxu0
    %v761 = vadd.f32 %v759, %v553
    %v762 = vadd.f32 %v761, %v455
    %v763 = vxor.u32 %v762, 2147483648
    %v764 = vmul.f32 %v763, 1.442695
    %v765 = vpow.pop %v764
    %v766 = vadd.f32 %v765, 1.0
    %v767 = vrcp.pop %v766
    %v768 = vmul.f32 1.0, %v767
    %v769 = vtanh.pop %v762
    %v770 = vmul.f32 %v768, %v474
    %772 = vrot.lane.b32.xlu0 %v769, 64
    %v773 = vpop.permute.xlu0 %772
    %v775 = vmul.f32 %v768, %v773
    %777 = vrot.lane.b32.xlu0 %v775, 32
    %v778 = vpop.permute.xlu0 %777
    %v780 = vadd.f32 %v770, %v778
    %v781 = vtanh.pop %v780
    %783 = vrot.lane.b32.xlu0 %v781, 64
    %v784 = vpop.permute.xlu0 %783
    %v786 = vmul.f32 %v768, %v784
    %788 = vrot.lane.b32.xlu0 %v786, 32
    %v789 = vpop.permute.xlu0 %788
    %v790 = vsel %vm271, %v789, 0
    %792 = vmatprep.subr.mxu0 0.0
    %793 = vmatpush1.msra.mxu0 %v236
    %794 = vmatprep.subr.mxu0 0.0
    %795 = vmatpush1.msra.mxu0 %v237
    %796 = vmatprep.subr.mxu0 0.0
    %797 = vmatpush1.msra.mxu0 %v238
    %798 = vmatprep.subr.mxu0 0.0
    %799 = vmatpush1.msra.mxu0 %v239
    %800 = vmatprep.subr.mxu0 0.0
    %801 = vmatpush1.msra.mxu0 0.0
    %802 = vmatprep.subr.mxu0 0.0
    %803 = vmatpush1.msra.mxu0 0.0
    %804 = vmatprep.subr.mxu0 0.0
    %805 = vmatpush1.msra.mxu0 0.0
    %806 = vmatprep.subr.mxu0 0.0
    %807 = vmatpush1.msra.mxu0 0.0
    %808 = vmatprep.subr.mxu0 0.0
    %809 = vmatpush1.msra.mxu0 0.0
    %810 = vmatprep.subr.mxu0 0.0
    %811 = vmatpush1.msra.mxu0 0.0
    %812 = vmatprep.subr.mxu0 0.0
    %813 = vmatpush1.msra.mxu0 0.0
    %814 = vmatprep.subr.mxu0 0.0
    %815 = vmatpush1.msra.mxu0 0.0
    %816 = vmatprep.subr.mxu0 0.0
    %817 = vmatpush1.msra.mxu0 0.0
    %818 = vmatprep.subr.mxu0 0.0
    %819 = vmatpush1.msra.mxu0 0.0
    %820 = vmatprep.subr.mxu0 0.0
    %821 = vmatpush1.msra.mxu0 0.0
    %822 = vmatprep.subr.mxu0 0.0
    %823 = vmatpush1.msra.mxu0 0.0
    %824 = vmatprep.subr.mxu0 0.0
    %825 = vmatpush1.msra.mxu0 0.0
    %826 = vmatprep.subr.mxu0 0.0
    %827 = vmatpush1.msra.mxu0 0.0
    %828 = vmatprep.subr.mxu0 0.0
    %829 = vmatpush1.msra.mxu0 0.0
    %830 = vmatprep.subr.mxu0 0.0
    %831 = vmatpush1.msra.mxu0 0.0
    %832 = vmatprep.subr.mxu0 0.0
    %833 = vmatpush1.msra.mxu0 0.0
    %834 = vmatprep.subr.mxu0 0.0
    %835 = vmatpush1.msra.mxu0 0.0
    %836 = vmatprep.subr.mxu0 0.0
    %837 = vmatpush1.msra.mxu0 0.0
    %838 = vmatprep.subr.mxu0 0.0
    %839 = vmatpush1.msra.mxu0 0.0
    %840 = vmatprep.subr.mxu0 0.0
    %841 = vmatpush1.msra.mxu0 0.0
    %842 = vmatprep.subr.mxu0 0.0
    %843 = vmatpush1.msra.mxu0 0.0
    %844 = vmatprep.subr.mxu0 0.0
    %845 = vmatpush1.msra.mxu0 0.0
    %846 = vmatprep.subr.mxu0 0.0
    %847 = vmatpush1.msra.mxu0 0.0
    %848 = vmatprep.subr.mxu0 0.0
    %849 = vmatpush1.msra.mxu0 0.0
    %850 = vmatprep.subr.mxu0 0.0
    %851 = vmatpush1.msra.mxu0 0.0
    %852 = vmatprep.subr.mxu0 0.0
    %853 = vmatpush1.msra.mxu0 0.0
    %854 = vmatprep.subr.mxu0 0.0
    %855 = vmatpush1.msra.mxu0 0.0
    %856 = vmatprep.mubr.f32.mxu0 0.0
    %857 = vmatmul.mubr.f32.gmra.mrb[0].mxu0 %v790
    %v858 = vpop.f32.mrb[0].mxu0
    %v859 = vadd.f32 0.0, %v858
    %v860 = vpop.f32.mrb[0].mxu0
    %861 = vdwg.mxu0
    %s862 = scalar_lea.vmem [#allocation2], 16
    %v863 = vld [vmem:[%s862] sm:$0xff]
    %v864 = vadd.f32 %v863, %v655
    %v865 = vxor.u32 %v864, 2147483648
    %v866 = vmul.f32 %v865, 1.442695
    %v867 = vpow.pop %v866
    %v868 = vadd.f32 %v867, 1.0
    %v869 = vrcp.pop %v868
    %v870 = vmul.f32 1.0, %v869
    %v871 = vtanh.pop %v864
    %v872 = vmul.f32 %v870, %v576
    %874 = vrot.lane.b32.xlu0 %v871, 64
    %v875 = vpop.permute.xlu0 %874
    %v877 = vmul.f32 %v870, %v875
    %879 = vrot.lane.b32.xlu0 %v877, 32
    %v880 = vpop.permute.xlu0 %879
    %v882 = vadd.f32 %v872, %v880
    %v883 = vtanh.pop %v882
    %885 = vrot.lane.b32.xlu0 %v883, 64
    %v886 = vpop.permute.xlu0 %885
    %v888 = vmul.f32 %v870, %v886
    %890 = vrot.lane.b32.xlu0 %v888, 32
    %v891 = vpop.permute.xlu0 %890
    %v892 = vsel %vm271, %v891, 0
    %894 = vmatprep.subr.mxu0 %v220
    %895 = vmatpush1.msra.mxu0 %v219
    %896 = vmatprep.subr.mxu0 %v222
    %897 = vmatpush1.msra.mxu0 %v221
    %898 = vmatprep.subr.mxu0 %v224
    %899 = vmatpush1.msra.mxu0 %v223
    %900 = vmatprep.subr.mxu0 %v226
    %901 = vmatpush1.msra.mxu0 %v225
    %902 = vmatprep.subr.mxu0 0.0
    %903 = vmatpush1.msra.mxu0 0.0
    %904 = vmatprep.subr.mxu0 0.0
    %905 = vmatpush1.msra.mxu0 0.0
    %906 = vmatprep.subr.mxu0 0.0
    %907 = vmatpush1.msra.mxu0 0.0
    %908 = vmatprep.subr.mxu0 0.0
    %909 = vmatpush1.msra.mxu0 0.0
    %910 = vmatprep.subr.mxu0 0.0
    %911 = vmatpush1.msra.mxu0 0.0
    %912 = vmatprep.subr.mxu0 0.0
    %913 = vmatpush1.msra.mxu0 0.0
    %914 = vmatprep.subr.mxu0 0.0
    %915 = vmatpush1.msra.mxu0 0.0
    %916 = vmatprep.subr.mxu0 0.0
    %917 = vmatpush1.msra.mxu0 0.0
    %918 = vmatprep.subr.mxu0 0.0
    %919 = vmatpush1.msra.mxu0 0.0
    %920 = vmatprep.subr.mxu0 0.0
    %921 = vmatpush1.msra.mxu0 0.0
    %922 = vmatprep.subr.mxu0 0.0
    %923 = vmatpush1.msra.mxu0 0.0
    %924 = vmatprep.subr.mxu0 0.0
    %925 = vmatpush1.msra.mxu0 0.0
    %926 = vmatprep.subr.mxu0 0.0
    %927 = vmatpush1.msra.mxu0 0.0
    %928 = vmatprep.subr.mxu0 0.0
    %929 = vmatpush1.msra.mxu0 0.0
    %930 = vmatprep.subr.mxu0 0.0
    %931 = vmatpush1.msra.mxu0 0.0
    %932 = vmatprep.subr.mxu0 0.0
    %933 = vmatpush1.msra.mxu0 0.0
    %934 = vmatprep.subr.mxu0 0.0
    %935 = vmatpush1.msra.mxu0 0.0
    %936 = vmatprep.subr.mxu0 0.0
    %937 = vmatpush1.msra.mxu0 0.0
    %938 = vmatprep.subr.mxu0 0.0
    %939 = vmatpush1.msra.mxu0 0.0
    %940 = vmatprep.subr.mxu0 0.0
    %941 = vmatpush1.msra.mxu0 0.0
    %942 = vmatprep.subr.mxu0 0.0
    %943 = vmatpush1.msra.mxu0 0.0
    %944 = vmatprep.subr.mxu0 0.0
    %945 = vmatpush1.msra.mxu0 0.0
    %946 = vmatprep.subr.mxu0 0.0
    %947 = vmatpush1.msra.mxu0 0.0
    %948 = vmatprep.subr.mxu0 0.0
    %949 = vmatpush1.msra.mxu0 0.0
    %950 = vmatprep.subr.mxu0 0.0
    %951 = vmatpush1.msra.mxu0 0.0
    %952 = vmatprep.subr.mxu0 0.0
    %953 = vmatpush1.msra.mxu0 0.0
    %954 = vmatprep.subr.mxu0 0.0
    %955 = vmatpush1.msra.mxu0 0.0
    %956 = vmatprep.subr.mxu0 0.0
    %957 = vmatpush1.msra.mxu0 0.0
    %958 = vmatprep.mubr.f32.mxu0 0.0
    %959 = vmatmul.mubr.f32.gmra.mrb[0].mxu0 %v892
    %v960 = vpop.f32.mrb[0].mxu0
    %v961 = vadd.f32 0.0, %v960
    %v962 = vpop.f32.mrb[0].mxu0
    %v963 = vadd.f32 0.0, %v962
    %964 = vdwg.mxu0
    %v965 = vadd.f32 %v963, %v757
    %v966 = vadd.f32 %v965, %v349
    %v967 = vxor.u32 %v966, 2147483648
    %v968 = vmul.f32 %v967, 1.442695
    %v969 = vpow.pop %v968
    %v970 = vadd.f32 %v969, 1.0
    %v971 = vrcp.pop %v970
    %v972 = vmul.f32 1.0, %v971
    %v973 = vtanh.pop %v966
    %v974 = vmul.f32 %v972, %v678
    %976 = vrot.lane.b32.xlu0 %v973, 64
    %v977 = vpop.permute.xlu0 %976
    %v979 = vmul.f32 %v972, %v977
    %981 = vrot.lane.b32.xlu0 %v979, 32
    %v982 = vpop.permute.xlu0 %981
    %v984 = vadd.f32 %v974, %v982
    %v985 = vtanh.pop %v984
    %987 = vrot.lane.b32.xlu0 %v985, 64
    %v988 = vpop.permute.xlu0 %987
    %v990 = vmul.f32 %v972, %v988
    %992 = vrot.lane.b32.xlu0 %v990, 32
    %v993 = vpop.permute.xlu0 %992
    %v994 = vsel %vm271, %v993, 0
    %996 = vmatprep.subr.mxu0 %v229
    %997 = vmatpush1.msra.mxu0 %v228
    %998 = vmatprep.subr.mxu0 %v231
    %999 = vmatpush1.msra.mxu0 %v230
    %1000 = vmatprep.subr.mxu0 %v233
    %1001 = vmatpush1.msra.mxu0 %v232
    %1002 = vmatprep.subr.mxu0 %v235
    %1003 = vmatpush1.msra.mxu0 %v234
    %1004 = vmatprep.subr.mxu0 0.0
    %1005 = vmatpush1.msra.mxu0 0.0
    %1006 = vmatprep.subr.mxu0 0.0
    %1007 = vmatpush1.msra.mxu0 0.0
    %1008 = vmatprep.subr.mxu0 0.0
    %1009 = vmatpush1.msra.mxu0 0.0
    %1010 = vmatprep.subr.mxu0 0.0
    %1011 = vmatpush1.msra.mxu0 0.0
    %1012 = vmatprep.subr.mxu0 0.0
    %1013 = vmatpush1.msra.mxu0 0.0
    %1014 = vmatprep.subr.mxu0 0.0
    %1015 = vmatpush1.msra.mxu0 0.0
    %1016 = vmatprep.subr.mxu0 0.0
    %1017 = vmatpush1.msra.mxu0 0.0
    %1018 = vmatprep.subr.mxu0 0.0
    %1019 = vmatpush1.msra.mxu0 0.0
    %1020 = vmatprep.subr.mxu0 0.0
    %1021 = vmatpush1.msra.mxu0 0.0
    %1022 = vmatprep.subr.mxu0 0.0
    %1023 = vmatpush1.msra.mxu0 0.0
    %1024 = vmatprep.subr.mxu0 0.0
    %1025 = vmatpush1.msra.mxu0 0.0
    %1026 = vmatprep.subr.mxu0 0.0
    %1027 = vmatpush1.msra.mxu0 0.0
    %1028 = vmatprep.subr.mxu0 0.0
    %1029 = vmatpush1.msra.mxu0 0.0
    %1030 = vmatprep.subr.mxu0 0.0
    %1031 = vmatpush1.msra.mxu0 0.0
    %1032 = vmatprep.subr.mxu0 0.0
    %1033 = vmatpush1.msra.mxu0 0.0
    %1034 = vmatprep.subr.mxu0 0.0
    %1035 = vmatpush1.msra.mxu0 0.0
    %1036 = vmatprep.subr.mxu0 0.0
    %1037 = vmatpush1.msra.mxu0 0.0
    %1038 = vmatprep.subr.mxu0 0.0
    %1039 = vmatpush1.msra.mxu0 0.0
    %1040 = vmatprep.subr.mxu0 0.0
    %1041 = vmatpush1.msra.mxu0 0.0
    %1042 = vmatprep.subr.mxu0 0.0
    %1043 = vmatpush1.msra.mxu0 0.0
    %1044 = vmatprep.subr.mxu0 0.0
    %1045 = vmatpush1.msra.mxu0 0.0
    %1046 = vmatprep.subr.mxu0 0.0
    %1047 = vmatpush1.msra.mxu0 0.0
    %1048 = vmatprep.subr.mxu0 0.0
    %1049 = vmatpush1.msra.mxu0 0.0
    %1050 = vmatprep.subr.mxu0 0.0
    %1051 = vmatpush1.msra.mxu0 0.0
    %1052 = vmatprep.subr.mxu0 0.0
    %1053 = vmatpush1.msra.mxu0 0.0
    %1054 = vmatprep.subr.mxu0 0.0
    %1055 = vmatpush1.msra.mxu0 0.0
    %1056 = vmatprep.subr.mxu0 0.0
    %1057 = vmatpush1.msra.mxu0 0.0
    %1058 = vmatprep.subr.mxu0 0.0
    %1059 = vmatpush1.msra.mxu0 0.0
    %1060 = vmatprep.mubr.f32.mxu0 0.0
    %1061 = vmatmul.mubr.f32.gmra.mrb[0].mxu0 %v994
    %v1062 = vpop.f32.mrb[0].mxu0
    %v1063 = vadd.f32 0.0, %v1062
    %v1064 = vpop.f32.mrb[0].mxu0
    %v1065 = vadd.f32 0.0, %v1064
    %1066 = vdwg.mxu0
    %v1067 = vadd.f32 %v1065, %v859
    %v1068 = vadd.f32 %v1067, %v455
    %v1069 = vxor.u32 %v1068, 2147483648
    %v1070 = vmul.f32 %v1069, 1.442695
    %v1071 = vpow.pop %v1070
    %v1072 = vadd.f32 %v1071, 1.0
    %v1073 = vrcp.pop %v1072
    %v1074 = vmul.f32 1.0, %v1073
    %v1075 = vtanh.pop %v1068
    %v1076 = vmul.f32 %v1074, %v780
    %1078 = vrot.lane.b32.xlu0 %v1075, 64
    %v1079 = vpop.permute.xlu0 %1078
    %v1081 = vmul.f32 %v1074, %v1079
    %1083 = vrot.lane.b32.xlu0 %v1081, 32
    %v1084 = vpop.permute.xlu0 %1083
    %v1086 = vadd.f32 %v1076, %v1084
    %v1087 = vtanh.pop %v1086
    %1089 = vrot.lane.b32.xlu0 %v1087, 64
    %v1090 = vpop.permute.xlu0 %1089
    %v1092 = vmul.f32 %v1074, %v1090
    %1094 = vrot.lane.b32.xlu0 %v1092, 32
    %v1095 = vpop.permute.xlu0 %1094
    %v1096 = vsel %vm271, %v1095, 0
    %1098 = vmatprep.subr.mxu0 0.0
    %1099 = vmatpush1.msra.mxu0 %v236
    %1100 = vmatprep.subr.mxu0 0.0
    %1101 = vmatpush1.msra.mxu0 %v237
    %1102 = vmatprep.subr.mxu0 0.0
    %1103 = vmatpush1.msra.mxu0 %v238
    %1104 = vmatprep.subr.mxu0 0.0
    %1105 = vmatpush1.msra.mxu0 %v239
    %1106 = vmatprep.subr.mxu0 0.0
    %1107 = vmatpush1.msra.mxu0 0.0
    %1108 = vmatprep.subr.mxu0 0.0
    %1109 = vmatpush1.msra.mxu0 0.0
    %1110 = vmatprep.subr.mxu0 0.0
    %1111 = vmatpush1.msra.mxu0 0.0
    %1112 = vmatprep.subr.mxu0 0.0
    %1113 = vmatpush1.msra.mxu0 0.0
    %1114 = vmatprep.subr.mxu0 0.0
    %1115 = vmatpush1.msra.mxu0 0.0
    %1116 = vmatprep.subr.mxu0 0.0
    %1117 = vmatpush1.msra.mxu0 0.0
    %1118 = vmatprep.subr.mxu0 0.0
    %1119 = vmatpush1.msra.mxu0 0.0
    %1120 = vmatprep.subr.mxu0 0.0
    %1121 = vmatpush1.msra.mxu0 0.0
    %1122 = vmatprep.subr.mxu0 0.0
    %1123 = vmatpush1.msra.mxu0 0.0
    %1124 = vmatprep.subr.mxu0 0.0
    %1125 = vmatpush1.msra.mxu0 0.0
    %1126 = vmatprep.subr.mxu0 0.0
    %1127 = vmatpush1.msra.mxu0 0.0
    %1128 = vmatprep.subr.mxu0 0.0
    %1129 = vmatpush1.msra.mxu0 0.0
    %1130 = vmatprep.subr.mxu0 0.0
    %1131 = vmatpush1.msra.mxu0 0.0
    %1132 = vmatprep.subr.mxu0 0.0
    %1133 = vmatpush1.msra.mxu0 0.0
    %1134 = vmatprep.subr.mxu0 0.0
    %1135 = vmatpush1.msra.mxu0 0.0
    %1136 = vmatprep.subr.mxu0 0.0
    %1137 = vmatpush1.msra.mxu0 0.0
    %1138 = vmatprep.subr.mxu0 0.0
    %1139 = vmatpush1.msra.mxu0 0.0
    %1140 = vmatprep.subr.mxu0 0.0
    %1141 = vmatpush1.msra.mxu0 0.0
    %1142 = vmatprep.subr.mxu0 0.0
    %1143 = vmatpush1.msra.mxu0 0.0
    %1144 = vmatprep.subr.mxu0 0.0
    %1145 = vmatpush1.msra.mxu0 0.0
    %1146 = vmatprep.subr.mxu0 0.0
    %1147 = vmatpush1.msra.mxu0 0.0
    %1148 = vmatprep.subr.mxu0 0.0
    %1149 = vmatpush1.msra.mxu0 0.0
    %1150 = vmatprep.subr.mxu0 0.0
    %1151 = vmatpush1.msra.mxu0 0.0
    %1152 = vmatprep.subr.mxu0 0.0
    %1153 = vmatpush1.msra.mxu0 0.0
    %1154 = vmatprep.subr.mxu0 0.0
    %1155 = vmatpush1.msra.mxu0 0.0
    %1156 = vmatprep.subr.mxu0 0.0
    %1157 = vmatpush1.msra.mxu0 0.0
    %1158 = vmatprep.subr.mxu0 0.0
    %1159 = vmatpush1.msra.mxu0 0.0
    %1160 = vmatprep.subr.mxu0 0.0
    %1161 = vmatpush1.msra.mxu0 0.0
    %1162 = vmatprep.mubr.f32.mxu0 0.0
    %1163 = vmatmul.mubr.f32.gmra.mrb[0].mxu0 %v1096
    %v1164 = vpop.f32.mrb[0].mxu0
    %v1165 = vadd.f32 0.0, %v1164
    %v1166 = vpop.f32.mrb[0].mxu0
    %1167 = vdwg.mxu0
    %s1168 = scalar_lea.vmem [#allocation2], 24
    %v1169 = vld [vmem:[%s1168] sm:$0xff]
    %v1170 = vadd.f32 %v1169, %v961
    %v1171 = vxor.u32 %v1170, 2147483648
    %v1172 = vmul.f32 %v1171, 1.442695
    %v1173 = vpow.pop %v1172
    %v1174 = vadd.f32 %v1173, 1.0
    %v1175 = vrcp.pop %v1174
    %v1176 = vmul.f32 1.0, %v1175
    %v1177 = vtanh.pop %v1170
    %v1178 = vmul.f32 %v1176, %v882
    %1180 = vrot.lane.b32.xlu0 %v1177, 64
    %v1181 = vpop.permute.xlu0 %1180
    %v1183 = vmul.f32 %v1176, %v1181
    %1185 = vrot.lane.b32.xlu0 %v1183, 32
    %v1186 = vpop.permute.xlu0 %1185
    %v1188 = vadd.f32 %v1178, %v1186
    %v1189 = vtanh.pop %v1188
    %1191 = vrot.lane.b32.xlu0 %v1189, 64
    %v1192 = vpop.permute.xlu0 %1191
    %v1194 = vmul.f32 %v1176, %v1192
    %1196 = vrot.lane.b32.xlu0 %v1194, 32
    %v1197 = vpop.permute.xlu0 %1196
    %v1198 = vsel %vm271, %v1197, 0
    %1200 = vmatprep.subr.mxu0 %v220
    %1201 = vmatpush1.msra.mxu0 %v219
    %1202 = vmatprep.subr.mxu0 %v222
    %1203 = vmatpush1.msra.mxu0 %v221
    %1204 = vmatprep.subr.mxu0 %v224
    %1205 = vmatpush1.msra.mxu0 %v223
    %1206 = vmatprep.subr.mxu0 %v226
    %1207 = vmatpush1.msra.mxu0 %v225
    %1208 = vmatprep.subr.mxu0 0.0
    %1209 = vmatpush1.msra.mxu0 0.0
    %1210 = vmatprep.subr.mxu0 0.0
    %1211 = vmatpush1.msra.mxu0 0.0
    %1212 = vmatprep.subr.mxu0 0.0
    %1213 = vmatpush1.msra.mxu0 0.0
    %1214 = vmatprep.subr.mxu0 0.0
    %1215 = vmatpush1.msra.mxu0 0.0
    %1216 = vmatprep.subr.mxu0 0.0
    %1217 = vmatpush1.msra.mxu0 0.0
    %1218 = vmatprep.subr.mxu0 0.0
    %1219 = vmatpush1.msra.mxu0 0.0
    %1220 = vmatprep.subr.mxu0 0.0
    %1221 = vmatpush1.msra.mxu0 0.0
    %1222 = vmatprep.subr.mxu0 0.0
    %1223 = vmatpush1.msra.mxu0 0.0
    %1224 = vmatprep.subr.mxu0 0.0
    %1225 = vmatpush1.msra.mxu0 0.0
    %1226 = vmatprep.subr.mxu0 0.0
    %1227 = vmatpush1.msra.mxu0 0.0
    %1228 = vmatprep.subr.mxu0 0.0
    %1229 = vmatpush1.msra.mxu0 0.0
    %1230 = vmatprep.subr.mxu0 0.0
    %1231 = vmatpush1.msra.mxu0 0.0
    %1232 = vmatprep.subr.mxu0 0.0
    %1233 = vmatpush1.msra.mxu0 0.0
    %1234 = vmatprep.subr.mxu0 0.0
    %1235 = vmatpush1.msra.mxu0 0.0
    %1236 = vmatprep.subr.mxu0 0.0
    %1237 = vmatpush1.msra.mxu0 0.0
    %1238 = vmatprep.subr.mxu0 0.0
    %1239 = vmatpush1.msra.mxu0 0.0
    %1240 = vmatprep.subr.mxu0 0.0
    %1241 = vmatpush1.msra.mxu0 0.0
    %1242 = vmatprep.subr.mxu0 0.0
    %1243 = vmatpush1.msra.mxu0 0.0
    %1244 = vmatprep.subr.mxu0 0.0
    %1245 = vmatpush1.msra.mxu0 0.0
    %1246 = vmatprep.subr.mxu0 0.0
    %1247 = vmatpush1.msra.mxu0 0.0
    %1248 = vmatprep.subr.mxu0 0.0
    %1249 = vmatpush1.msra.mxu0 0.0
    %1250 = vmatprep.subr.mxu0 0.0
    %1251 = vmatpush1.msra.mxu0 0.0
    %1252 = vmatprep.subr.mxu0 0.0
    %1253 = vmatpush1.msra.mxu0 0.0
    %1254 = vmatprep.subr.mxu0 0.0
    %1255 = vmatpush1.msra.mxu0 0.0
    %1256 = vmatprep.subr.mxu0 0.0
    %1257 = vmatpush1.msra.mxu0 0.0
    %1258 = vmatprep.subr.mxu0 0.0
    %1259 = vmatpush1.msra.mxu0 0.0
    %1260 = vmatprep.subr.mxu0 0.0
    %1261 = vmatpush1.msra.mxu0 0.0
    %1262 = vmatprep.subr.mxu0 0.0
    %1263 = vmatpush1.msra.mxu0 0.0
    %1264 = vmatprep.mubr.f32.mxu0 0.0
    %1265 = vmatmul.mubr.f32.gmra.mrb[0].mxu0 %v1198
    %v1266 = vpop.f32.mrb[0].mxu0
    %v1267 = vadd.f32 0.0, %v1266
    %v1268 = vpop.f32.mrb[0].mxu0
    %v1269 = vadd.f32 0.0, %v1268
    %1270 = vdwg.mxu0
    %v1271 = vadd.f32 %v1269, %v1063
    %v1272 = vadd.f32 %v1271, %v349
    %v1273 = vxor.u32 %v1272, 2147483648
    %v1274 = vmul.f32 %v1273, 1.442695
    %v1275 = vpow.pop %v1274
    %v1276 = vadd.f32 %v1275, 1.0
    %v1277 = vrcp.pop %v1276
    %v1278 = vmul.f32 1.0, %v1277
    %v1279 = vtanh.pop %v1272
    %v1280 = vmul.f32 %v1278, %v984
    %1282 = vrot.lane.b32.xlu0 %v1279, 64
    %v1283 = vpop.permute.xlu0 %1282
    %v1285 = vmul.f32 %v1278, %v1283
    %1287 = vrot.lane.b32.xlu0 %v1285, 32
    %v1288 = vpop.permute.xlu0 %1287
    %v1290 = vadd.f32 %v1280, %v1288
    %v1291 = vtanh.pop %v1290
    %1293 = vrot.lane.b32.xlu0 %v1291, 64
    %v1294 = vpop.permute.xlu0 %1293
    %v1296 = vmul.f32 %v1278, %v1294
    %1298 = vrot.lane.b32.xlu0 %v1296, 32
    %v1299 = vpop.permute.xlu0 %1298
    %v1300 = vsel %vm271, %v1299, 0
    %1302 = vmatprep.subr.mxu0 %v229
    %1303 = vmatpush1.msra.mxu0 %v228
    %1304 = vmatprep.subr.mxu0 %v231
    %1305 = vmatpush1.msra.mxu0 %v230
    %1306 = vmatprep.subr.mxu0 %v233
    %1307 = vmatpush1.msra.mxu0 %v232
    %1308 = vmatprep.subr.mxu0 %v235
    %1309 = vmatpush1.msra.mxu0 %v234
    %1310 = vmatprep.subr.mxu0 0.0
    %1311 = vmatpush1.msra.mxu0 0.0
    %1312 = vmatprep.subr.mxu0 0.0
    %1313 = vmatpush1.msra.mxu0 0.0
    %1314 = vmatprep.subr.mxu0 0.0
    %1315 = vmatpush1.msra.mxu0 0.0
    %1316 = vmatprep.subr.mxu0 0.0
    %1317 = vmatpush1.msra.mxu0 0.0
    %1318 = vmatprep.subr.mxu0 0.0
    %1319 = vmatpush1.msra.mxu0 0.0
    %1320 = vmatprep.subr.mxu0 0.0
    %1321 = vmatpush1.msra.mxu0 0.0
    %1322 = vmatprep.subr.mxu0 0.0
    %1323 = vmatpush1.msra.mxu0 0.0
    %1324 = vmatprep.subr.mxu0 0.0
    %1325 = vmatpush1.msra.mxu0 0.0
    %1326 = vmatprep.subr.mxu0 0.0
    %1327 = vmatpush1.msra.mxu0 0.0
    %1328 = vmatprep.subr.mxu0 0.0
    %1329 = vmatpush1.msra.mxu0 0.0
    %1330 = vmatprep.subr.mxu0 0.0
    %1331 = vmatpush1.msra.mxu0 0.0
    %1332 = vmatprep.subr.mxu0 0.0
    %1333 = vmatpush1.msra.mxu0 0.0
    %1334 = vmatprep.subr.mxu0 0.0
    %1335 = vmatpush1.msra.mxu0 0.0
    %1336 = vmatprep.subr.mxu0 0.0
    %1337 = vmatpush1.msra.mxu0 0.0
    %1338 = vmatprep.subr.mxu0 0.0
    %1339 = vmatpush1.msra.mxu0 0.0
    %1340 = vmatprep.subr.mxu0 0.0
    %1341 = vmatpush1.msra.mxu0 0.0
    %1342 = vmatprep.subr.mxu0 0.0
    %1343 = vmatpush1.msra.mxu0 0.0
    %1344 = vmatprep.subr.mxu0 0.0
    %1345 = vmatpush1.msra.mxu0 0.0
    %1346 = vmatprep.subr.mxu0 0.0
    %1347 = vmatpush1.msra.mxu0 0.0
    %1348 = vmatprep.subr.mxu0 0.0
    %1349 = vmatpush1.msra.mxu0 0.0
    %1350 = vmatprep.subr.mxu0 0.0
    %1351 = vmatpush1.msra.mxu0 0.0
    %1352 = vmatprep.subr.mxu0 0.0
    %1353 = vmatpush1.msra.mxu0 0.0
    %1354 = vmatprep.subr.mxu0 0.0
    %1355 = vmatpush1.msra.mxu0 0.0
    %1356 = vmatprep.subr.mxu0 0.0
    %1357 = vmatpush1.msra.mxu0 0.0
    %1358 = vmatprep.subr.mxu0 0.0
    %1359 = vmatpush1.msra.mxu0 0.0
    %1360 = vmatprep.subr.mxu0 0.0
    %1361 = vmatpush1.msra.mxu0 0.0
    %1362 = vmatprep.subr.mxu0 0.0
    %1363 = vmatpush1.msra.mxu0 0.0
    %1364 = vmatprep.subr.mxu0 0.0
    %1365 = vmatpush1.msra.mxu0 0.0
    %1366 = vmatprep.mubr.f32.mxu0 0.0
    %1367 = vmatmul.mubr.f32.gmra.mrb[0].mxu0 %v1300
    %v1368 = vpop.f32.mrb[0].mxu0
    %v1369 = vadd.f32 0.0, %v1368
    %v1370 = vpop.f32.mrb[0].mxu0
    %v1371 = vadd.f32 0.0, %v1370
    %1372 = vdwg.mxu0
    %v1373 = vadd.f32 %v1371, %v1165
    %v1374 = vadd.f32 %v1373, %v455
    %v1375 = vxor.u32 %v1374, 2147483648
    %v1376 = vmul.f32 %v1375, 1.442695
    %v1377 = vpow.pop %v1376
    %v1378 = vadd.f32 %v1377, 1.0
    %v1379 = vrcp.pop %v1378
    %v1380 = vmul.f32 1.0, %v1379
    %v1381 = vtanh.pop %v1374
    %v1382 = vmul.f32 %v1380, %v1086
    %1384 = vrot.lane.b32.xlu0 %v1381, 64
    %v1385 = vpop.permute.xlu0 %1384
    %v1387 = vmul.f32 %v1380, %v1385
    %1389 = vrot.lane.b32.xlu0 %v1387, 32
    %v1390 = vpop.permute.xlu0 %1389
    %v1392 = vadd.f32 %v1382, %v1390
    %v1393 = vtanh.pop %v1392
    %1395 = vrot.lane.b32.xlu0 %v1393, 64
    %v1396 = vpop.permute.xlu0 %1395
    %v1398 = vmul.f32 %v1380, %v1396
    %1400 = vrot.lane.b32.xlu0 %v1398, 32
    %v1401 = vpop.permute.xlu0 %1400
    %v1402 = vsel %vm271, %v1401, 0
    %1404 = vmatprep.subr.mxu0 0.0
    %1405 = vmatpush1.msra.mxu0 %v236
    %1406 = vmatprep.subr.mxu0 0.0
    %1407 = vmatpush1.msra.mxu0 %v237
    %1408 = vmatprep.subr.mxu0 0.0
    %1409 = vmatpush1.msra.mxu0 %v238
    %1410 = vmatprep.subr.mxu0 0.0
    %1411 = vmatpush1.msra.mxu0 %v239
    %1412 = vmatprep.subr.mxu0 0.0
    %1413 = vmatpush1.msra.mxu0 0.0
    %1414 = vmatprep.subr.mxu0 0.0
    %1415 = vmatpush1.msra.mxu0 0.0
    %1416 = vmatprep.subr.mxu0 0.0
    %1417 = vmatpush1.msra.mxu0 0.0
    %1418 = vmatprep.subr.mxu0 0.0
    %1419 = vmatpush1.msra.mxu0 0.0
    %1420 = vmatprep.subr.mxu0 0.0
    %1421 = vmatpush1.msra.mxu0 0.0
    %1422 = vmatprep.subr.mxu0 0.0
    %1423 = vmatpush1.msra.mxu0 0.0
    %1424 = vmatprep.subr.mxu0 0.0
    %1425 = vmatpush1.msra.mxu0 0.0
    %1426 = vmatprep.subr.mxu0 0.0
    %1427 = vmatpush1.msra.mxu0 0.0
    %1428 = vmatprep.subr.mxu0 0.0
    %1429 = vmatpush1.msra.mxu0 0.0
    %1430 = vmatprep.subr.mxu0 0.0
    %1431 = vmatpush1.msra.mxu0 0.0
    %1432 = vmatprep.subr.mxu0 0.0
    %1433 = vmatpush1.msra.mxu0 0.0
    %1434 = vmatprep.subr.mxu0 0.0
    %1435 = vmatpush1.msra.mxu0 0.0
    %1436 = vmatprep.subr.mxu0 0.0
    %1437 = vmatpush1.msra.mxu0 0.0
    %1438 = vmatprep.subr.mxu0 0.0
    %1439 = vmatpush1.msra.mxu0 0.0
    %1440 = vmatprep.subr.mxu0 0.0
    %1441 = vmatpush1.msra.mxu0 0.0
    %1442 = vmatprep.subr.mxu0 0.0
    %1443 = vmatpush1.msra.mxu0 0.0
    %1444 = vmatprep.subr.mxu0 0.0
    %1445 = vmatpush1.msra.mxu0 0.0
    %1446 = vmatprep.subr.mxu0 0.0
    %1447 = vmatpush1.msra.mxu0 0.0
    %1448 = vmatprep.subr.mxu0 0.0
    %1449 = vmatpush1.msra.mxu0 0.0
    %1450 = vmatprep.subr.mxu0 0.0
    %1451 = vmatpush1.msra.mxu0 0.0
    %1452 = vmatprep.subr.mxu0 0.0
    %1453 = vmatpush1.msra.mxu0 0.0
    %1454 = vmatprep.subr.mxu0 0.0
    %1455 = vmatpush1.msra.mxu0 0.0
    %1456 = vmatprep.subr.mxu0 0.0
    %1457 = vmatpush1.msra.mxu0 0.0
    %1458 = vmatprep.subr.mxu0 0.0
    %1459 = vmatpush1.msra.mxu0 0.0
    %1460 = vmatprep.subr.mxu0 0.0
    %1461 = vmatpush1.msra.mxu0 0.0
    %1462 = vmatprep.subr.mxu0 0.0
    %1463 = vmatpush1.msra.mxu0 0.0
    %1464 = vmatprep.subr.mxu0 0.0
    %1465 = vmatpush1.msra.mxu0 0.0
    %1466 = vmatprep.subr.mxu0 0.0
    %1467 = vmatpush1.msra.mxu0 0.0
    %1468 = vmatprep.mubr.f32.mxu0 0.0
    %1469 = vmatmul.mubr.f32.gmra.mrb[0].mxu0 %v1402
    %v1470 = vpop.f32.mrb[0].mxu0
    %v1471 = vadd.f32 0.0, %v1470
    %v1472 = vpop.f32.mrb[0].mxu0
    %1473 = vdwg.mxu0
    %s1474 = scalar_lea.vmem [#allocation2], 32
    %v1475 = vld [vmem:[%s1474] sm:$0xff]
    %v1476 = vadd.f32 %v1475, %v1267
    %v1477 = vxor.u32 %v1476, 2147483648
    %v1478 = vmul.f32 %v1477, 1.442695
    %v1479 = vpow.pop %v1478
    %v1480 = vadd.f32 %v1479, 1.0
    %v1481 = vrcp.pop %v1480
    %v1482 = vmul.f32 1.0, %v1481
    %v1483 = vtanh.pop %v1476
    %v1484 = vmul.f32 %v1482, %v1188
    %1486 = vrot.lane.b32.xlu0 %v1483, 64
    %v1487 = vpop.permute.xlu0 %1486
    %v1489 = vmul.f32 %v1482, %v1487
    %1491 = vrot.lane.b32.xlu0 %v1489, 32
    %v1492 = vpop.permute.xlu0 %1491
    %v1494 = vadd.f32 %v1484, %v1492
    %v1495 = vtanh.pop %v1494
    %1497 = vrot.lane.b32.xlu0 %v1495, 64
    %v1498 = vpop.permute.xlu0 %1497
    %v1500 = vmul.f32 %v1482, %v1498
    %1502 = vrot.lane.b32.xlu0 %v1500, 32
    %v1503 = vpop.permute.xlu0 %1502
    %v1504 = vsel %vm271, %v1503, 0
    %1506 = vmatprep.subr.mxu0 %v220
    %1507 = vmatpush1.msra.mxu0 %v219
    %1508 = vmatprep.subr.mxu0 %v222
    %1509 = vmatpush1.msra.mxu0 %v221
    %1510 = vmatprep.subr.mxu0 %v224
    %1511 = vmatpush1.msra.mxu0 %v223
    %1512 = vmatprep.subr.mxu0 %v226
    %1513 = vmatpush1.msra.mxu0 %v225
    %1514 = vmatprep.subr.mxu0 0.0
    %1515 = vmatpush1.msra.mxu0 0.0
    %1516 = vmatprep.subr.mxu0 0.0
    %1517 = vmatpush1.msra.mxu0 0.0
    %1518 = vmatprep.subr.mxu0 0.0
    %1519 = vmatpush1.msra.mxu0 0.0
    %1520 = vmatprep.subr.mxu0 0.0
    %1521 = vmatpush1.msra.mxu0 0.0
    %1522 = vmatprep.subr.mxu0 0.0
    %1523 = vmatpush1.msra.mxu0 0.0
    %1524 = vmatprep.subr.mxu0 0.0
    %1525 = vmatpush1.msra.mxu0 0.0
    %1526 = vmatprep.subr.mxu0 0.0
    %1527 = vmatpush1.msra.mxu0 0.0
    %1528 = vmatprep.subr.mxu0 0.0
    %1529 = vmatpush1.msra.mxu0 0.0
    %1530 = vmatprep.subr.mxu0 0.0
    %1531 = vmatpush1.msra.mxu0 0.0
    %1532 = vmatprep.subr.mxu0 0.0
    %1533 = vmatpush1.msra.mxu0 0.0
    %1534 = vmatprep.subr.mxu0 0.0
    %1535 = vmatpush1.msra.mxu0 0.0
    %1536 = vmatprep.subr.mxu0 0.0
    %1537 = vmatpush1.msra.mxu0 0.0
    %1538 = vmatprep.subr.mxu0 0.0
    %1539 = vmatpush1.msra.mxu0 0.0
    %1540 = vmatprep.subr.mxu0 0.0
    %1541 = vmatpush1.msra.mxu0 0.0
    %1542 = vmatprep.subr.mxu0 0.0
    %1543 = vmatpush1.msra.mxu0 0.0
    %1544 = vmatprep.subr.mxu0 0.0
    %1545 = vmatpush1.msra.mxu0 0.0
    %1546 = vmatprep.subr.mxu0 0.0
    %1547 = vmatpush1.msra.mxu0 0.0
    %1548 = vmatprep.subr.mxu0 0.0
    %1549 = vmatpush1.msra.mxu0 0.0
    %1550 = vmatprep.subr.mxu0 0.0
    %1551 = vmatpush1.msra.mxu0 0.0
    %1552 = vmatprep.subr.mxu0 0.0
    %1553 = vmatpush1.msra.mxu0 0.0
    %1554 = vmatprep.subr.mxu0 0.0
    %1555 = vmatpush1.msra.mxu0 0.0
    %1556 = vmatprep.subr.mxu0 0.0
    %1557 = vmatpush1.msra.mxu0 0.0
    %1558 = vmatprep.subr.mxu0 0.0
    %1559 = vmatpush1.msra.mxu0 0.0
    %1560 = vmatprep.subr.mxu0 0.0
    %1561 = vmatpush1.msra.mxu0 0.0
    %1562 = vmatprep.subr.mxu0 0.0
    %1563 = vmatpush1.msra.mxu0 0.0
    %1564 = vmatprep.subr.mxu0 0.0
    %1565 = vmatpush1.msra.mxu0 0.0
    %1566 = vmatprep.subr.mxu0 0.0
    %1567 = vmatpush1.msra.mxu0 0.0
    %1568 = vmatprep.subr.mxu0 0.0
    %1569 = vmatpush1.msra.mxu0 0.0
    %1570 = vmatprep.mubr.f32.mxu0 0.0
    %1571 = vmatmul.mubr.f32.gmra.mrb[0].mxu0 %v1504
    %v1572 = vpop.f32.mrb[0].mxu0
    %v1573 = vadd.f32 0.0, %v1572
    %v1574 = vpop.f32.mrb[0].mxu0
    %v1575 = vadd.f32 0.0, %v1574
    %1576 = vdwg.mxu0
    %v1577 = vadd.f32 %v1575, %v1369
    %v1578 = vadd.f32 %v1577, %v349
    %v1579 = vxor.u32 %v1578, 2147483648
    %v1580 = vmul.f32 %v1579, 1.442695
    %v1581 = vpow.pop %v1580
    %v1582 = vadd.f32 %v1581, 1.0
    %v1583 = vrcp.pop %v1582
    %v1584 = vmul.f32 1.0, %v1583
    %v1585 = vtanh.pop %v1578
    %v1586 = vmul.f32 %v1584, %v1290
    %1588 = vrot.lane.b32.xlu0 %v1585, 64
    %v1589 = vpop.permute.xlu0 %1588
    %v1591 = vmul.f32 %v1584, %v1589
    %1593 = vrot.lane.b32.xlu0 %v1591, 32
    %v1594 = vpop.permute.xlu0 %1593
    %v1596 = vadd.f32 %v1586, %v1594
    %v1597 = vtanh.pop %v1596
    %1599 = vrot.lane.b32.xlu0 %v1597, 64
    %v1600 = vpop.permute.xlu0 %1599
    %v1602 = vmul.f32 %v1584, %v1600
    %1604 = vrot.lane.b32.xlu0 %v1602, 32
    %v1605 = vpop.permute.xlu0 %1604
    %v1606 = vsel %vm271, %v1605, 0
    %1608 = vmatprep.subr.mxu0 %v229
    %1609 = vmatpush1.msra.mxu0 %v228
    %1610 = vmatprep.subr.mxu0 %v231
    %1611 = vmatpush1.msra.mxu0 %v230
    %1612 = vmatprep.subr.mxu0 %v233
    %1613 = vmatpush1.msra.mxu0 %v232
    %1614 = vmatprep.subr.mxu0 %v235
    %1615 = vmatpush1.msra.mxu0 %v234
    %1616 = vmatprep.subr.mxu0 0.0
    %1617 = vmatpush1.msra.mxu0 0.0
    %1618 = vmatprep.subr.mxu0 0.0
    %1619 = vmatpush1.msra.mxu0 0.0
    %1620 = vmatprep.subr.mxu0 0.0
    %1621 = vmatpush1.msra.mxu0 0.0
    %1622 = vmatprep.subr.mxu0 0.0
    %1623 = vmatpush1.msra.mxu0 0.0
    %1624 = vmatprep.subr.mxu0 0.0
    %1625 = vmatpush1.msra.mxu0 0.0
    %1626 = vmatprep.subr.mxu0 0.0
    %1627 = vmatpush1.msra.mxu0 0.0
    %1628 = vmatprep.subr.mxu0 0.0
    %1629 = vmatpush1.msra.mxu0 0.0
    %1630 = vmatprep.subr.mxu0 0.0
    %1631 = vmatpush1.msra.mxu0 0.0
    %1632 = vmatprep.subr.mxu0 0.0
    %1633 = vmatpush1.msra.mxu0 0.0
    %1634 = vmatprep.subr.mxu0 0.0
    %1635 = vmatpush1.msra.mxu0 0.0
    %1636 = vmatprep.subr.mxu0 0.0
    %1637 = vmatpush1.msra.mxu0 0.0
    %1638 = vmatprep.subr.mxu0 0.0
    %1639 = vmatpush1.msra.mxu0 0.0
    %1640 = vmatprep.subr.mxu0 0.0
    %1641 = vmatpush1.msra.mxu0 0.0
    %1642 = vmatprep.subr.mxu0 0.0
    %1643 = vmatpush1.msra.mxu0 0.0
    %1644 = vmatprep.subr.mxu0 0.0
    %1645 = vmatpush1.msra.mxu0 0.0
    %1646 = vmatprep.subr.mxu0 0.0
    %1647 = vmatpush1.msra.mxu0 0.0
    %1648 = vmatprep.subr.mxu0 0.0
    %1649 = vmatpush1.msra.mxu0 0.0
    %1650 = vmatprep.subr.mxu0 0.0
    %1651 = vmatpush1.msra.mxu0 0.0
    %1652 = vmatprep.subr.mxu0 0.0
    %1653 = vmatpush1.msra.mxu0 0.0
    %1654 = vmatprep.subr.mxu0 0.0
    %1655 = vmatpush1.msra.mxu0 0.0
    %1656 = vmatprep.subr.mxu0 0.0
    %1657 = vmatpush1.msra.mxu0 0.0
    %1658 = vmatprep.subr.mxu0 0.0
    %1659 = vmatpush1.msra.mxu0 0.0
    %1660 = vmatprep.subr.mxu0 0.0
    %1661 = vmatpush1.msra.mxu0 0.0
    %1662 = vmatprep.subr.mxu0 0.0
    %1663 = vmatpush1.msra.mxu0 0.0
    %1664 = vmatprep.subr.mxu0 0.0
    %1665 = vmatpush1.msra.mxu0 0.0
    %1666 = vmatprep.subr.mxu0 0.0
    %1667 = vmatpush1.msra.mxu0 0.0
    %1668 = vmatprep.subr.mxu0 0.0
    %1669 = vmatpush1.msra.mxu0 0.0
    %1670 = vmatprep.subr.mxu0 0.0
    %1671 = vmatpush1.msra.mxu0 0.0
    %1672 = vmatprep.mubr.f32.mxu0 0.0
    %1673 = vmatmul.mubr.f32.gmra.mrb[0].mxu0 %v1606
    %v1674 = vpop.f32.mrb[0].mxu0
    %v1675 = vadd.f32 0.0, %v1674
    %v1676 = vpop.f32.mrb[0].mxu0
    %v1677 = vadd.f32 0.0, %v1676
    %1678 = vdwg.mxu0
    %v1679 = vadd.f32 %v1677, %v1471
    %v1680 = vadd.f32 %v1679, %v455
    %v1681 = vxor.u32 %v1680, 2147483648
    %v1682 = vmul.f32 %v1681, 1.442695
    %v1683 = vpow.pop %v1682
    %v1684 = vadd.f32 %v1683, 1.0
    %v1685 = vrcp.pop %v1684
    %v1686 = vmul.f32 1.0, %v1685
    %v1687 = vtanh.pop %v1680
    %v1688 = vmul.f32 %v1686, %v1392
    %1690 = vrot.lane.b32.xlu0 %v1687, 64
    %v1691 = vpop.permute.xlu0 %1690
    %v1693 = vmul.f32 %v1686, %v1691
    %1695 = vrot.lane.b32.xlu0 %v1693, 32
    %v1696 = vpop.permute.xlu0 %1695
    %v1698 = vadd.f32 %v1688, %v1696
    %v1699 = vtanh.pop %v1698
    %1701 = vrot.lane.b32.xlu0 %v1699, 64
    %v1702 = vpop.permute.xlu0 %1701
    %v1704 = vmul.f32 %v1686, %v1702
    %1706 = vrot.lane.b32.xlu0 %v1704, 32
    %v1707 = vpop.permute.xlu0 %1706
    %v1708 = vsel %vm271, %v1707, 0
    %1710 = vmatprep.subr.mxu0 0.0
    %1711 = vmatpush1.msra.mxu0 %v236
    %1712 = vmatprep.subr.mxu0 0.0
    %1713 = vmatpush1.msra.mxu0 %v237
    %1714 = vmatprep.subr.mxu0 0.0
    %1715 = vmatpush1.msra.mxu0 %v238
    %1716 = vmatprep.subr.mxu0 0.0
    %1717 = vmatpush1.msra.mxu0 %v239
    %1718 = vmatprep.subr.mxu0 0.0
    %1719 = vmatpush1.msra.mxu0 0.0
    %1720 = vmatprep.subr.mxu0 0.0
    %1721 = vmatpush1.msra.mxu0 0.0
    %1722 = vmatprep.subr.mxu0 0.0
    %1723 = vmatpush1.msra.mxu0 0.0
    %1724 = vmatprep.subr.mxu0 0.0
    %1725 = vmatpush1.msra.mxu0 0.0
    %1726 = vmatprep.subr.mxu0 0.0
    %1727 = vmatpush1.msra.mxu0 0.0
    %1728 = vmatprep.subr.mxu0 0.0
    %1729 = vmatpush1.msra.mxu0 0.0
    %1730 = vmatprep.subr.mxu0 0.0
    %1731 = vmatpush1.msra.mxu0 0.0
    %1732 = vmatprep.subr.mxu0 0.0
    %1733 = vmatpush1.msra.mxu0 0.0
    %1734 = vmatprep.subr.mxu0 0.0
    %1735 = vmatpush1.msra.mxu0 0.0
    %1736 = vmatprep.subr.mxu0 0.0
    %1737 = vmatpush1.msra.mxu0 0.0
    %1738 = vmatprep.subr.mxu0 0.0
    %1739 = vmatpush1.msra.mxu0 0.0
    %1740 = vmatprep.subr.mxu0 0.0
    %1741 = vmatpush1.msra.mxu0 0.0
    %1742 = vmatprep.subr.mxu0 0.0
    %1743 = vmatpush1.msra.mxu0 0.0
    %1744 = vmatprep.subr.mxu0 0.0
    %1745 = vmatpush1.msra.mxu0 0.0
    %1746 = vmatprep.subr.mxu0 0.0
    %1747 = vmatpush1.msra.mxu0 0.0
    %1748 = vmatprep.subr.mxu0 0.0
    %1749 = vmatpush1.msra.mxu0 0.0
    %1750 = vmatprep.subr.mxu0 0.0
    %1751 = vmatpush1.msra.mxu0 0.0
    %1752 = vmatprep.subr.mxu0 0.0
    %1753 = vmatpush1.msra.mxu0 0.0
    %1754 = vmatprep.subr.mxu0 0.0
    %1755 = vmatpush1.msra.mxu0 0.0
    %1756 = vmatprep.subr.mxu0 0.0
    %1757 = vmatpush1.msra.mxu0 0.0
    %1758 = vmatprep.subr.mxu0 0.0
    %1759 = vmatpush1.msra.mxu0 0.0
    %1760 = vmatprep.subr.mxu0 0.0
    %1761 = vmatpush1.msra.mxu0 0.0
    %1762 = vmatprep.subr.mxu0 0.0
    %1763 = vmatpush1.msra.mxu0 0.0
    %1764 = vmatprep.subr.mxu0 0.0
    %1765 = vmatpush1.msra.mxu0 0.0
    %1766 = vmatprep.subr.mxu0 0.0
    %1767 = vmatpush1.msra.mxu0 0.0
    %1768 = vmatprep.subr.mxu0 0.0
    %1769 = vmatpush1.msra.mxu0 0.0
    %1770 = vmatprep.subr.mxu0 0.0
    %1771 = vmatpush1.msra.mxu0 0.0
    %1772 = vmatprep.subr.mxu0 0.0
    %1773 = vmatpush1.msra.mxu0 0.0
    %1774 = vmatprep.mubr.f32.mxu0 0.0
    %1775 = vmatmul.mubr.f32.gmra.mrb[0].mxu0 %v1708
    %v1776 = vpop.f32.mrb[0].mxu0
    %v1777 = vadd.f32 0.0, %v1776
    %v1778 = vpop.f32.mrb[0].mxu0
    %1779 = vdwg.mxu0
    %s1780 = scalar_lea.vmem [#allocation2], 40
    %v1781 = vld [vmem:[%s1780] sm:$0xff]
    %v1782 = vadd.f32 %v1781, %v1573
    %v1783 = vxor.u32 %v1782, 2147483648
    %v1784 = vmul.f32 %v1783, 1.442695
    %v1785 = vpow.pop %v1784
    %v1786 = vadd.f32 %v1785, 1.0
    %v1787 = vrcp.pop %v1786
    %v1788 = vmul.f32 1.0, %v1787
    %v1789 = vtanh.pop %v1782
    %v1790 = vmul.f32 %v1788, %v1494
    %1792 = vrot.lane.b32.xlu0 %v1789, 64
    %v1793 = vpop.permute.xlu0 %1792
    %v1795 = vmul.f32 %v1788, %v1793
    %1797 = vrot.lane.b32.xlu0 %v1795, 32
    %v1798 = vpop.permute.xlu0 %1797
    %v1800 = vadd.f32 %v1790, %v1798
    %v1801 = vtanh.pop %v1800
    %1803 = vrot.lane.b32.xlu0 %v1801, 64
    %v1804 = vpop.permute.xlu0 %1803
    %v1806 = vmul.f32 %v1788, %v1804
    %1808 = vrot.lane.b32.xlu0 %v1806, 32
    %v1809 = vpop.permute.xlu0 %1808
    %v1810 = vsel %vm271, %v1809, 0
    %1812 = vmatprep.subr.mxu0 %v220
    %1813 = vmatpush1.msra.mxu0 %v219
    %1814 = vmatprep.subr.mxu0 %v222
    %1815 = vmatpush1.msra.mxu0 %v221
    %1816 = vmatprep.subr.mxu0 %v224
    %1817 = vmatpush1.msra.mxu0 %v223
    %1818 = vmatprep.subr.mxu0 %v226
    %1819 = vmatpush1.msra.mxu0 %v225
    %1820 = vmatprep.subr.mxu0 0.0
    %1821 = vmatpush1.msra.mxu0 0.0
    %1822 = vmatprep.subr.mxu0 0.0
    %1823 = vmatpush1.msra.mxu0 0.0
    %1824 = vmatprep.subr.mxu0 0.0
    %1825 = vmatpush1.msra.mxu0 0.0
    %1826 = vmatprep.subr.mxu0 0.0
    %1827 = vmatpush1.msra.mxu0 0.0
    %1828 = vmatprep.subr.mxu0 0.0
    %1829 = vmatpush1.msra.mxu0 0.0
    %1830 = vmatprep.subr.mxu0 0.0
    %1831 = vmatpush1.msra.mxu0 0.0
    %1832 = vmatprep.subr.mxu0 0.0
    %1833 = vmatpush1.msra.mxu0 0.0
    %1834 = vmatprep.subr.mxu0 0.0
    %1835 = vmatpush1.msra.mxu0 0.0
    %1836 = vmatprep.subr.mxu0 0.0
    %1837 = vmatpush1.msra.mxu0 0.0
    %1838 = vmatprep.subr.mxu0 0.0
    %1839 = vmatpush1.msra.mxu0 0.0
    %1840 = vmatprep.subr.mxu0 0.0
    %1841 = vmatpush1.msra.mxu0 0.0
    %1842 = vmatprep.subr.mxu0 0.0
    %1843 = vmatpush1.msra.mxu0 0.0
    %1844 = vmatprep.subr.mxu0 0.0
    %1845 = vmatpush1.msra.mxu0 0.0
    %1846 = vmatprep.subr.mxu0 0.0
    %1847 = vmatpush1.msra.mxu0 0.0
    %1848 = vmatprep.subr.mxu0 0.0
    %1849 = vmatpush1.msra.mxu0 0.0
    %1850 = vmatprep.subr.mxu0 0.0
    %1851 = vmatpush1.msra.mxu0 0.0
    %1852 = vmatprep.subr.mxu0 0.0
    %1853 = vmatpush1.msra.mxu0 0.0
    %1854 = vmatprep.subr.mxu0 0.0
    %1855 = vmatpush1.msra.mxu0 0.0
    %1856 = vmatprep.subr.mxu0 0.0
    %1857 = vmatpush1.msra.mxu0 0.0
    %1858 = vmatprep.subr.mxu0 0.0
    %1859 = vmatpush1.msra.mxu0 0.0
    %1860 = vmatprep.subr.mxu0 0.0
    %1861 = vmatpush1.msra.mxu0 0.0
    %1862 = vmatprep.subr.mxu0 0.0
    %1863 = vmatpush1.msra.mxu0 0.0
    %1864 = vmatprep.subr.mxu0 0.0
    %1865 = vmatpush1.msra.mxu0 0.0
    %1866 = vmatprep.subr.mxu0 0.0
    %1867 = vmatpush1.msra.mxu0 0.0
    %1868 = vmatprep.subr.mxu0 0.0
    %1869 = vmatpush1.msra.mxu0 0.0
    %1870 = vmatprep.subr.mxu0 0.0
    %1871 = vmatpush1.msra.mxu0 0.0
    %1872 = vmatprep.subr.mxu0 0.0
    %1873 = vmatpush1.msra.mxu0 0.0
    %1874 = vmatprep.subr.mxu0 0.0
    %1875 = vmatpush1.msra.mxu0 0.0
    %1876 = vmatprep.mubr.f32.mxu0 0.0
    %1877 = vmatmul.mubr.f32.gmra.mrb[0].mxu0 %v1810
    %v1878 = vpop.f32.mrb[0].mxu0
    %v1879 = vadd.f32 0.0, %v1878
    %v1880 = vpop.f32.mrb[0].mxu0
    %v1881 = vadd.f32 0.0, %v1880
    %1882 = vdwg.mxu0
    %v1883 = vadd.f32 %v1881, %v1675
    %v1884 = vadd.f32 %v1883, %v349
    %v1885 = vxor.u32 %v1884, 2147483648
    %v1886 = vmul.f32 %v1885, 1.442695
    %v1887 = vpow.pop %v1886
    %v1888 = vadd.f32 %v1887, 1.0
    %v1889 = vrcp.pop %v1888
    %v1890 = vmul.f32 1.0, %v1889
    %v1891 = vtanh.pop %v1884
    %v1892 = vmul.f32 %v1890, %v1596
    %1894 = vrot.lane.b32.xlu0 %v1891, 64
    %v1895 = vpop.permute.xlu0 %1894
    %v1897 = vmul.f32 %v1890, %v1895
    %1899 = vrot.lane.b32.xlu0 %v1897, 32
    %v1900 = vpop.permute.xlu0 %1899
    %v1902 = vadd.f32 %v1892, %v1900
    %v1903 = vtanh.pop %v1902
    %1905 = vrot.lane.b32.xlu0 %v1903, 64
    %v1906 = vpop.permute.xlu0 %1905
    %v1908 = vmul.f32 %v1890, %v1906
    %1910 = vrot.lane.b32.xlu0 %v1908, 32
    %v1911 = vpop.permute.xlu0 %1910
    %v1912 = vsel %vm271, %v1911, 0
    %1914 = vmatprep.subr.mxu0 %v229
    %1915 = vmatpush1.msra.mxu0 %v228
    %1916 = vmatprep.subr.mxu0 %v231
    %1917 = vmatpush1.msra.mxu0 %v230
    %1918 = vmatprep.subr.mxu0 %v233
    %1919 = vmatpush1.msra.mxu0 %v232
    %1920 = vmatprep.subr.mxu0 %v235
    %1921 = vmatpush1.msra.mxu0 %v234
    %1922 = vmatprep.subr.mxu0 0.0
    %1923 = vmatpush1.msra.mxu0 0.0
    %1924 = vmatprep.subr.mxu0 0.0
    %1925 = vmatpush1.msra.mxu0 0.0
    %1926 = vmatprep.subr.mxu0 0.0
    %1927 = vmatpush1.msra.mxu0 0.0
    %1928 = vmatprep.subr.mxu0 0.0
    %1929 = vmatpush1.msra.mxu0 0.0
    %1930 = vmatprep.subr.mxu0 0.0
    %1931 = vmatpush1.msra.mxu0 0.0
    %1932 = vmatprep.subr.mxu0 0.0
    %1933 = vmatpush1.msra.mxu0 0.0
    %1934 = vmatprep.subr.mxu0 0.0
    %1935 = vmatpush1.msra.mxu0 0.0
    %1936 = vmatprep.subr.mxu0 0.0
    %1937 = vmatpush1.msra.mxu0 0.0
    %1938 = vmatprep.subr.mxu0 0.0
    %1939 = vmatpush1.msra.mxu0 0.0
    %1940 = vmatprep.subr.mxu0 0.0
    %1941 = vmatpush1.msra.mxu0 0.0
    %1942 = vmatprep.subr.mxu0 0.0
    %1943 = vmatpush1.msra.mxu0 0.0
    %1944 = vmatprep.subr.mxu0 0.0
    %1945 = vmatpush1.msra.mxu0 0.0
    %1946 = vmatprep.subr.mxu0 0.0
    %1947 = vmatpush1.msra.mxu0 0.0
    %1948 = vmatprep.subr.mxu0 0.0
    %1949 = vmatpush1.msra.mxu0 0.0
    %1950 = vmatprep.subr.mxu0 0.0
    %1951 = vmatpush1.msra.mxu0 0.0
    %1952 = vmatprep.subr.mxu0 0.0
    %1953 = vmatpush1.msra.mxu0 0.0
    %1954 = vmatprep.subr.mxu0 0.0
    %1955 = vmatpush1.msra.mxu0 0.0
    %1956 = vmatprep.subr.mxu0 0.0
    %1957 = vmatpush1.msra.mxu0 0.0
    %1958 = vmatprep.subr.mxu0 0.0
    %1959 = vmatpush1.msra.mxu0 0.0
    %1960 = vmatprep.subr.mxu0 0.0
    %1961 = vmatpush1.msra.mxu0 0.0
    %1962 = vmatprep.subr.mxu0 0.0
    %1963 = vmatpush1.msra.mxu0 0.0
    %1964 = vmatprep.subr.mxu0 0.0
    %1965 = vmatpush1.msra.mxu0 0.0
    %1966 = vmatprep.subr.mxu0 0.0
    %1967 = vmatpush1.msra.mxu0 0.0
    %1968 = vmatprep.subr.mxu0 0.0
    %1969 = vmatpush1.msra.mxu0 0.0
    %1970 = vmatprep.subr.mxu0 0.0
    %1971 = vmatpush1.msra.mxu0 0.0
    %1972 = vmatprep.subr.mxu0 0.0
    %1973 = vmatpush1.msra.mxu0 0.0
    %1974 = vmatprep.subr.mxu0 0.0
    %1975 = vmatpush1.msra.mxu0 0.0
    %1976 = vmatprep.subr.mxu0 0.0
    %1977 = vmatpush1.msra.mxu0 0.0
    %1978 = vmatprep.mubr.f32.mxu0 0.0
    %1979 = vmatmul.mubr.f32.gmra.mrb[0].mxu0 %v1912
    %v1980 = vpop.f32.mrb[0].mxu0
    %v1981 = vadd.f32 0.0, %v1980
    %v1982 = vpop.f32.mrb[0].mxu0
    %v1983 = vadd.f32 0.0, %v1982
    %1984 = vdwg.mxu0
    %v1985 = vadd.f32 %v1983, %v1777
    %v1986 = vadd.f32 %v1985, %v455
    %v1987 = vxor.u32 %v1986, 2147483648
    %v1988 = vmul.f32 %v1987, 1.442695
    %v1989 = vpow.pop %v1988
    %v1990 = vadd.f32 %v1989, 1.0
    %v1991 = vrcp.pop %v1990
    %v1992 = vmul.f32 1.0, %v1991
    %v1993 = vtanh.pop %v1986
    %v1994 = vmul.f32 %v1992, %v1698
    %1996 = vrot.lane.b32.xlu0 %v1993, 64
    %v1997 = vpop.permute.xlu0 %1996
    %v1999 = vmul.f32 %v1992, %v1997
    %2001 = vrot.lane.b32.xlu0 %v1999, 32
    %v2002 = vpop.permute.xlu0 %2001
    %v2004 = vadd.f32 %v1994, %v2002
    %v2005 = vtanh.pop %v2004
    %2007 = vrot.lane.b32.xlu0 %v2005, 64
    %v2008 = vpop.permute.xlu0 %2007
    %v2010 = vmul.f32 %v1992, %v2008
    %2012 = vrot.lane.b32.xlu0 %v2010, 32
    %v2013 = vpop.permute.xlu0 %2012
    %v2014 = vsel %vm271, %v2013, 0
    %2016 = vmatprep.subr.mxu0 0.0
    %2017 = vmatpush1.msra.mxu0 %v236
    %2018 = vmatprep.subr.mxu0 0.0
    %2019 = vmatpush1.msra.mxu0 %v237
    %2020 = vmatprep.subr.mxu0 0.0
    %2021 = vmatpush1.msra.mxu0 %v238
    %2022 = vmatprep.subr.mxu0 0.0
    %2023 = vmatpush1.msra.mxu0 %v239
    %2024 = vmatprep.subr.mxu0 0.0
    %2025 = vmatpush1.msra.mxu0 0.0
    %2026 = vmatprep.subr.mxu0 0.0
    %2027 = vmatpush1.msra.mxu0 0.0
    %2028 = vmatprep.subr.mxu0 0.0
    %2029 = vmatpush1.msra.mxu0 0.0
    %2030 = vmatprep.subr.mxu0 0.0
    %2031 = vmatpush1.msra.mxu0 0.0
    %2032 = vmatprep.subr.mxu0 0.0
    %2033 = vmatpush1.msra.mxu0 0.0
    %2034 = vmatprep.subr.mxu0 0.0
    %2035 = vmatpush1.msra.mxu0 0.0
    %2036 = vmatprep.subr.mxu0 0.0
    %2037 = vmatpush1.msra.mxu0 0.0
    %2038 = vmatprep.subr.mxu0 0.0
    %2039 = vmatpush1.msra.mxu0 0.0
    %2040 = vmatprep.subr.mxu0 0.0
    %2041 = vmatpush1.msra.mxu0 0.0
    %2042 = vmatprep.subr.mxu0 0.0
    %2043 = vmatpush1.msra.mxu0 0.0
    %2044 = vmatprep.subr.mxu0 0.0
    %2045 = vmatpush1.msra.mxu0 0.0
    %2046 = vmatprep.subr.mxu0 0.0
    %2047 = vmatpush1.msra.mxu0 0.0
    %2048 = vmatprep.subr.mxu0 0.0
    %2049 = vmatpush1.msra.mxu0 0.0
    %2050 = vmatprep.subr.mxu0 0.0
    %2051 = vmatpush1.msra.mxu0 0.0
    %2052 = vmatprep.subr.mxu0 0.0
    %2053 = vmatpush1.msra.mxu0 0.0
    %2054 = vmatprep.subr.mxu0 0.0
    %2055 = vmatpush1.msra.mxu0 0.0
    %2056 = vmatprep.subr.mxu0 0.0
    %2057 = vmatpush1.msra.mxu0 0.0
    %2058 = vmatprep.subr.mxu0 0.0
    %2059 = vmatpush1.msra.mxu0 0.0
    %2060 = vmatprep.subr.mxu0 0.0
    %2061 = vmatpush1.msra.mxu0 0.0
    %2062 = vmatprep.subr.mxu0 0.0
    %2063 = vmatpush1.msra.mxu0 0.0
    %2064 = vmatprep.subr.mxu0 0.0
    %2065 = vmatpush1.msra.mxu0 0.0
    %2066 = vmatprep.subr.mxu0 0.0
    %2067 = vmatpush1.msra.mxu0 0.0
    %2068 = vmatprep.subr.mxu0 0.0
    %2069 = vmatpush1.msra.mxu0 0.0
    %2070 = vmatprep.subr.mxu0 0.0
    %2071 = vmatpush1.msra.mxu0 0.0
    %2072 = vmatprep.subr.mxu0 0.0
    %2073 = vmatpush1.msra.mxu0 0.0
    %2074 = vmatprep.subr.mxu0 0.0
    %2075 = vmatpush1.msra.mxu0 0.0
    %2076 = vmatprep.subr.mxu0 0.0
    %2077 = vmatpush1.msra.mxu0 0.0
    %2078 = vmatprep.subr.mxu0 0.0
    %2079 = vmatpush1.msra.mxu0 0.0
    %2080 = vmatprep.mubr.f32.mxu0 0.0
    %2081 = vmatmul.mubr.f32.gmra.mrb[0].mxu0 %v2014
    %v2082 = vpop.f32.mrb[0].mxu0
    %v2083 = vadd.f32 0.0, %v2082
    %v2084 = vpop.f32.mrb[0].mxu0
    %2085 = vdwg.mxu0
    %s2086 = scalar_lea.vmem [#allocation2], 48
    %v2087 = vld [vmem:[%s2086] sm:$0xff]
    %v2088 = vadd.f32 %v2087, %v1879
    %v2089 = vxor.u32 %v2088, 2147483648
    %v2090 = vmul.f32 %v2089, 1.442695
    %v2091 = vpow.pop %v2090
    %v2092 = vadd.f32 %v2091, 1.0
    %v2093 = vrcp.pop %v2092
    %v2094 = vmul.f32 1.0, %v2093
    %v2095 = vtanh.pop %v2088
    %v2096 = vmul.f32 %v2094, %v1800
    %2098 = vrot.lane.b32.xlu0 %v2095, 64
    %v2099 = vpop.permute.xlu0 %2098
    %v2101 = vmul.f32 %v2094, %v2099
    %2103 = vrot.lane.b32.xlu0 %v2101, 32
    %v2104 = vpop.permute.xlu0 %2103
    %v2106 = vadd.f32 %v2096, %v2104
    %v2107 = vtanh.pop %v2106
    %2109 = vrot.lane.b32.xlu0 %v2107, 64
    %v2110 = vpop.permute.xlu0 %2109
    %v2112 = vmul.f32 %v2094, %v2110
    %2114 = vrot.lane.b32.xlu0 %v2112, 32
    %v2115 = vpop.permute.xlu0 %2114
    %v2116 = vsel %vm271, %v2115, 0
    %2118 = vmatprep.subr.mxu0 %v220
    %2119 = vmatpush1.msra.mxu0 %v219
    %2120 = vmatprep.subr.mxu0 %v222
    %2121 = vmatpush1.msra.mxu0 %v221
    %2122 = vmatprep.subr.mxu0 %v224
    %2123 = vmatpush1.msra.mxu0 %v223
    %2124 = vmatprep.subr.mxu0 %v226
    %2125 = vmatpush1.msra.mxu0 %v225
    %2126 = vmatprep.subr.mxu0 0.0
    %2127 = vmatpush1.msra.mxu0 0.0
    %2128 = vmatprep.subr.mxu0 0.0
    %2129 = vmatpush1.msra.mxu0 0.0
    %2130 = vmatprep.subr.mxu0 0.0
    %2131 = vmatpush1.msra.mxu0 0.0
    %2132 = vmatprep.subr.mxu0 0.0
    %2133 = vmatpush1.msra.mxu0 0.0
    %2134 = vmatprep.subr.mxu0 0.0
    %2135 = vmatpush1.msra.mxu0 0.0
    %2136 = vmatprep.subr.mxu0 0.0
    %2137 = vmatpush1.msra.mxu0 0.0
    %2138 = vmatprep.subr.mxu0 0.0
    %2139 = vmatpush1.msra.mxu0 0.0
    %2140 = vmatprep.subr.mxu0 0.0
    %2141 = vmatpush1.msra.mxu0 0.0
    %2142 = vmatprep.subr.mxu0 0.0
    %2143 = vmatpush1.msra.mxu0 0.0
    %2144 = vmatprep.subr.mxu0 0.0
    %2145 = vmatpush1.msra.mxu0 0.0
    %2146 = vmatprep.subr.mxu0 0.0
    %2147 = vmatpush1.msra.mxu0 0.0
    %2148 = vmatprep.subr.mxu0 0.0
    %2149 = vmatpush1.msra.mxu0 0.0
    %2150 = vmatprep.subr.mxu0 0.0
    %2151 = vmatpush1.msra.mxu0 0.0
    %2152 = vmatprep.subr.mxu0 0.0
    %2153 = vmatpush1.msra.mxu0 0.0
    %2154 = vmatprep.subr.mxu0 0.0
    %2155 = vmatpush1.msra.mxu0 0.0
    %2156 = vmatprep.subr.mxu0 0.0
    %2157 = vmatpush1.msra.mxu0 0.0
    %2158 = vmatprep.subr.mxu0 0.0
    %2159 = vmatpush1.msra.mxu0 0.0
    %2160 = vmatprep.subr.mxu0 0.0
    %2161 = vmatpush1.msra.mxu0 0.0
    %2162 = vmatprep.subr.mxu0 0.0
    %2163 = vmatpush1.msra.mxu0 0.0
    %2164 = vmatprep.subr.mxu0 0.0
    %2165 = vmatpush1.msra.mxu0 0.0
    %2166 = vmatprep.subr.mxu0 0.0
    %2167 = vmatpush1.msra.mxu0 0.0
    %2168 = vmatprep.subr.mxu0 0.0
    %2169 = vmatpush1.msra.mxu0 0.0
    %2170 = vmatprep.subr.mxu0 0.0
    %2171 = vmatpush1.msra.mxu0 0.0
    %2172 = vmatprep.subr.mxu0 0.0
    %2173 = vmatpush1.msra.mxu0 0.0
    %2174 = vmatprep.subr.mxu0 0.0
    %2175 = vmatpush1.msra.mxu0 0.0
    %2176 = vmatprep.subr.mxu0 0.0
    %2177 = vmatpush1.msra.mxu0 0.0
    %2178 = vmatprep.subr.mxu0 0.0
    %2179 = vmatpush1.msra.mxu0 0.0
    %2180 = vmatprep.subr.mxu0 0.0
    %2181 = vmatpush1.msra.mxu0 0.0
    %2182 = vmatprep.mubr.f32.mxu0 0.0
    %2183 = vmatmul.mubr.f32.gmra.mrb[0].mxu0 %v2116
    %v2184 = vpop.f32.mrb[0].mxu0
    %v2185 = vadd.f32 0.0, %v2184
    %v2186 = vpop.f32.mrb[0].mxu0
    %v2187 = vadd.f32 0.0, %v2186
    %2188 = vdwg.mxu0
    %v2189 = vadd.f32 %v2187, %v1981
    %v2190 = vadd.f32 %v2189, %v349
    %v2191 = vxor.u32 %v2190, 2147483648
    %v2192 = vmul.f32 %v2191, 1.442695
    %v2193 = vpow.pop %v2192
    %v2194 = vadd.f32 %v2193, 1.0
    %v2195 = vrcp.pop %v2194
    %v2196 = vmul.f32 1.0, %v2195
    %v2197 = vtanh.pop %v2190
    %v2198 = vmul.f32 %v2196, %v1902
    %2200 = vrot.lane.b32.xlu0 %v2197, 64
    %v2201 = vpop.permute.xlu0 %2200
    %v2203 = vmul.f32 %v2196, %v2201
    %2205 = vrot.lane.b32.xlu0 %v2203, 32
    %v2206 = vpop.permute.xlu0 %2205
    %v2208 = vadd.f32 %v2198, %v2206
    %v2209 = vtanh.pop %v2208
    %2211 = vrot.lane.b32.xlu0 %v2209, 64
    %v2212 = vpop.permute.xlu0 %2211
    %v2214 = vmul.f32 %v2196, %v2212
    %2216 = vrot.lane.b32.xlu0 %v2214, 32
    %v2217 = vpop.permute.xlu0 %2216
    %v2218 = vsel %vm271, %v2217, 0
    %2220 = vmatprep.subr.mxu0 %v229
    %2221 = vmatpush1.msra.mxu0 %v228
    %2222 = vmatprep.subr.mxu0 %v231
    %2223 = vmatpush1.msra.mxu0 %v230
    %2224 = vmatprep.subr.mxu0 %v233
    %2225 = vmatpush1.msra.mxu0 %v232
    %2226 = vmatprep.subr.mxu0 %v235
    %2227 = vmatpush1.msra.mxu0 %v234
    %2228 = vmatprep.subr.mxu0 0.0
    %2229 = vmatpush1.msra.mxu0 0.0
    %2230 = vmatprep.subr.mxu0 0.0
    %2231 = vmatpush1.msra.mxu0 0.0
    %2232 = vmatprep.subr.mxu0 0.0
    %2233 = vmatpush1.msra.mxu0 0.0
    %2234 = vmatprep.subr.mxu0 0.0
    %2235 = vmatpush1.msra.mxu0 0.0
    %2236 = vmatprep.subr.mxu0 0.0
    %2237 = vmatpush1.msra.mxu0 0.0
    %2238 = vmatprep.subr.mxu0 0.0
    %2239 = vmatpush1.msra.mxu0 0.0
    %2240 = vmatprep.subr.mxu0 0.0
    %2241 = vmatpush1.msra.mxu0 0.0
    %2242 = vmatprep.subr.mxu0 0.0
    %2243 = vmatpush1.msra.mxu0 0.0
    %2244 = vmatprep.subr.mxu0 0.0
    %2245 = vmatpush1.msra.mxu0 0.0
    %2246 = vmatprep.subr.mxu0 0.0
    %2247 = vmatpush1.msra.mxu0 0.0
    %2248 = vmatprep.subr.mxu0 0.0
    %2249 = vmatpush1.msra.mxu0 0.0
    %2250 = vmatprep.subr.mxu0 0.0
    %2251 = vmatpush1.msra.mxu0 0.0
    %2252 = vmatprep.subr.mxu0 0.0
    %2253 = vmatpush1.msra.mxu0 0.0
    %2254 = vmatprep.subr.mxu0 0.0
    %2255 = vmatpush1.msra.mxu0 0.0
    %2256 = vmatprep.subr.mxu0 0.0
    %2257 = vmatpush1.msra.mxu0 0.0
    %2258 = vmatprep.subr.mxu0 0.0
    %2259 = vmatpush1.msra.mxu0 0.0
    %2260 = vmatprep.subr.mxu0 0.0
    %2261 = vmatpush1.msra.mxu0 0.0
    %2262 = vmatprep.subr.mxu0 0.0
    %2263 = vmatpush1.msra.mxu0 0.0
    %2264 = vmatprep.subr.mxu0 0.0
    %2265 = vmatpush1.msra.mxu0 0.0
    %2266 = vmatprep.subr.mxu0 0.0
    %2267 = vmatpush1.msra.mxu0 0.0
    %2268 = vmatprep.subr.mxu0 0.0
    %2269 = vmatpush1.msra.mxu0 0.0
    %2270 = vmatprep.subr.mxu0 0.0
    %2271 = vmatpush1.msra.mxu0 0.0
    %2272 = vmatprep.subr.mxu0 0.0
    %2273 = vmatpush1.msra.mxu0 0.0
    %2274 = vmatprep.subr.mxu0 0.0
    %2275 = vmatpush1.msra.mxu0 0.0
    %2276 = vmatprep.subr.mxu0 0.0
    %2277 = vmatpush1.msra.mxu0 0.0
    %2278 = vmatprep.subr.mxu0 0.0
    %2279 = vmatpush1.msra.mxu0 0.0
    %2280 = vmatprep.subr.mxu0 0.0
    %2281 = vmatpush1.msra.mxu0 0.0
    %2282 = vmatprep.subr.mxu0 0.0
    %2283 = vmatpush1.msra.mxu0 0.0
    %2284 = vmatprep.mubr.f32.mxu0 0.0
    %2285 = vmatmul.mubr.f32.gmra.mrb[0].mxu0 %v2218
    %v2286 = vpop.f32.mrb[0].mxu0
    %v2287 = vadd.f32 0.0, %v2286
    %v2288 = vpop.f32.mrb[0].mxu0
    %v2289 = vadd.f32 0.0, %v2288
    %2290 = vdwg.mxu0
    %v2291 = vadd.f32 %v2289, %v2083
    %v2292 = vadd.f32 %v2291, %v455
    %v2293 = vxor.u32 %v2292, 2147483648
    %v2294 = vmul.f32 %v2293, 1.442695
    %v2295 = vpow.pop %v2294
    %v2296 = vadd.f32 %v2295, 1.0
    %v2297 = vrcp.pop %v2296
    %v2298 = vmul.f32 1.0, %v2297
    %v2299 = vtanh.pop %v2292
    %v2300 = vmul.f32 %v2298, %v2004
    %2302 = vrot.lane.b32.xlu0 %v2299, 64
    %v2303 = vpop.permute.xlu0 %2302
    %v2305 = vmul.f32 %v2298, %v2303
    %2307 = vrot.lane.b32.xlu0 %v2305, 32
    %v2308 = vpop.permute.xlu0 %2307
    %v2310 = vadd.f32 %v2300, %v2308
    %v2311 = vtanh.pop %v2310
    %2313 = vrot.lane.b32.xlu0 %v2311, 64
    %v2314 = vpop.permute.xlu0 %2313
    %v2316 = vmul.f32 %v2298, %v2314
    %2318 = vrot.lane.b32.xlu0 %v2316, 32
    %v2319 = vpop.permute.xlu0 %2318
    %v2320 = vsel %vm271, %v2319, 0
    %2322 = vmatprep.subr.mxu0 0.0
    %2323 = vmatpush1.msra.mxu0 %v236
    %2324 = vmatprep.subr.mxu0 0.0
    %2325 = vmatpush1.msra.mxu0 %v237
    %2326 = vmatprep.subr.mxu0 0.0
    %2327 = vmatpush1.msra.mxu0 %v238
    %2328 = vmatprep.subr.mxu0 0.0
    %2329 = vmatpush1.msra.mxu0 %v239
    %2330 = vmatprep.subr.mxu0 0.0
    %2331 = vmatpush1.msra.mxu0 0.0
    %2332 = vmatprep.subr.mxu0 0.0
    %2333 = vmatpush1.msra.mxu0 0.0
    %2334 = vmatprep.subr.mxu0 0.0
    %2335 = vmatpush1.msra.mxu0 0.0
    %2336 = vmatprep.subr.mxu0 0.0
    %2337 = vmatpush1.msra.mxu0 0.0
    %2338 = vmatprep.subr.mxu0 0.0
    %2339 = vmatpush1.msra.mxu0 0.0
    %2340 = vmatprep.subr.mxu0 0.0
    %2341 = vmatpush1.msra.mxu0 0.0
    %2342 = vmatprep.subr.mxu0 0.0
    %2343 = vmatpush1.msra.mxu0 0.0
    %2344 = vmatprep.subr.mxu0 0.0
    %2345 = vmatpush1.msra.mxu0 0.0
    %2346 = vmatprep.subr.mxu0 0.0
    %2347 = vmatpush1.msra.mxu0 0.0
    %2348 = vmatprep.subr.mxu0 0.0
    %2349 = vmatpush1.msra.mxu0 0.0
    %2350 = vmatprep.subr.mxu0 0.0
    %2351 = vmatpush1.msra.mxu0 0.0
    %2352 = vmatprep.subr.mxu0 0.0
    %2353 = vmatpush1.msra.mxu0 0.0
    %2354 = vmatprep.subr.mxu0 0.0
    %2355 = vmatpush1.msra.mxu0 0.0
    %2356 = vmatprep.subr.mxu0 0.0
    %2357 = vmatpush1.msra.mxu0 0.0
    %2358 = vmatprep.subr.mxu0 0.0
    %2359 = vmatpush1.msra.mxu0 0.0
    %2360 = vmatprep.subr.mxu0 0.0
    %2361 = vmatpush1.msra.mxu0 0.0
    %2362 = vmatprep.subr.mxu0 0.0
    %2363 = vmatpush1.msra.mxu0 0.0
    %2364 = vmatprep.subr.mxu0 0.0
    %2365 = vmatpush1.msra.mxu0 0.0
    %2366 = vmatprep.subr.mxu0 0.0
    %2367 = vmatpush1.msra.mxu0 0.0
    %2368 = vmatprep.subr.mxu0 0.0
    %2369 = vmatpush1.msra.mxu0 0.0
    %2370 = vmatprep.subr.mxu0 0.0
    %2371 = vmatpush1.msra.mxu0 0.0
    %2372 = vmatprep.subr.mxu0 0.0
    %2373 = vmatpush1.msra.mxu0 0.0
    %2374 = vmatprep.subr.mxu0 0.0
    %2375 = vmatpush1.msra.mxu0 0.0
    %2376 = vmatprep.subr.mxu0 0.0
    %2377 = vmatpush1.msra.mxu0 0.0
    %2378 = vmatprep.subr.mxu0 0.0
    %2379 = vmatpush1.msra.mxu0 0.0
    %2380 = vmatprep.subr.mxu0 0.0
    %2381 = vmatpush1.msra.mxu0 0.0
    %2382 = vmatprep.subr.mxu0 0.0
    %2383 = vmatpush1.msra.mxu0 0.0
    %2384 = vmatprep.subr.mxu0 0.0
    %2385 = vmatpush1.msra.mxu0 0.0
    %2386 = vmatprep.mubr.f32.mxu0 0.0
    %2387 = vmatmul.mubr.f32.gmra.mrb[0].mxu0 %v2320
    %v2388 = vpop.f32.mrb[0].mxu0
    %v2389 = vadd.f32 0.0, %v2388
    %v2390 = vpop.f32.mrb[0].mxu0
    %2391 = vdwg.mxu0
    %s2392 = scalar_lea.vmem [#allocation2], 56
    %v2393 = vld [vmem:[%s2392] sm:$0xff]
    %v2394 = vadd.f32 %v2393, %v2185
    %v2395 = vxor.u32 %v2394, 2147483648
    %v2396 = vmul.f32 %v2395, 1.442695
    %v2397 = vpow.pop %v2396
    %v2398 = vadd.f32 %v2397, 1.0
    %v2399 = vrcp.pop %v2398
    %v2400 = vmul.f32 1.0, %v2399
    %v2401 = vtanh.pop %v2394
    %v2402 = vmul.f32 %v2400, %v2106
    %2404 = vrot.lane.b32.xlu0 %v2401, 64
    %v2405 = vpop.permute.xlu0 %2404
    %v2407 = vmul.f32 %v2400, %v2405
    %2409 = vrot.lane.b32.xlu0 %v2407, 32
    %v2410 = vpop.permute.xlu0 %2409
    %v2412 = vadd.f32 %v2402, %v2410
    %v2413 = vtanh.pop %v2412
    %2415 = vrot.lane.b32.xlu0 %v2413, 64
    %v2416 = vpop.permute.xlu0 %2415
    %v2418 = vmul.f32 %v2400, %v2416
    %2420 = vrot.lane.b32.xlu0 %v2418, 32
    %v2421 = vpop.permute.xlu0 %2420
    %v2422 = vsel %vm271, %v2421, 0
    %2424 = vmatprep.subr.mxu0 %v220
    %2425 = vmatpush1.msra.mxu0 %v219
    %2426 = vmatprep.subr.mxu0 %v222
    %2427 = vmatpush1.msra.mxu0 %v221
    %2428 = vmatprep.subr.mxu0 %v224
    %2429 = vmatpush1.msra.mxu0 %v223
    %2430 = vmatprep.subr.mxu0 %v226
    %2431 = vmatpush1.msra.mxu0 %v225
    %2432 = vmatprep.subr.mxu0 0.0
    %2433 = vmatpush1.msra.mxu0 0.0
    %2434 = vmatprep.subr.mxu0 0.0
    %2435 = vmatpush1.msra.mxu0 0.0
    %2436 = vmatprep.subr.mxu0 0.0
    %2437 = vmatpush1.msra.mxu0 0.0
    %2438 = vmatprep.subr.mxu0 0.0
    %2439 = vmatpush1.msra.mxu0 0.0
    %2440 = vmatprep.subr.mxu0 0.0
    %2441 = vmatpush1.msra.mxu0 0.0
    %2442 = vmatprep.subr.mxu0 0.0
    %2443 = vmatpush1.msra.mxu0 0.0
    %2444 = vmatprep.subr.mxu0 0.0
    %2445 = vmatpush1.msra.mxu0 0.0
    %2446 = vmatprep.subr.mxu0 0.0
    %2447 = vmatpush1.msra.mxu0 0.0
    %2448 = vmatprep.subr.mxu0 0.0
    %2449 = vmatpush1.msra.mxu0 0.0
    %2450 = vmatprep.subr.mxu0 0.0
    %2451 = vmatpush1.msra.mxu0 0.0
    %2452 = vmatprep.subr.mxu0 0.0
    %2453 = vmatpush1.msra.mxu0 0.0
    %2454 = vmatprep.subr.mxu0 0.0
    %2455 = vmatpush1.msra.mxu0 0.0
    %2456 = vmatprep.subr.mxu0 0.0
    %2457 = vmatpush1.msra.mxu0 0.0
    %2458 = vmatprep.subr.mxu0 0.0
    %2459 = vmatpush1.msra.mxu0 0.0
    %2460 = vmatprep.subr.mxu0 0.0
    %2461 = vmatpush1.msra.mxu0 0.0
    %2462 = vmatprep.subr.mxu0 0.0
    %2463 = vmatpush1.msra.mxu0 0.0
    %2464 = vmatprep.subr.mxu0 0.0
    %2465 = vmatpush1.msra.mxu0 0.0
    %2466 = vmatprep.subr.mxu0 0.0
    %2467 = vmatpush1.msra.mxu0 0.0
    %2468 = vmatprep.subr.mxu0 0.0
    %2469 = vmatpush1.msra.mxu0 0.0
    %2470 = vmatprep.subr.mxu0 0.0
    %2471 = vmatpush1.msra.mxu0 0.0
    %2472 = vmatprep.subr.mxu0 0.0
    %2473 = vmatpush1.msra.mxu0 0.0
    %2474 = vmatprep.subr.mxu0 0.0
    %2475 = vmatpush1.msra.mxu0 0.0
    %2476 = vmatprep.subr.mxu0 0.0
    %2477 = vmatpush1.msra.mxu0 0.0
    %2478 = vmatprep.subr.mxu0 0.0
    %2479 = vmatpush1.msra.mxu0 0.0
    %2480 = vmatprep.subr.mxu0 0.0
    %2481 = vmatpush1.msra.mxu0 0.0
    %2482 = vmatprep.subr.mxu0 0.0
    %2483 = vmatpush1.msra.mxu0 0.0
    %2484 = vmatprep.subr.mxu0 0.0
    %2485 = vmatpush1.msra.mxu0 0.0
    %2486 = vmatprep.subr.mxu0 0.0
    %2487 = vmatpush1.msra.mxu0 0.0
    %2488 = vmatprep.mubr.f32.mxu0 0.0
    %2489 = vmatmul.mubr.f32.gmra.mrb[0].mxu0 %v2422
    %v2490 = vpop.f32.mrb[0].mxu0
    %v2491 = vpop.f32.mrb[0].mxu0
    %v2492 = vadd.f32 0.0, %v2491
    %2493 = vdwg.mxu0
    %v2494 = vadd.f32 %v2492, %v2287
    %v2495 = vadd.f32 %v2494, %v349
    %v2496 = vxor.u32 %v2495, 2147483648
    %v2497 = vmul.f32 %v2496, 1.442695
    %v2498 = vpow.pop %v2497
    %v2499 = vadd.f32 %v2498, 1.0
    %v2500 = vrcp.pop %v2499
    %v2501 = vmul.f32 1.0, %v2500
    %v2502 = vtanh.pop %v2495
    %v2503 = vmul.f32 %v2501, %v2208
    %2505 = vrot.lane.b32.xlu0 %v2502, 64
    %v2506 = vpop.permute.xlu0 %2505
    %v2508 = vmul.f32 %v2501, %v2506
    %2510 = vrot.lane.b32.xlu0 %v2508, 32
    %v2511 = vpop.permute.xlu0 %2510
    %v2513 = vadd.f32 %v2503, %v2511
    %v2514 = vtanh.pop %v2513
    %2516 = vrot.lane.b32.xlu0 %v2514, 64
    %v2517 = vpop.permute.xlu0 %2516
    %v2519 = vmul.f32 %v2501, %v2517
    %2521 = vrot.lane.b32.xlu0 %v2519, 32
    %v2522 = vpop.permute.xlu0 %2521
    %v2523 = vsel %vm271, %v2522, 0
    %2525 = vmatprep.subr.mxu0 %v229
    %2526 = vmatpush1.msra.mxu0 %v228
    %2527 = vmatprep.subr.mxu0 %v231
    %2528 = vmatpush1.msra.mxu0 %v230
    %2529 = vmatprep.subr.mxu0 %v233
    %2530 = vmatpush1.msra.mxu0 %v232
    %2531 = vmatprep.subr.mxu0 %v235
    %2532 = vmatpush1.msra.mxu0 %v234
    %2533 = vmatprep.subr.mxu0 0.0
    %2534 = vmatpush1.msra.mxu0 0.0
    %2535 = vmatprep.subr.mxu0 0.0
    %2536 = vmatpush1.msra.mxu0 0.0
    %2537 = vmatprep.subr.mxu0 0.0
    %2538 = vmatpush1.msra.mxu0 0.0
    %2539 = vmatprep.subr.mxu0 0.0
    %2540 = vmatpush1.msra.mxu0 0.0
    %2541 = vmatprep.subr.mxu0 0.0
    %2542 = vmatpush1.msra.mxu0 0.0
    %2543 = vmatprep.subr.mxu0 0.0
    %2544 = vmatpush1.msra.mxu0 0.0
    %2545 = vmatprep.subr.mxu0 0.0
    %2546 = vmatpush1.msra.mxu0 0.0
    %2547 = vmatprep.subr.mxu0 0.0
    %2548 = vmatpush1.msra.mxu0 0.0
    %2549 = vmatprep.subr.mxu0 0.0
    %2550 = vmatpush1.msra.mxu0 0.0
    %2551 = vmatprep.subr.mxu0 0.0
    %2552 = vmatpush1.msra.mxu0 0.0
    %2553 = vmatprep.subr.mxu0 0.0
    %2554 = vmatpush1.msra.mxu0 0.0
    %2555 = vmatprep.subr.mxu0 0.0
    %2556 = vmatpush1.msra.mxu0 0.0
    %2557 = vmatprep.subr.mxu0 0.0
    %2558 = vmatpush1.msra.mxu0 0.0
    %2559 = vmatprep.subr.mxu0 0.0
    %2560 = vmatpush1.msra.mxu0 0.0
    %2561 = vmatprep.subr.mxu0 0.0
    %2562 = vmatpush1.msra.mxu0 0.0
    %2563 = vmatprep.subr.mxu0 0.0
    %2564 = vmatpush1.msra.mxu0 0.0
    %2565 = vmatprep.subr.mxu0 0.0
    %2566 = vmatpush1.msra.mxu0 0.0
    %2567 = vmatprep.subr.mxu0 0.0
    %2568 = vmatpush1.msra.mxu0 0.0
    %2569 = vmatprep.subr.mxu0 0.0
    %2570 = vmatpush1.msra.mxu0 0.0
    %2571 = vmatprep.subr.mxu0 0.0
    %2572 = vmatpush1.msra.mxu0 0.0
    %2573 = vmatprep.subr.mxu0 0.0
    %2574 = vmatpush1.msra.mxu0 0.0
    %2575 = vmatprep.subr.mxu0 0.0
    %2576 = vmatpush1.msra.mxu0 0.0
    %2577 = vmatprep.subr.mxu0 0.0
    %2578 = vmatpush1.msra.mxu0 0.0
    %2579 = vmatprep.subr.mxu0 0.0
    %2580 = vmatpush1.msra.mxu0 0.0
    %2581 = vmatprep.subr.mxu0 0.0
    %2582 = vmatpush1.msra.mxu0 0.0
    %2583 = vmatprep.subr.mxu0 0.0
    %2584 = vmatpush1.msra.mxu0 0.0
    %2585 = vmatprep.subr.mxu0 0.0
    %2586 = vmatpush1.msra.mxu0 0.0
    %2587 = vmatprep.subr.mxu0 0.0
    %2588 = vmatpush1.msra.mxu0 0.0
    %2589 = vmatprep.mubr.f32.mxu0 0.0
    %2590 = vmatmul.mubr.f32.gmra.mrb[0].mxu0 %v2523
    %v2591 = vpop.f32.mrb[0].mxu0
    %v2592 = vpop.f32.mrb[0].mxu0
    %v2593 = vadd.f32 0.0, %v2592
    %2594 = vdwg.mxu0
    %v2595 = vadd.f32 %v2593, %v2389
    %v2596 = vadd.f32 %v2595, %v455
    %v2597 = vxor.u32 %v2596, 2147483648
    %v2598 = vmul.f32 %v2597, 1.442695
    %v2599 = vpow.pop %v2598
    %v2600 = vadd.f32 %v2599, 1.0
    %v2601 = vrcp.pop %v2600
    %v2602 = vmul.f32 1.0, %v2601
    %v2603 = vtanh.pop %v2596
    %v2604 = vmul.f32 %v2602, %v2310
    %2606 = vrot.lane.b32.xlu0 %v2603, 64
    %v2607 = vpop.permute.xlu0 %2606
    %v2609 = vmul.f32 %v2602, %v2607
    %2611 = vrot.lane.b32.xlu0 %v2609, 32
    %v2612 = vpop.permute.xlu0 %2611
    %v2614 = vadd.f32 %v2604, %v2612
    %v2615 = vtanh.pop %v2614
    %2617 = vrot.lane.b32.xlu0 %v2615, 64
    %v2618 = vpop.permute.xlu0 %2617
    %v2620 = vmul.f32 %v2602, %v2618
    %v2621 = vld [vmem:[%s6] sm:$0xff]
    %v2622 = vld [vmem:[%s6 + $0x8] sm:$0xff]
    %v2623 = vld [vmem:[%s6 + $0x10] sm:$0xff]
    %v2624 = vld [vmem:[%s6 + $0x18] sm:$0xff]
    %v2625 = vld [vmem:[%s7] sm:$0x1]
    %v2627 = vlaneseq
    %v2628 = vshrl.u32 %v2627, 7
    %v2629 = vsub.s32 0, %v2628
    %v2630 = vrot.slane %v2625, %v2629
    %2633 = vrot.lane.b32.xlu0 %v2620, 32
    %v2634 = vpop.permute.xlu0 %2633
    %v2635 = vsel %vm271, %v2634, 0
    %2637 = vmatprep.subr.mxu0 0.0
    %2638 = vmatpush1.msra.mxu0 %v2621
    %2639 = vmatprep.subr.mxu0 0.0
    %2640 = vmatpush1.msra.mxu0 %v2622
    %2641 = vmatprep.subr.mxu0 0.0
    %2642 = vmatpush1.msra.mxu0 %v2623
    %2643 = vmatprep.subr.mxu0 0.0
    %2644 = vmatpush1.msra.mxu0 %v2624
    %2645 = vmatprep.subr.mxu0 0.0
    %2646 = vmatpush1.msra.mxu0 0.0
    %2647 = vmatprep.subr.mxu0 0.0
    %2648 = vmatpush1.msra.mxu0 0.0
    %2649 = vmatprep.subr.mxu0 0.0
    %2650 = vmatpush1.msra.mxu0 0.0
    %2651 = vmatprep.subr.mxu0 0.0
    %2652 = vmatpush1.msra.mxu0 0.0
    %2653 = vmatprep.subr.mxu0 0.0
    %2654 = vmatpush1.msra.mxu0 0.0
    %2655 = vmatprep.subr.mxu0 0.0
    %2656 = vmatpush1.msra.mxu0 0.0
    %2657 = vmatprep.subr.mxu0 0.0
    %2658 = vmatpush1.msra.mxu0 0.0
    %2659 = vmatprep.subr.mxu0 0.0
    %2660 = vmatpush1.msra.mxu0 0.0
    %2661 = vmatprep.subr.mxu0 0.0
    %2662 = vmatpush1.msra.mxu0 0.0
    %2663 = vmatprep.subr.mxu0 0.0
    %2664 = vmatpush1.msra.mxu0 0.0
    %2665 = vmatprep.subr.mxu0 0.0
    %2666 = vmatpush1.msra.mxu0 0.0
    %2667 = vmatprep.subr.mxu0 0.0
    %2668 = vmatpush1.msra.mxu0 0.0
    %2669 = vmatprep.subr.mxu0 0.0
    %2670 = vmatpush1.msra.mxu0 0.0
    %2671 = vmatprep.subr.mxu0 0.0
    %2672 = vmatpush1.msra.mxu0 0.0
    %2673 = vmatprep.subr.mxu0 0.0
    %2674 = vmatpush1.msra.mxu0 0.0
    %2675 = vmatprep.subr.mxu0 0.0
    %2676 = vmatpush1.msra.mxu0 0.0
    %2677 = vmatprep.subr.mxu0 0.0
    %2678 = vmatpush1.msra.mxu0 0.0
    %2679 = vmatprep.subr.mxu0 0.0
    %2680 = vmatpush1.msra.mxu0 0.0
    %2681 = vmatprep.subr.mxu0 0.0
    %2682 = vmatpush1.msra.mxu0 0.0
    %2683 = vmatprep.subr.mxu0 0.0
    %2684 = vmatpush1.msra.mxu0 0.0
    %2685 = vmatprep.subr.mxu0 0.0
    %2686 = vmatpush1.msra.mxu0 0.0
    %2687 = vmatprep.subr.mxu0 0.0
    %2688 = vmatpush1.msra.mxu0 0.0
    %2689 = vmatprep.subr.mxu0 0.0
    %2690 = vmatpush1.msra.mxu0 0.0
    %2691 = vmatprep.subr.mxu0 0.0
    %2692 = vmatpush1.msra.mxu0 0.0
    %2693 = vmatprep.subr.mxu0 0.0
    %2694 = vmatpush1.msra.mxu0 0.0
    %2695 = vmatprep.subr.mxu0 0.0
    %2696 = vmatpush1.msra.mxu0 0.0
    %2697 = vmatprep.subr.mxu0 0.0
    %2698 = vmatpush1.msra.mxu0 0.0
    %2699 = vmatprep.subr.mxu0 0.0
    %2700 = vmatpush1.msra.mxu0 0.0
    %2701 = vmatprep.mubr.f32.mxu0 0.0
    %2702 = vmatmul.mubr.f32.gmra.mrb[0].mxu0 %v2635
    %v2703 = vpop.f32.mrb[0].mxu0
    %v2704 = vadd.f32 %v2630, %v2703
    %v2705 = vpop.f32.mrb[0].mxu0
    %2706 = vdwg.mxu0
    %v2707 = vmax.f32 %v2704, 0.0
    %v2708 = vld [vmem:[#allocation6] sm:$0xff]
    %v2709 = vld [vmem:[#allocation6 + $0x8] sm:$0xff]
    %v2710 = vld [vmem:[#allocation6 + $0x10] sm:$0xff]
    %v2711 = vld [vmem:[#allocation6 + $0x18] sm:$0xff]
    %v2712 = vld [vmem:[#allocation6 + $0x20] sm:$0xff]
    %v2713 = vld [vmem:[#allocation6 + $0x28] sm:$0xff]
    %v2714 = vld [vmem:[#allocation6 + $0x30] sm:$0xff]
    %v2715 = vld [vmem:[#allocation6 + $0x38] sm:$0xff]
    %v2716 = vld [vmem:[#allocation6 + $0x40] sm:$0xff]
    %v2717 = vld [vmem:[#allocation6 + $0x48] sm:$0xff]
    %v2718 = vld [vmem:[#allocation6 + $0x50] sm:$0xff]
    %v2719 = vld [vmem:[#allocation6 + $0x58] sm:$0xff]
    %v2720 = vld [vmem:[#allocation6 + $0x60] sm:$0xff]
    %v2721 = vld [vmem:[#allocation6 + $0x68] sm:$0xff]
    %v2722 = vld [vmem:[#allocation6 + $0x70] sm:$0xff]
    %v2723 = vld [vmem:[#allocation6 + $0x78] sm:$0xff]
    %v2724 = vld [vmem:[%s9] sm:$0x1]
    %v2726 = vlaneseq
    %v2727 = vshrl.u32 %v2726, 7
    %v2728 = vsub.s32 0, %v2727
    %v2729 = vrot.slane %v2724, %v2728
    %2731 = vmatprep.subr.mxu0 0.0
    %2732 = vmatpush1.msra.mxu0 %v2708
    %2733 = vmatprep.subr.mxu0 0.0
    %2734 = vmatpush1.msra.mxu0 %v2709
    %2735 = vmatprep.subr.mxu0 0.0
    %2736 = vmatpush1.msra.mxu0 %v2710
    %2737 = vmatprep.subr.mxu0 0.0
    %2738 = vmatpush1.msra.mxu0 %v2711
    %2739 = vmatprep.subr.mxu0 0.0
    %2740 = vmatpush1.msra.mxu0 %v2712
    %2741 = vmatprep.subr.mxu0 0.0
    %2742 = vmatpush1.msra.mxu0 %v2713
    %2743 = vmatprep.subr.mxu0 0.0
    %2744 = vmatpush1.msra.mxu0 %v2714
    %2745 = vmatprep.subr.mxu0 0.0
    %2746 = vmatpush1.msra.mxu0 %v2715
    %2747 = vmatprep.subr.mxu0 0.0
    %2748 = vmatpush1.msra.mxu0 %v2716
    %2749 = vmatprep.subr.mxu0 0.0
    %2750 = vmatpush1.msra.mxu0 %v2717
    %2751 = vmatprep.subr.mxu0 0.0
    %2752 = vmatpush1.msra.mxu0 %v2718
    %2753 = vmatprep.subr.mxu0 0.0
    %2754 = vmatpush1.msra.mxu0 %v2719
    %2755 = vmatprep.subr.mxu0 0.0
    %2756 = vmatpush1.msra.mxu0 %v2720
    %2757 = vmatprep.subr.mxu0 0.0
    %2758 = vmatpush1.msra.mxu0 %v2721
    %2759 = vmatprep.subr.mxu0 0.0
    %2760 = vmatpush1.msra.mxu0 %v2722
    %2761 = vmatprep.subr.mxu0 0.0
    %2762 = vmatpush1.msra.mxu0 %v2723
    %2763 = vmatprep.subr.mxu0 0.0
    %2764 = vmatpush1.msra.mxu0 0.0
    %2765 = vmatprep.subr.mxu0 0.0
    %2766 = vmatpush1.msra.mxu0 0.0
    %2767 = vmatprep.subr.mxu0 0.0
    %2768 = vmatpush1.msra.mxu0 0.0
    %2769 = vmatprep.subr.mxu0 0.0
    %2770 = vmatpush1.msra.mxu0 0.0
    %2771 = vmatprep.subr.mxu0 0.0
    %2772 = vmatpush1.msra.mxu0 0.0
    %2773 = vmatprep.subr.mxu0 0.0
    %2774 = vmatpush1.msra.mxu0 0.0
    %2775 = vmatprep.subr.mxu0 0.0
    %2776 = vmatpush1.msra.mxu0 0.0
    %2777 = vmatprep.subr.mxu0 0.0
    %2778 = vmatpush1.msra.mxu0 0.0
    %2779 = vmatprep.subr.mxu0 0.0
    %2780 = vmatpush1.msra.mxu0 0.0
    %2781 = vmatprep.subr.mxu0 0.0
    %2782 = vmatpush1.msra.mxu0 0.0
    %2783 = vmatprep.subr.mxu0 0.0
    %2784 = vmatpush1.msra.mxu0 0.0
    %2785 = vmatprep.subr.mxu0 0.0
    %2786 = vmatpush1.msra.mxu0 0.0
    %2787 = vmatprep.subr.mxu0 0.0
    %2788 = vmatpush1.msra.mxu0 0.0
    %2789 = vmatprep.subr.mxu0 0.0
    %2790 = vmatpush1.msra.mxu0 0.0
    %2791 = vmatprep.subr.mxu0 0.0
    %2792 = vmatpush1.msra.mxu0 0.0
    %2793 = vmatprep.subr.mxu0 0.0
    %2794 = vmatpush1.msra.mxu0 0.0
    %2795 = vmatprep.mubr.f32.mxu0 0.0
    %2796 = vmatmul.mubr.f32.gmra.mrb[0].mxu0 %v2707
    %v2797 = vpop.f32.mrb[0].mxu0
    %v2798 = vadd.f32 %v2729, %v2797
    %v2799 = vpop.f32.mrb[0].mxu0
    %2800 = vdwg.mxu0
    %2801 = vst [vmem:[#allocation8] sm:$0xff] %v2798
    // Predicated region
    $region50: #{tpu_custom_call.1} parent=1 // pred_check
      _
    $region51: #{tpu_custom_call.1} parent=1 // pred_check_branch
      %2803 = sbr.rel (0) target = $region53
    $region52: #{tpu_custom_call.1} parent=1 // pred_region
      %s2805 = ssub.s32 128, 128
      %2806 = vsyncadd [#allocation5], %s2805
      %s2808 = sshll.u32 [#allocation8], 4
      %s2809 = int_to_ptr.vmem [resolvable:$true] %s2808
      %2811 = dma.vmem_to_hbm [thread:$0]  %s2809, 128, %s10, [#allocation5]
    $region53: #{tpu_custom_call.1} parent=1 // pred_fallthru
      _
    // Predicated region
    $region54: #{tpu_custom_call.1} parent=1 // pred_check
      _
    $region55: #{tpu_custom_call.1} parent=1 // pred_check_branch
      %2813 = sbr.rel (0) target = $region57
    $region56: #{tpu_custom_call.1} parent=1 // pred_region
      %2814 = dma.done [#allocation5], 128
    $region57: #{tpu_custom_call.1} parent=1 // pred_fallthru
      _
    %2815 = vsyncpa [#allocation4], 1
    %2816 = vsyncpa [#allocation7], 1
    %2817 = vsyncpa [#allocation5], 1

</llo_original>
